<compile_context>
chip_gen: v6e
topology: v6e:2x2x1
jax: 0.10.0
libtpu: 0.0.40
codegen_flags: <defaults>
</compile_context>

<pallas_src>
import math

import jax
import jax.numpy as jnp
from jax.experimental import pallas as pl
from jax.experimental.pallas import tpu as pltpu

# ----------------------------- hyper-parameters ------------------------------
DEPTH = 6                  # -> hidden_depth = 3 per MLP trunk
WIDTH = 64                 # hidden width (2048 in the original, shrunk for demo)
FOURIER_DIM = 32           # fourier embedding dim (must be even)
CLIP_DIM = 16              # per-latent dim (512 in the original)
FOURIER_SCALE = 1.0 / (2.0 ** 4)
INPUT_DIM = 3              # use_camera_dir=False
N_POINTS = 256             # number of query points (the "batch")
TILE_N = 128               # rows per grid step: grid=(2,) -> both v7x TCs busy.
                           # At larger N use 256 on v6e/v7x (256-deep MXU), 128 on v5e.

OUT_DIM = 2 * CLIP_DIM
OUT_PAD = max(128, ((OUT_DIM + 127) // 128) * 128)   # lane-dense output slab
BIAS_PACK_W = max(WIDTH, OUT_PAD)                    # packed-bias lane width


# --------------------------------- kernel ------------------------------------
def clip_mlp_kernel(
    x_ref, fb_ref,
    w10s_ref, w10c_ref, w11_ref, w12_ref,
    wf_ref, w20bs_ref, w20bc_ref, w21_ref, w22_ref, w23_ref,
    bias_ref,
    out_ref,
):
    bf16 = jnp.bfloat16

    # --- FourierFeatures on the VPU: proj = (2*pi*x) @ B, unrolled over K=3 ---
    # fb_ref already holds 2*pi*B, shape (3, F/2), f32.
    x = x_ref[...]                                     # (tn, 3) f32
    fb = fb_ref[...]                                   # (3, F/2) f32
    proj = (x[:, 0:1] * fb[0:1, :]
            + x[:, 1:2] * fb[1:2, :]
            + x[:, 2:3] * fb[2:3, :])                  # (tn, F/2) f32
    s = jnp.sin(proj).astype(bf16)                     # sin half of pf, bf16 for MXU
    c = jnp.cos(proj).astype(bf16)                     # cos half of pf

    # --- packed biases (f32): one (8, BIAS_PACK_W) block ----------------------
    bias = bias_ref[...]
    b10 = bias[0:1, :WIDTH]
    b11 = bias[1:2, :WIDTH]
    b12 = bias[2:3, :WIDTH]
    bfold = bias[3:4, :WIDTH]
    b21 = bias[4:5, :WIDTH]
    b22 = bias[5:6, :WIDTH]
    b23 = bias[6:7, :OUT_PAD]

    def mm(a_bf16, w_ref):
        # bf16 x bf16 matmul, f32 accumulate on the MXU.
        return jnp.dot(a_bf16, w_ref[...], preferred_element_type=jnp.float32)

    # --- trunk_1 hidden layers (ReLU); its output linear is folded away -------
    h = jnp.maximum(mm(s, w10s_ref) + mm(c, w10c_ref) + b10, 0.0)
    h = jnp.maximum(mm(h.astype(bf16), w11_ref) + b11, 0.0)
    h = jnp.maximum(mm(h.astype(bf16), w12_ref) + b12, 0.0)

    # --- trunk_2 on concat([trunk_1(pf), pf]): first layer uses the folded
    #     weight (w1_3 @ w2_0[:W]) plus the sin/cos halves of w2_0[W:] ----------
    g = jnp.maximum(mm(h.astype(bf16), wf_ref)
                    + mm(s, w20bs_ref) + mm(c, w20bc_ref) + bfold, 0.0)
    g = jnp.maximum(mm(g.astype(bf16), w21_ref) + b21, 0.0)
    g = jnp.maximum(mm(g.astype(bf16), w22_ref) + b22, 0.0)

    # Lane-dense (tn, OUT_PAD) store; the wrapper slices to 2*CLIP_DIM and chunks.
    out_ref[...] = mm(g.astype(bf16), w23_ref) + b23


# -------------------------------- wrapper ------------------------------------
def prepare_kernel_params(p):
    """Fold 2*pi into B, fold w1_3 into w2_0, split concat weights, cast to bf16,
    pad the output layer to a lane-dense slab and pack all biases into one block."""
    half = FOURIER_DIM // 2
    bf16 = jnp.bfloat16

    # Fold trunk_1's output linear into trunk_2's first layer (in f32, then bf16).
    w2_0a = p["w2_0"][:WIDTH, :]
    w_fold = p["w1_3"] @ w2_0a                          # (W, W)
    b_fold = p["b1_3"] @ w2_0a + p["b2_0"]              # (1, W)

    # Zero-pad the output layer to OUT_PAD lanes (unmasked vst on store).
    w2_3p = jnp.zeros((WIDTH, OUT_PAD), jnp.float32).at[:, :OUT_DIM].set(p["w2_3"])
    b2_3p = jnp.zeros((1, OUT_PAD), jnp.float32).at[:, :OUT_DIM].set(p["b2_3"])

    # Pack all biases (kept f32: they are added to the f32 accumulators).
    biases = jnp.zeros((8, BIAS_PACK_W), jnp.float32)
    biases = biases.at[0, :WIDTH].set(p["b1_0"][0])
    biases = biases.at[1, :WIDTH].set(p["b1_1"][0])
    biases = biases.at[2, :WIDTH].set(p["b1_2"][0])
    biases = biases.at[3, :WIDTH].set(b_fold[0])
    biases = biases.at[4, :WIDTH].set(p["b2_1"][0])
    biases = biases.at[5, :WIDTH].set(p["b2_2"][0])
    biases = biases.at[6, :OUT_PAD].set(b2_3p[0])

    return [
        (p["fourier_B"] * (2.0 * math.pi)).astype(jnp.float32),   # fb2pi (f32, VPU)
        p["w1_0"][:half, :].astype(bf16),                         # w1_0 sin half
        p["w1_0"][half:, :].astype(bf16),                         # w1_0 cos half
        p["w1_1"].astype(bf16),
        p["w1_2"].astype(bf16),
        w_fold.astype(bf16),                                      # folded w1_3 @ w2_0a
        p["w2_0"][WIDTH:WIDTH + half, :].astype(bf16),            # w2_0 sin half
        p["w2_0"][WIDTH + half:, :].astype(bf16),                 # w2_0 cos half
        p["w2_1"].astype(bf16),
        p["w2_2"].astype(bf16),
        w2_3p.astype(bf16),                                       # padded output layer
        biases,                                                    # packed f32 biases
    ]


def implicit_clip_forward(x, params):
    weight_arrays = prepare_kernel_params(params)
    n = x.shape[0]
    assert n % TILE_N == 0
    grid = (n // TILE_N,)

    # Weights / packed biases: whole-array resident in VMEM, single copy
    # (no per-step double buffering -- they never change across grid steps).
    resident = pl.BlockSpec(memory_space=pltpu.MemorySpace.VMEM)
    in_specs = ([pl.BlockSpec((TILE_N, INPUT_DIM), lambda i: (i, 0))]   # x: row tiles
                + [resident] * len(weight_arrays))

    # TODO(synk): at production sizes (WIDTH=2048, CLIP_DIM=512) the resident bf16
    # weights (~50 MiB) do not fit v7x's 64 MiB VMEM alongside activations; keep
    # weights in HBM (memory_space=pl.ANY) and stream K-slabs per layer with
    # pltpu.emit_pipeline, accumulating into a (TILE_N, W) f32 scratch.
    out = pl.pallas_call(
        clip_mlp_kernel,
        grid=grid,
        in_specs=in_specs,
        out_specs=pl.BlockSpec((TILE_N, OUT_PAD), lambda i: (i, 0)),
        out_shape=jax.ShapeDtypeStruct((n, OUT_PAD), jnp.float32),
        compiler_params=pltpu.CompilerParams(
            dimension_semantics=("parallel",),
            vmem_limit_bytes=32 * 1024 * 1024,   # demo needs <1 MiB; explicit w/ headroom
        ),
    )(x, *weight_arrays)

    out = out[:, :OUT_DIM]
    # torch.chunk(joint_output, 2, dim=-1) done lane-dense outside the kernel.
    return out[:, :CLIP_DIM], out[:, CLIP_DIM:]


# ---------------------- deterministic parameter init -------------------------
def init_params(key):
    params = {}

    def linear(key, fan_in, fan_out):
        k1, k2 = jax.random.split(key)
        bound = 1.0 / math.sqrt(fan_in)
        w = jax.random.uniform(k1, (fan_in, fan_out), jnp.float32, -bound, bound)
        b = jax.random.uniform(k2, (1, fan_out), jnp.float32, -bound, bound)
        return w, b

    keys = jax.random.split(key, 10)
    # FourierFeatures projection matrix (fixed, randn * scale)
    params["fourier_B"] = (
        jax.random.normal(keys[0], (INPUT_DIM, FOURIER_DIM // 2), jnp.float32)
        * FOURIER_SCALE
    )
    # trunk_1: Linear(F,W) ReLU, Linear(W,W) ReLU, Linear(W,W) ReLU, Linear(W,W)
    params["w1_0"], params["b1_0"] = linear(keys[1], FOURIER_DIM, WIDTH)
    params["w1_1"], params["b1_1"] = linear(keys[2], WIDTH, WIDTH)
    params["w1_2"], params["b1_2"] = linear(keys[3], WIDTH, WIDTH)
    params["w1_3"], params["b1_3"] = linear(keys[4], WIDTH, WIDTH)
    # trunk_2: Linear(W+F,W) ReLU, Linear(W,W) ReLU, Linear(W,W) ReLU,
    #          Linear(W, 2*CLIP_DIM)
    params["w2_0"], params["b2_0"] = linear(keys[5], WIDTH + FOURIER_DIM, WIDTH)
    params["w2_1"], params["b2_1"] = linear(keys[6], WIDTH, WIDTH)
    params["w2_2"], params["b2_2"] = linear(keys[7], WIDTH, WIDTH)
    params["w2_3"], params["b2_3"] = linear(keys[8], WIDTH, 2 * CLIP_DIM)
    # temperature parameter exists in the module but is unused in forward().
    params["temperature"] = jnp.log(jnp.asarray(1.0 / 0.07, jnp.float32))
    return params


# -------------------------- pure-JAX references -------------------------------
def forward_ref(x, p):
    """Full-f32 reference matching the PyTorch module semantics."""
    proj = (2.0 * math.pi * x) @ p["fourier_B"]
    pf = jnp.concatenate([jnp.sin(proj), jnp.cos(proj)], axis=-1)
    h = jax.nn.relu(pf @ p["w1_0"] + p["b1_0"])
    h = jax.nn.relu(h @ p["w1_1"] + p["b1_1"])
    h = jax.nn.relu(h @ p["w1_2"] + p["b1_2"])
    h = h @ p["w1_3"] + p["b1_3"]
    cat = jnp.concatenate([h, pf], axis=-1)
    g = jax.nn.relu(cat @ p["w2_0"] + p["b2_0"])
    g = jax.nn.relu(g @ p["w2_1"] + p["b2_1"])
    g = jax.nn.relu(g @ p["w2_2"] + p["b2_2"])
    out = g @ p["w2_3"] + p["b2_3"]
    return out[:, :CLIP_DIM], out[:, CLIP_DIM:]


def forward_ref_bf16(x, p):
    """Mirrors the kernel's numerics (bf16 matmul inputs, f32 accumulation,
    folded w1_3 @ w2_0, sin/cos weight splits) for a tight correctness check."""
    bf16 = jnp.bfloat16
    half = FOURIER_DIM // 2

    def mm(a, w):
        return jnp.dot(a.astype(bf16), w.astype(bf16),
                       preferred_element_type=jnp.float32)

    fb = p["fourier_B"] * (2.0 * math.pi)
    proj = (x[:, 0:1] * fb[0:1, :] + x[:, 1:2] * fb[1:2, :]
            + x[:, 2:3] * fb[2:3, :])
    s = jnp.sin(proj)
    c = jnp.cos(proj)
    w2_0a = p["w2_0"][:WIDTH, :]
    w_fold = p["w1_3"] @ w2_0a
    b_fold = p["b1_3"] @ w2_0a + p["b2_0"]
    h = jax.nn.relu(mm(s, p["w1_0"][:half]) + mm(c, p["w1_0"][half:]) + p["b1_0"])
    h = jax.nn.relu(mm(h, p["w1_1"]) + p["b1_1"])
    h = jax.nn.relu(mm(h, p["w1_2"]) + p["b1_2"])
    g = jax.nn.relu(mm(h, w_fold) + mm(s, p["w2_0"][WIDTH:WIDTH + half])
                    + mm(c, p["w2_0"][WIDTH + half:]) + b_fold)
    g = jax.nn.relu(mm(g, p["w2_1"]) + p["b2_1"])
    g = jax.nn.relu(mm(g, p["w2_2"]) + p["b2_2"])
    out = mm(g, p["w2_3"]) + p["b2_3"]
    return out[:, :CLIP_DIM], out[:, CLIP_DIM:]


# ----------------------------------- main -------------------------------------
if __name__ == "__main__":
    key = jax.random.PRNGKey(0)
    k_x, k_p = jax.random.split(key)
    x = jax.random.uniform(k_x, (N_POINTS, INPUT_DIM), jnp.float32, -1.0, 1.0)
    params = init_params(k_p)

    label_latent, image_latent = implicit_clip_forward(x, params)
    jax.block_until_ready((label_latent, image_latent))

    assert label_latent.shape == (N_POINTS, CLIP_DIM)
    assert image_latent.shape == (N_POINTS, CLIP_DIM)

    # Tight check vs a pure-JAX mirror of the kernel's bf16 numerics.
    mim_l, mim_i = forward_ref_bf16(x, params)
    assert jnp.allclose(label_latent, mim_l, atol=5e-3, rtol=5e-3)
    assert jnp.allclose(image_latent, mim_i, atol=5e-3, rtol=5e-3)

    # Loose check vs the full-f32 module reference (bf16 weights/activations
    # shift results slightly -- the tolerance loosening flagged in the review).
    ref_l, ref_i = forward_ref(x, params)
    assert jnp.allclose(label_latent, ref_l, atol=5e-2, rtol=5e-2)
    assert jnp.allclose(image_latent, ref_i, atol=5e-2, rtol=5e-2)

    # TODO(synk): compute_loss (contrastive CE over the similarity matrix) is not
    # part of forward() and is left in plain JAX if ever needed.
    print("KERNEL_OK")
</pallas_src>

<mosaic_0001>
module attributes {stable_mosaic.version = 11 : i64} {
  func.func @clip_mlp_kernel(%arg0: i32, %arg1: memref<128x3xf32, #tpu.memory_space<vmem>>, %arg2: memref<3x16xf32, #tpu.memory_space<vmem>>, %arg3: memref<16x64xbf16, #tpu.memory_space<vmem>>, %arg4: memref<16x64xbf16, #tpu.memory_space<vmem>>, %arg5: memref<64x64xbf16, #tpu.memory_space<vmem>>, %arg6: memref<64x64xbf16, #tpu.memory_space<vmem>>, %arg7: memref<64x64xbf16, #tpu.memory_space<vmem>>, %arg8: memref<16x64xbf16, #tpu.memory_space<vmem>>, %arg9: memref<16x64xbf16, #tpu.memory_space<vmem>>, %arg10: memref<64x64xbf16, #tpu.memory_space<vmem>>, %arg11: memref<64x64xbf16, #tpu.memory_space<vmem>>, %arg12: memref<64x128xbf16, #tpu.memory_space<vmem>>, %arg13: memref<8x128xf32, #tpu.memory_space<vmem>>, %arg14: memref<128x128xf32, #tpu.memory_space<vmem>>) attributes {dimension_semantics = [#tpu.dimension_semantics<parallel>], iteration_bounds = array<i64: 2>, scalar_prefetch = 0 : i64, scratch_operands = 0 : i64, tpu.core_type = #tpu.core_type<tc>, window_params = [{transform_indices = @transform_0, window_bounds = array<i64: 128, 3>}, {pipeline_mode = #tpu.pipeline_mode<synchronous>, transform_indices = @transform_1, window_bounds = array<i64: 3, 16>}, {pipeline_mode = #tpu.pipeline_mode<synchronous>, transform_indices = @transform_2, window_bounds = array<i64: 16, 64>}, {pipeline_mode = #tpu.pipeline_mode<synchronous>, transform_indices = @transform_3, window_bounds = array<i64: 16, 64>}, {pipeline_mode = #tpu.pipeline_mode<synchronous>, transform_indices = @transform_4, window_bounds = array<i64: 64, 64>}, {pipeline_mode = #tpu.pipeline_mode<synchronous>, transform_indices = @transform_5, window_bounds = array<i64: 64, 64>}, {pipeline_mode = #tpu.pipeline_mode<synchronous>, transform_indices = @transform_6, window_bounds = array<i64: 64, 64>}, {pipeline_mode = #tpu.pipeline_mode<synchronous>, transform_indices = @transform_7, window_bounds = array<i64: 16, 64>}, {pipeline_mode = #tpu.pipeline_mode<synchronous>, transform_indices = @transform_8, window_bounds = array<i64: 16, 64>}, {pipeline_mode = #tpu.pipeline_mode<synchronous>, transform_indices = @transform_9, window_bounds = array<i64: 64, 64>}, {pipeline_mode = #tpu.pipeline_mode<synchronous>, transform_indices = @transform_10, window_bounds = array<i64: 64, 64>}, {pipeline_mode = #tpu.pipeline_mode<synchronous>, transform_indices = @transform_11, window_bounds = array<i64: 64, 128>}, {pipeline_mode = #tpu.pipeline_mode<synchronous>, transform_indices = @transform_12, window_bounds = array<i64: 8, 128>}, {transform_indices = @transform_13, window_bounds = array<i64: 128, 128>}]} {
    %c0 = arith.constant 0 : index
    %c0_0 = arith.constant 0 : index
    %0 = vector.load %arg1[%c0, %c0_0] : memref<128x3xf32, #tpu.memory_space<vmem>>, vector<128x3xf32>
    %c0_1 = arith.constant 0 : index
    %c0_2 = arith.constant 0 : index
    %1 = vector.load %arg2[%c0_1, %c0_2] : memref<3x16xf32, #tpu.memory_space<vmem>>, vector<3x16xf32>
    %2 = vector.extract_strided_slice %0 {offsets = [0, 0], sizes = [128, 1], strides = [1, 1]} : vector<128x3xf32> to vector<128x1xf32>
    %3 = vector.extract_strided_slice %1 {offsets = [0, 0], sizes = [1, 16], strides = [1, 1]} : vector<3x16xf32> to vector<1x16xf32>
    %4 = vector.broadcast %2 : vector<128x1xf32> to vector<128x16xf32>
    %5 = vector.broadcast %3 : vector<1x16xf32> to vector<128x16xf32>
    %6 = arith.mulf %4, %5 : vector<128x16xf32>
    %7 = vector.extract_strided_slice %0 {offsets = [0, 1], sizes = [128, 1], strides = [1, 1]} : vector<128x3xf32> to vector<128x1xf32>
    %8 = vector.extract_strided_slice %1 {offsets = [1, 0], sizes = [1, 16], strides = [1, 1]} : vector<3x16xf32> to vector<1x16xf32>
    %9 = vector.broadcast %7 : vector<128x1xf32> to vector<128x16xf32>
    %10 = vector.broadcast %8 : vector<1x16xf32> to vector<128x16xf32>
    %11 = arith.mulf %9, %10 : vector<128x16xf32>
    %12 = arith.addf %6, %11 : vector<128x16xf32>
    %13 = vector.extract_strided_slice %0 {offsets = [0, 2], sizes = [128, 1], strides = [1, 1]} : vector<128x3xf32> to vector<128x1xf32>
    %14 = vector.extract_strided_slice %1 {offsets = [2, 0], sizes = [1, 16], strides = [1, 1]} : vector<3x16xf32> to vector<1x16xf32>
    %15 = vector.broadcast %13 : vector<128x1xf32> to vector<128x16xf32>
    %16 = vector.broadcast %14 : vector<1x16xf32> to vector<128x16xf32>
    %17 = arith.mulf %15, %16 : vector<128x16xf32>
    %18 = arith.addf %12, %17 : vector<128x16xf32>
    %19 = math.sin %18 : vector<128x16xf32>
    %20 = arith.truncf %19 : vector<128x16xf32> to vector<128x16xbf16>
    %21 = math.cos %18 : vector<128x16xf32>
    %22 = arith.truncf %21 : vector<128x16xf32> to vector<128x16xbf16>
    %c0_3 = arith.constant 0 : index
    %c0_4 = arith.constant 0 : index
    %23 = vector.load %arg13[%c0_3, %c0_4] : memref<8x128xf32, #tpu.memory_space<vmem>>, vector<8x128xf32>
    %24 = vector.extract_strided_slice %23 {offsets = [0, 0], sizes = [1, 64], strides = [1, 1]} : vector<8x128xf32> to vector<1x64xf32>
    %25 = vector.extract_strided_slice %23 {offsets = [1, 0], sizes = [1, 64], strides = [1, 1]} : vector<8x128xf32> to vector<1x64xf32>
    %26 = vector.extract_strided_slice %23 {offsets = [2, 0], sizes = [1, 64], strides = [1, 1]} : vector<8x128xf32> to vector<1x64xf32>
    %27 = vector.extract_strided_slice %23 {offsets = [3, 0], sizes = [1, 64], strides = [1, 1]} : vector<8x128xf32> to vector<1x64xf32>
    %28 = vector.extract_strided_slice %23 {offsets = [4, 0], sizes = [1, 64], strides = [1, 1]} : vector<8x128xf32> to vector<1x64xf32>
    %29 = vector.extract_strided_slice %23 {offsets = [5, 0], sizes = [1, 64], strides = [1, 1]} : vector<8x128xf32> to vector<1x64xf32>
    %30 = vector.extract_strided_slice %23 {offsets = [6, 0], sizes = [1, 128], strides = [1, 1]} : vector<8x128xf32> to vector<1x128xf32>
    %c0_5 = arith.constant 0 : index
    %c0_6 = arith.constant 0 : index
    %31 = vector.load %arg3[%c0_5, %c0_6] : memref<16x64xbf16, #tpu.memory_space<vmem>>, vector<16x64xbf16>
    %cst = arith.constant dense<0.000000e+00> : vector<128x64xf32>
    %32 = tpu.matmul %20, %31, %cst {dimension_numbers = #tpu.dot_dimension_numbers<[1], [0], [0], [1], [0, 0, 1, 1], [], []>} : vector<128x16xbf16>, vector<16x64xbf16>, vector<128x64xf32> -> vector<128x64xf32>
    %c0_7 = arith.constant 0 : index
    %c0_8 = arith.constant 0 : index
    %33 = vector.load %arg4[%c0_7, %c0_8] : memref<16x64xbf16, #tpu.memory_space<vmem>>, vector<16x64xbf16>
    %cst_9 = arith.constant dense<0.000000e+00> : vector<128x64xf32>
    %34 = tpu.matmul %22, %33, %cst_9 {dimension_numbers = #tpu.dot_dimension_numbers<[1], [0], [0], [1], [0, 0, 1, 1], [], []>} : vector<128x16xbf16>, vector<16x64xbf16>, vector<128x64xf32> -> vector<128x64xf32>
    %35 = arith.addf %32, %34 : vector<128x64xf32>
    %36 = vector.broadcast %24 : vector<1x64xf32> to vector<128x64xf32>
    %37 = arith.addf %35, %36 : vector<128x64xf32>
    %cst_10 = arith.constant 0.000000e+00 : f32
    %38 = vector.broadcast %cst_10 : f32 to vector<128x64xf32>
    %39 = arith.maximumf %37, %38 : vector<128x64xf32>
    %40 = arith.truncf %39 : vector<128x64xf32> to vector<128x64xbf16>
    %c0_11 = arith.constant 0 : index
    %c0_12 = arith.constant 0 : index
    %41 = vector.load %arg5[%c0_11, %c0_12] : memref<64x64xbf16, #tpu.memory_space<vmem>>, vector<64x64xbf16>
    %cst_13 = arith.constant dense<0.000000e+00> : vector<128x64xf32>
    %42 = tpu.matmul %40, %41, %cst_13 {dimension_numbers = #tpu.dot_dimension_numbers<[1], [0], [0], [1], [0, 0, 1, 1], [], []>} : vector<128x64xbf16>, vector<64x64xbf16>, vector<128x64xf32> -> vector<128x64xf32>
    %43 = vector.broadcast %25 : vector<1x64xf32> to vector<128x64xf32>
    %44 = arith.addf %42, %43 : vector<128x64xf32>
    %cst_14 = arith.constant 0.000000e+00 : f32
    %45 = vector.broadcast %cst_14 : f32 to vector<128x64xf32>
    %46 = arith.maximumf %44, %45 : vector<128x64xf32>
    %47 = arith.truncf %46 : vector<128x64xf32> to vector<128x64xbf16>
    %c0_15 = arith.constant 0 : index
    %c0_16 = arith.constant 0 : index
    %48 = vector.load %arg6[%c0_15, %c0_16] : memref<64x64xbf16, #tpu.memory_space<vmem>>, vector<64x64xbf16>
    %cst_17 = arith.constant dense<0.000000e+00> : vector<128x64xf32>
    %49 = tpu.matmul %47, %48, %cst_17 {dimension_numbers = #tpu.dot_dimension_numbers<[1], [0], [0], [1], [0, 0, 1, 1], [], []>} : vector<128x64xbf16>, vector<64x64xbf16>, vector<128x64xf32> -> vector<128x64xf32>
    %50 = vector.broadcast %26 : vector<1x64xf32> to vector<128x64xf32>
    %51 = arith.addf %49, %50 : vector<128x64xf32>
    %cst_18 = arith.constant 0.000000e+00 : f32
    %52 = vector.broadcast %cst_18 : f32 to vector<128x64xf32>
    %53 = arith.maximumf %51, %52 : vector<128x64xf32>
    %54 = arith.truncf %53 : vector<128x64xf32> to vector<128x64xbf16>
    %c0_19 = arith.constant 0 : index
    %c0_20 = arith.constant 0 : index
    %55 = vector.load %arg7[%c0_19, %c0_20] : memref<64x64xbf16, #tpu.memory_space<vmem>>, vector<64x64xbf16>
    %cst_21 = arith.constant dense<0.000000e+00> : vector<128x64xf32>
    %56 = tpu.matmul %54, %55, %cst_21 {dimension_numbers = #tpu.dot_dimension_numbers<[1], [0], [0], [1], [0, 0, 1, 1], [], []>} : vector<128x64xbf16>, vector<64x64xbf16>, vector<128x64xf32> -> vector<128x64xf32>
    %c0_22 = arith.constant 0 : index
    %c0_23 = arith.constant 0 : index
    %57 = vector.load %arg8[%c0_22, %c0_23] : memref<16x64xbf16, #tpu.memory_space<vmem>>, vector<16x64xbf16>
    %cst_24 = arith.constant dense<0.000000e+00> : vector<128x64xf32>
    %58 = tpu.matmul %20, %57, %cst_24 {dimension_numbers = #tpu.dot_dimension_numbers<[1], [0], [0], [1], [0, 0, 1, 1], [], []>} : vector<128x16xbf16>, vector<16x64xbf16>, vector<128x64xf32> -> vector<128x64xf32>
    %59 = arith.addf %56, %58 : vector<128x64xf32>
    %c0_25 = arith.constant 0 : index
    %c0_26 = arith.constant 0 : index
    %60 = vector.load %arg9[%c0_25, %c0_26] : memref<16x64xbf16, #tpu.memory_space<vmem>>, vector<16x64xbf16>
    %cst_27 = arith.constant dense<0.000000e+00> : vector<128x64xf32>
    %61 = tpu.matmul %22, %60, %cst_27 {dimension_numbers = #tpu.dot_dimension_numbers<[1], [0], [0], [1], [0, 0, 1, 1], [], []>} : vector<128x16xbf16>, vector<16x64xbf16>, vector<128x64xf32> -> vector<128x64xf32>
    %62 = arith.addf %59, %61 : vector<128x64xf32>
    %63 = vector.broadcast %27 : vector<1x64xf32> to vector<128x64xf32>
    %64 = arith.addf %62, %63 : vector<128x64xf32>
    %cst_28 = arith.constant 0.000000e+00 : f32
    %65 = vector.broadcast %cst_28 : f32 to vector<128x64xf32>
    %66 = arith.maximumf %64, %65 : vector<128x64xf32>
    %67 = arith.truncf %66 : vector<128x64xf32> to vector<128x64xbf16>
    %c0_29 = arith.constant 0 : index
    %c0_30 = arith.constant 0 : index
    %68 = vector.load %arg10[%c0_29, %c0_30] : memref<64x64xbf16, #tpu.memory_space<vmem>>, vector<64x64xbf16>
    %cst_31 = arith.constant dense<0.000000e+00> : vector<128x64xf32>
    %69 = tpu.matmul %67, %68, %cst_31 {dimension_numbers = #tpu.dot_dimension_numbers<[1], [0], [0], [1], [0, 0, 1, 1], [], []>} : vector<128x64xbf16>, vector<64x64xbf16>, vector<128x64xf32> -> vector<128x64xf32>
    %70 = vector.broadcast %28 : vector<1x64xf32> to vector<128x64xf32>
    %71 = arith.addf %69, %70 : vector<128x64xf32>
    %cst_32 = arith.constant 0.000000e+00 : f32
    %72 = vector.broadcast %cst_32 : f32 to vector<128x64xf32>
    %73 = arith.maximumf %71, %72 : vector<128x64xf32>
    %74 = arith.truncf %73 : vector<128x64xf32> to vector<128x64xbf16>
    %c0_33 = arith.constant 0 : index
    %c0_34 = arith.constant 0 : index
    %75 = vector.load %arg11[%c0_33, %c0_34] : memref<64x64xbf16, #tpu.memory_space<vmem>>, vector<64x64xbf16>
    %cst_35 = arith.constant dense<0.000000e+00> : vector<128x64xf32>
    %76 = tpu.matmul %74, %75, %cst_35 {dimension_numbers = #tpu.dot_dimension_numbers<[1], [0], [0], [1], [0, 0, 1, 1], [], []>} : vector<128x64xbf16>, vector<64x64xbf16>, vector<128x64xf32> -> vector<128x64xf32>
    %77 = vector.broadcast %29 : vector<1x64xf32> to vector<128x64xf32>
    %78 = arith.addf %76, %77 : vector<128x64xf32>
    %cst_36 = arith.constant 0.000000e+00 : f32
    %79 = vector.broadcast %cst_36 : f32 to vector<128x64xf32>
    %80 = arith.maximumf %78, %79 : vector<128x64xf32>
    %81 = arith.truncf %80 : vector<128x64xf32> to vector<128x64xbf16>
    %c0_37 = arith.constant 0 : index
    %c0_38 = arith.constant 0 : index
    %82 = vector.load %arg12[%c0_37, %c0_38] : memref<64x128xbf16, #tpu.memory_space<vmem>>, vector<64x128xbf16>
    %cst_39 = arith.constant dense<0.000000e+00> : vector<128x128xf32>
    %83 = tpu.matmul %81, %82, %cst_39 {dimension_numbers = #tpu.dot_dimension_numbers<[1], [0], [0], [1], [0, 0, 1, 1], [], []>} : vector<128x64xbf16>, vector<64x128xbf16>, vector<128x128xf32> -> vector<128x128xf32>
    %84 = vector.broadcast %30 : vector<1x128xf32> to vector<128x128xf32>
    %85 = arith.addf %83, %84 : vector<128x128xf32>
    %c0_40 = arith.constant 0 : index
    %c0_41 = arith.constant 0 : index
    %86 = vector.load %arg14[%c0_40, %c0_41] : memref<128x128xf32, #tpu.memory_space<vmem>>, vector<128x128xf32>
    tpu.vector_store %arg14[%c0_40, %c0_41], %85 {strides = array<i32>} : memref<128x128xf32, #tpu.memory_space<vmem>>, vector<128x128xf32>,
    return
  }
  func.func @transform_0(%arg0: i32) -> (i32, i32) {
    %c0_i32 = arith.constant 0 : i32
    %c0_i32_0 = arith.constant 0 : i32
    return %arg0, %c0_i32 : i32, i32
  }
  func.func @transform_1(%arg0: i32) -> (i32, i32) {
    %c0_i32 = arith.constant 0 : i32
    %c0_i32_0 = arith.constant 0 : i32
    %c0_i32_1 = arith.constant 0 : i32
    return %c0_i32, %c0_i32_0 : i32, i32
  }
  func.func @transform_2(%arg0: i32) -> (i32, i32) {
    %c0_i32 = arith.constant 0 : i32
    %c0_i32_0 = arith.constant 0 : i32
    %c0_i32_1 = arith.constant 0 : i32
    return %c0_i32, %c0_i32_0 : i32, i32
  }
  func.func @transform_3(%arg0: i32) -> (i32, i32) {
    %c0_i32 = arith.constant 0 : i32
    %c0_i32_0 = arith.constant 0 : i32
    %c0_i32_1 = arith.constant 0 : i32
    return %c0_i32, %c0_i32_0 : i32, i32
  }
  func.func @transform_4(%arg0: i32) -> (i32, i32) {
    %c0_i32 = arith.constant 0 : i32
    %c0_i32_0 = arith.constant 0 : i32
    %c0_i32_1 = arith.constant 0 : i32
    return %c0_i32, %c0_i32_0 : i32, i32
  }
  func.func @transform_5(%arg0: i32) -> (i32, i32) {
    %c0_i32 = arith.constant 0 : i32
    %c0_i32_0 = arith.constant 0 : i32
    %c0_i32_1 = arith.constant 0 : i32
    return %c0_i32, %c0_i32_0 : i32, i32
  }
  func.func @transform_6(%arg0: i32) -> (i32, i32) {
    %c0_i32 = arith.constant 0 : i32
    %c0_i32_0 = arith.constant 0 : i32
    %c0_i32_1 = arith.constant 0 : i32
    return %c0_i32, %c0_i32_0 : i32, i32
  }
  func.func @transform_7(%arg0: i32) -> (i32, i32) {
    %c0_i32 = arith.constant 0 : i32
    %c0_i32_0 = arith.constant 0 : i32
    %c0_i32_1 = arith.constant 0 : i32
    return %c0_i32, %c0_i32_0 : i32, i32
  }
  func.func @transform_8(%arg0: i32) -> (i32, i32) {
    %c0_i32 = arith.constant 0 : i32
    %c0_i32_0 = arith.constant 0 : i32
    %c0_i32_1 = arith.constant 0 : i32
    return %c0_i32, %c0_i32_0 : i32, i32
  }
  func.func @transform_9(%arg0: i32) -> (i32, i32) {
    %c0_i32 = arith.constant 0 : i32
    %c0_i32_0 = arith.constant 0 : i32
    %c0_i32_1 = arith.constant 0 : i32
    return %c0_i32, %c0_i32_0 : i32, i32
  }
  func.func @transform_10(%arg0: i32) -> (i32, i32) {
    %c0_i32 = arith.constant 0 : i32
    %c0_i32_0 = arith.constant 0 : i32
    %c0_i32_1 = arith.constant 0 : i32
    return %c0_i32, %c0_i32_0 : i32, i32
  }
  func.func @transform_11(%arg0: i32) -> (i32, i32) {
    %c0_i32 = arith.constant 0 : i32
    %c0_i32_0 = arith.constant 0 : i32
    %c0_i32_1 = arith.constant 0 : i32
    return %c0_i32, %c0_i32_0 : i32, i32
  }
  func.func @transform_12(%arg0: i32) -> (i32, i32) {
    %c0_i32 = arith.constant 0 : i32
    %c0_i32_0 = arith.constant 0 : i32
    %c0_i32_1 = arith.constant 0 : i32
    return %c0_i32, %c0_i32_0 : i32, i32
  }
  func.func @transform_13(%arg0: i32) -> (i32, i32) {
    %c0_i32 = arith.constant 0 : i32
    %c0_i32_0 = arith.constant 0 : i32
    return %arg0, %c0_i32 : i32, i32
  }
}

</mosaic_0001>

<llo_original>
// kernel: tpu_custom_call.1
$region0: #{tpu_custom_call.1}
  #allocation0 [shape = 'u32[]', space=smem, size = 0x4, offset = 0x4, fixed_abs, tag = 'smem constant byte address 0x4 - core index']
  #allocation1 [shape = 'u32[144,128]{1,0:T(1,128)}', space=vmem, size = 0x12000, scoped, tag = 'internal scratch']
  %s0 = inlined_call_operand.vmem [shape: f32[256,3], index: 0, kind: input, shape index: {}]
  %s1 = inlined_call_operand.vmem [shape: f32[3,16], index: 1, kind: input, shape index: {}]
  %s2 = inlined_call_operand.vmem [shape: bf16[16,64], index: 2, kind: input, shape index: {}]
  %s3 = inlined_call_operand.vmem [shape: bf16[16,64], index: 3, kind: input, shape index: {}]
  %s4 = inlined_call_operand.vmem [shape: bf16[64,64], index: 4, kind: input, shape index: {}]
  %s5 = inlined_call_operand.vmem [shape: bf16[64,64], index: 5, kind: input, shape index: {}]
  %s6 = inlined_call_operand.vmem [shape: bf16[64,64], index: 6, kind: input, shape index: {}]
  %s7 = inlined_call_operand.vmem [shape: bf16[16,64], index: 7, kind: input, shape index: {}]
  %s8 = inlined_call_operand.vmem [shape: bf16[16,64], index: 8, kind: input, shape index: {}]
  %s9 = inlined_call_operand.vmem [shape: bf16[64,64], index: 9, kind: input, shape index: {}]
  %s10 = inlined_call_operand.vmem [shape: bf16[64,64], index: 10, kind: input, shape index: {}]
  %s11 = inlined_call_operand.vmem [shape: bf16[64,128], index: 11, kind: input, shape index: {}]
  %s12 = inlined_call_operand.vmem [shape: f32[8,128], index: 12, kind: input, shape index: {}]
  %s13 = inlined_call_operand.hbm [shape: f32[256,128], index: 13, kind: output, shape index: {}]
  %s14 = sld [smem:[#allocation0]]
  $region85: #{tpu_custom_call.1} parent=0
    _
  %s16 = ssub.s32 1, %s14
  %s17 = scalar_select 0, %s16, %s14
  $region1: #{tpu_custom_call.1} parent=0
    #allocation2 [shape = 'u8[131072]{0}', space=vmem, size = 0x20000, scoped, tag = 'output window, operand 0']
    #allocation3 [shape = 's32[2]{0}', space=sflag, size = 0x8, scoped, tag = 'scoped memory for tpu_custom_call.1']
    %18 = vsyncpa [#allocation3], 0
    %s19 = scalar_lea.sflag [#allocation3], 1
    %20 = vsyncpa %s19, 0
    loop: start=0, step=1, limit=4
    $region2: #{tpu_custom_call.1} parent=1 // loop_pre_header
      _
    $region3: #{tpu_custom_call.1} parent=1 // loop_header
      %s22 = sphi 0, %s26
      %p23 = scmp.ge.s32.totalorder %s22, 4
      %s32 = sphi 0, %s34
      %s35 = sphi 0, %s32
      %s36 = sphi 0, %s35
      %s52 = sphi 0, %s36
      %s56 = sphi 0, %s56
      %s58 = sphi 0, %s56
      %s59 = sphi 0, %s58
      %s73 = sphi 0, %s59
      %s77 = sphi 0, %s77
      %s79 = sphi 0, %s77
      %s80 = sphi 0, %s79
      %s94 = sphi 0, %s80
      %s98 = sphi 0, %s98
      %s100 = sphi 0, %s98
      %s101 = sphi 0, %s100
      %s115 = sphi 0, %s101
      %s119 = sphi 0, %s119
      %s121 = sphi 0, %s119
      %s122 = sphi 0, %s121
      %s136 = sphi 0, %s122
      %s140 = sphi 0, %s140
      %s142 = sphi 0, %s140
      %s143 = sphi 0, %s142
      %s157 = sphi 0, %s143
      %s161 = sphi 0, %s161
      %s163 = sphi 0, %s161
      %s164 = sphi 0, %s163
      %s178 = sphi 0, %s164
      %s182 = sphi 0, %s182
      %s184 = sphi 0, %s182
      %s185 = sphi 0, %s184
      %s199 = sphi 0, %s185
      %s203 = sphi 0, %s203
      %s205 = sphi 0, %s203
      %s206 = sphi 0, %s205
      %s220 = sphi 0, %s206
      %s224 = sphi 0, %s224
      %s226 = sphi 0, %s224
      %s227 = sphi 0, %s226
      %s241 = sphi 0, %s227
      %s245 = sphi 0, %s245
      %s247 = sphi 0, %s245
      %s248 = sphi 0, %s247
      %s262 = sphi 0, %s248
      %s266 = sphi 0, %s266
      %s268 = sphi 0, %s266
      %s269 = sphi 0, %s268
      %s283 = sphi 0, %s269
      %s287 = sphi 0, %s287
      %s289 = sphi 0, %s287
      %s290 = sphi 0, %s289
      %s304 = sphi 0, %s290
      %s310 = sphi 0, %s312
      %s313 = sphi 0, %s310
      %s314 = sphi 0, %s313
      %s330 = sphi 0, %s314
    $region4: #{tpu_custom_call.1} parent=1 // loop_header_branch
      %25 = sbr.rel (%p23) target = $region8
    $region5: #{tpu_custom_call.1} parent=1 // loop_body
      %s27 = ssub.s32 %s22, 1
      %s28 = ssub.s32 %s22, 2
      %s29 = sadd.s32 %s22, 1
      %s30 = ssub.s32 %s22, %s29
      %p31 = scmp.eq.s32.totalorder %s30, 0
      %s33 = sadd.s32 %s32, 1
      %s34 = scalar_select %p31, %s32, %s33
      %p37 = pneg %p31
      %p38 = scmp.eq.s32.totalorder %s22, 1
      %p39 = por %p37, %p38
      %p40 = scmp.ne.s32.totalorder %s32, %s35
      %p41 = scmp.eq.s32.totalorder %s22, 0
      %p42 = por %p40, %p41
      %p43 = scmp.ne.s32.totalorder %s32, %s35
      %p44 = scmp.eq.s32.totalorder %s27, 1
      %p45 = por %p43, %p44
      %p46 = scmp.ne.s32.totalorder %s35, %s36
      %p47 = scmp.eq.s32.totalorder %s27, 0
      %p48 = por %p46, %p47
      %p49 = scmp.ne.s32.totalorder %s35, %s36
      %p50 = scmp.eq.s32.totalorder %s28, 1
      %p51 = por %p49, %p50
      %p53 = scmp.ne.s32.totalorder %s36, %s52
      %p54 = scmp.eq.s32.totalorder %s28, 0
      %p55 = por %p53, %p54
      %s57 = sadd.s32 %s56, 1
      %p60 = scmp.eq.s32.totalorder %s22, 1
      %p61 = scmp.ne.s32.totalorder %s56, %s58
      %p62 = scmp.eq.s32.totalorder %s22, 0
      %p63 = por %p61, %p62
      %p64 = scmp.ne.s32.totalorder %s56, %s58
      %p65 = scmp.eq.s32.totalorder %s27, 1
      %p66 = por %p64, %p65
      %p67 = scmp.ne.s32.totalorder %s58, %s59
      %p68 = scmp.eq.s32.totalorder %s27, 0
      %p69 = por %p67, %p68
      %p70 = scmp.ne.s32.totalorder %s58, %s59
      %p71 = scmp.eq.s32.totalorder %s28, 1
      %p72 = por %p70, %p71
      %p74 = scmp.ne.s32.totalorder %s59, %s73
      %p75 = scmp.eq.s32.totalorder %s28, 0
      %p76 = por %p74, %p75
      %s78 = sadd.s32 %s77, 1
      %p81 = scmp.eq.s32.totalorder %s22, 1
      %p82 = scmp.ne.s32.totalorder %s77, %s79
      %p83 = scmp.eq.s32.totalorder %s22, 0
      %p84 = por %p82, %p83
      %p85 = scmp.ne.s32.totalorder %s77, %s79
      %p86 = scmp.eq.s32.totalorder %s27, 1
      %p87 = por %p85, %p86
      %p88 = scmp.ne.s32.totalorder %s79, %s80
      %p89 = scmp.eq.s32.totalorder %s27, 0
      %p90 = por %p88, %p89
      %p91 = scmp.ne.s32.totalorder %s79, %s80
      %p92 = scmp.eq.s32.totalorder %s28, 1
      %p93 = por %p91, %p92
      %p95 = scmp.ne.s32.totalorder %s80, %s94
      %p96 = scmp.eq.s32.totalorder %s28, 0
      %p97 = por %p95, %p96
      %s99 = sadd.s32 %s98, 1
      %p102 = scmp.eq.s32.totalorder %s22, 1
      %p103 = scmp.ne.s32.totalorder %s98, %s100
      %p104 = scmp.eq.s32.totalorder %s22, 0
      %p105 = por %p103, %p104
      %p106 = scmp.ne.s32.totalorder %s98, %s100
      %p107 = scmp.eq.s32.totalorder %s27, 1
      %p108 = por %p106, %p107
      %p109 = scmp.ne.s32.totalorder %s100, %s101
      %p110 = scmp.eq.s32.totalorder %s27, 0
      %p111 = por %p109, %p110
      %p112 = scmp.ne.s32.totalorder %s100, %s101
      %p113 = scmp.eq.s32.totalorder %s28, 1
      %p114 = por %p112, %p113
      %p116 = scmp.ne.s32.totalorder %s101, %s115
      %p117 = scmp.eq.s32.totalorder %s28, 0
      %p118 = por %p116, %p117
      %s120 = sadd.s32 %s119, 1
      %p123 = scmp.eq.s32.totalorder %s22, 1
      %p124 = scmp.ne.s32.totalorder %s119, %s121
      %p125 = scmp.eq.s32.totalorder %s22, 0
      %p126 = por %p124, %p125
      %p127 = scmp.ne.s32.totalorder %s119, %s121
      %p128 = scmp.eq.s32.totalorder %s27, 1
      %p129 = por %p127, %p128
      %p130 = scmp.ne.s32.totalorder %s121, %s122
      %p131 = scmp.eq.s32.totalorder %s27, 0
      %p132 = por %p130, %p131
      %p133 = scmp.ne.s32.totalorder %s121, %s122
      %p134 = scmp.eq.s32.totalorder %s28, 1
      %p135 = por %p133, %p134
      %p137 = scmp.ne.s32.totalorder %s122, %s136
      %p138 = scmp.eq.s32.totalorder %s28, 0
      %p139 = por %p137, %p138
      %s141 = sadd.s32 %s140, 1
      %p144 = scmp.eq.s32.totalorder %s22, 1
      %p145 = scmp.ne.s32.totalorder %s140, %s142
      %p146 = scmp.eq.s32.totalorder %s22, 0
      %p147 = por %p145, %p146
      %p148 = scmp.ne.s32.totalorder %s140, %s142
      %p149 = scmp.eq.s32.totalorder %s27, 1
      %p150 = por %p148, %p149
      %p151 = scmp.ne.s32.totalorder %s142, %s143
      %p152 = scmp.eq.s32.totalorder %s27, 0
      %p153 = por %p151, %p152
      %p154 = scmp.ne.s32.totalorder %s142, %s143
      %p155 = scmp.eq.s32.totalorder %s28, 1
      %p156 = por %p154, %p155
      %p158 = scmp.ne.s32.totalorder %s143, %s157
      %p159 = scmp.eq.s32.totalorder %s28, 0
      %p160 = por %p158, %p159
      %s162 = sadd.s32 %s161, 1
      %p165 = scmp.eq.s32.totalorder %s22, 1
      %p166 = scmp.ne.s32.totalorder %s161, %s163
      %p167 = scmp.eq.s32.totalorder %s22, 0
      %p168 = por %p166, %p167
      %p169 = scmp.ne.s32.totalorder %s161, %s163
      %p170 = scmp.eq.s32.totalorder %s27, 1
      %p171 = por %p169, %p170
      %p172 = scmp.ne.s32.totalorder %s163, %s164
      %p173 = scmp.eq.s32.totalorder %s27, 0
      %p174 = por %p172, %p173
      %p175 = scmp.ne.s32.totalorder %s163, %s164
      %p176 = scmp.eq.s32.totalorder %s28, 1
      %p177 = por %p175, %p176
      %p179 = scmp.ne.s32.totalorder %s164, %s178
      %p180 = scmp.eq.s32.totalorder %s28, 0
      %p181 = por %p179, %p180
      %s183 = sadd.s32 %s182, 1
      %p186 = scmp.eq.s32.totalorder %s22, 1
      %p187 = scmp.ne.s32.totalorder %s182, %s184
      %p188 = scmp.eq.s32.totalorder %s22, 0
      %p189 = por %p187, %p188
      %p190 = scmp.ne.s32.totalorder %s182, %s184
      %p191 = scmp.eq.s32.totalorder %s27, 1
      %p192 = por %p190, %p191
      %p193 = scmp.ne.s32.totalorder %s184, %s185
      %p194 = scmp.eq.s32.totalorder %s27, 0
      %p195 = por %p193, %p194
      %p196 = scmp.ne.s32.totalorder %s184, %s185
      %p197 = scmp.eq.s32.totalorder %s28, 1
      %p198 = por %p196, %p197
      %p200 = scmp.ne.s32.totalorder %s185, %s199
      %p201 = scmp.eq.s32.totalorder %s28, 0
      %p202 = por %p200, %p201
      %s204 = sadd.s32 %s203, 1
      %p207 = scmp.eq.s32.totalorder %s22, 1
      %p208 = scmp.ne.s32.totalorder %s203, %s205
      %p209 = scmp.eq.s32.totalorder %s22, 0
      %p210 = por %p208, %p209
      %p211 = scmp.ne.s32.totalorder %s203, %s205
      %p212 = scmp.eq.s32.totalorder %s27, 1
      %p213 = por %p211, %p212
      %p214 = scmp.ne.s32.totalorder %s205, %s206
      %p215 = scmp.eq.s32.totalorder %s27, 0
      %p216 = por %p214, %p215
      %p217 = scmp.ne.s32.totalorder %s205, %s206
      %p218 = scmp.eq.s32.totalorder %s28, 1
      %p219 = por %p217, %p218
      %p221 = scmp.ne.s32.totalorder %s206, %s220
      %p222 = scmp.eq.s32.totalorder %s28, 0
      %p223 = por %p221, %p222
      %s225 = sadd.s32 %s224, 1
      %p228 = scmp.eq.s32.totalorder %s22, 1
      %p229 = scmp.ne.s32.totalorder %s224, %s226
      %p230 = scmp.eq.s32.totalorder %s22, 0
      %p231 = por %p229, %p230
      %p232 = scmp.ne.s32.totalorder %s224, %s226
      %p233 = scmp.eq.s32.totalorder %s27, 1
      %p234 = por %p232, %p233
      %p235 = scmp.ne.s32.totalorder %s226, %s227
      %p236 = scmp.eq.s32.totalorder %s27, 0
      %p237 = por %p235, %p236
      %p238 = scmp.ne.s32.totalorder %s226, %s227
      %p239 = scmp.eq.s32.totalorder %s28, 1
      %p240 = por %p238, %p239
      %p242 = scmp.ne.s32.totalorder %s227, %s241
      %p243 = scmp.eq.s32.totalorder %s28, 0
      %p244 = por %p242, %p243
      %s246 = sadd.s32 %s245, 1
      %p249 = scmp.eq.s32.totalorder %s22, 1
      %p250 = scmp.ne.s32.totalorder %s245, %s247
      %p251 = scmp.eq.s32.totalorder %s22, 0
      %p252 = por %p250, %p251
      %p253 = scmp.ne.s32.totalorder %s245, %s247
      %p254 = scmp.eq.s32.totalorder %s27, 1
      %p255 = por %p253, %p254
      %p256 = scmp.ne.s32.totalorder %s247, %s248
      %p257 = scmp.eq.s32.totalorder %s27, 0
      %p258 = por %p256, %p257
      %p259 = scmp.ne.s32.totalorder %s247, %s248
      %p260 = scmp.eq.s32.totalorder %s28, 1
      %p261 = por %p259, %p260
      %p263 = scmp.ne.s32.totalorder %s248, %s262
      %p264 = scmp.eq.s32.totalorder %s28, 0
      %p265 = por %p263, %p264
      %s267 = sadd.s32 %s266, 1
      %p270 = scmp.eq.s32.totalorder %s22, 1
      %p271 = scmp.ne.s32.totalorder %s266, %s268
      %p272 = scmp.eq.s32.totalorder %s22, 0
      %p273 = por %p271, %p272
      %p274 = scmp.ne.s32.totalorder %s266, %s268
      %p275 = scmp.eq.s32.totalorder %s27, 1
      %p276 = por %p274, %p275
      %p277 = scmp.ne.s32.totalorder %s268, %s269
      %p278 = scmp.eq.s32.totalorder %s27, 0
      %p279 = por %p277, %p278
      %p280 = scmp.ne.s32.totalorder %s268, %s269
      %p281 = scmp.eq.s32.totalorder %s28, 1
      %p282 = por %p280, %p281
      %p284 = scmp.ne.s32.totalorder %s269, %s283
      %p285 = scmp.eq.s32.totalorder %s28, 0
      %p286 = por %p284, %p285
      %s288 = sadd.s32 %s287, 1
      %p291 = scmp.eq.s32.totalorder %s22, 1
      %p292 = scmp.ne.s32.totalorder %s287, %s289
      %p293 = scmp.eq.s32.totalorder %s22, 0
      %p294 = por %p292, %p293
      %p295 = scmp.ne.s32.totalorder %s287, %s289
      %p296 = scmp.eq.s32.totalorder %s27, 1
      %p297 = por %p295, %p296
      %p298 = scmp.ne.s32.totalorder %s289, %s290
      %p299 = scmp.eq.s32.totalorder %s27, 0
      %p300 = por %p298, %p299
      %p301 = scmp.ne.s32.totalorder %s289, %s290
      %p302 = scmp.eq.s32.totalorder %s28, 1
      %p303 = por %p301, %p302
      %p305 = scmp.ne.s32.totalorder %s290, %s304
      %p306 = scmp.eq.s32.totalorder %s28, 0
      %p307 = por %p305, %p306
      %s308 = ssub.s32 %s22, %s29
      %p309 = scmp.eq.s32.totalorder %s308, 0
      %s311 = sadd.s32 %s310, 1
      %s312 = scalar_select %p309, %s310, %s311
      %p315 = pneg %p309
      %p316 = scmp.eq.s32.totalorder %s22, 1
      %p317 = por %p315, %p316
      %p318 = scmp.ne.s32.totalorder %s310, %s313
      %p319 = scmp.eq.s32.totalorder %s22, 0
      %p320 = por %p318, %p319
      %p321 = scmp.ne.s32.totalorder %s310, %s313
      %p322 = scmp.eq.s32.totalorder %s27, 1
      %p323 = por %p321, %p322
      %p324 = scmp.ne.s32.totalorder %s313, %s314
      %p325 = scmp.eq.s32.totalorder %s27, 0
      %p326 = por %p324, %p325
      %p327 = scmp.ne.s32.totalorder %s313, %s314
      %p328 = scmp.eq.s32.totalorder %s28, 1
      %p329 = por %p327, %p328
      %p331 = scmp.ne.s32.totalorder %s314, %s330
      %p332 = scmp.eq.s32.totalorder %s28, 0
      %p333 = por %p331, %p332
      %p334 = scmp.le.s32.totalorder 1, %s22
      %p335 = scmp.lt.s32.totalorder %s22, 3
      %p336 = pnand %p334, %p335
      %p337 = pneg %p336
      // Predicated region
      $region9: #{tpu_custom_call.1} parent=5 // pred_check
        _
      $region10: #{tpu_custom_call.1} parent=5 // pred_check_branch
        %339 = sbr.rel (%p336) target = $region12
      $region11: #{tpu_custom_call.1} parent=5 // pred_region
        %s340 = ssub.s32 %s22, 1
        // Predicated region
        $region13: #{tpu_custom_call.1} parent=11 // pred_check
          %p341 = pneg %p69
        $region14: #{tpu_custom_call.1} parent=11 // pred_check_branch
          %343 = sbr.rel (%p341) target = $region16
        $region15: #{tpu_custom_call.1} parent=11 // pred_region
          _
        $region16: #{tpu_custom_call.1} parent=11 // pred_fallthru
          _
        // Predicated region
        $region17: #{tpu_custom_call.1} parent=11 // pred_check
          %p344 = pneg %p90
        $region18: #{tpu_custom_call.1} parent=11 // pred_check_branch
          %346 = sbr.rel (%p344) target = $region20
        $region19: #{tpu_custom_call.1} parent=11 // pred_region
          _
        $region20: #{tpu_custom_call.1} parent=11 // pred_fallthru
          _
        // Predicated region
        $region21: #{tpu_custom_call.1} parent=11 // pred_check
          %p347 = pneg %p111
        $region22: #{tpu_custom_call.1} parent=11 // pred_check_branch
          %349 = sbr.rel (%p347) target = $region24
        $region23: #{tpu_custom_call.1} parent=11 // pred_region
          _
        $region24: #{tpu_custom_call.1} parent=11 // pred_fallthru
          _
        // Predicated region
        $region25: #{tpu_custom_call.1} parent=11 // pred_check
          %p350 = pneg %p132
        $region26: #{tpu_custom_call.1} parent=11 // pred_check_branch
          %352 = sbr.rel (%p350) target = $region28
        $region27: #{tpu_custom_call.1} parent=11 // pred_region
          _
        $region28: #{tpu_custom_call.1} parent=11 // pred_fallthru
          _
        // Predicated region
        $region29: #{tpu_custom_call.1} parent=11 // pred_check
          %p353 = pneg %p153
        $region30: #{tpu_custom_call.1} parent=11 // pred_check_branch
          %355 = sbr.rel (%p353) target = $region32
        $region31: #{tpu_custom_call.1} parent=11 // pred_region
          _
        $region32: #{tpu_custom_call.1} parent=11 // pred_fallthru
          _
        // Predicated region
        $region33: #{tpu_custom_call.1} parent=11 // pred_check
          %p356 = pneg %p174
        $region34: #{tpu_custom_call.1} parent=11 // pred_check_branch
          %358 = sbr.rel (%p356) target = $region36
        $region35: #{tpu_custom_call.1} parent=11 // pred_region
          _
        $region36: #{tpu_custom_call.1} parent=11 // pred_fallthru
          _
        // Predicated region
        $region37: #{tpu_custom_call.1} parent=11 // pred_check
          %p359 = pneg %p195
        $region38: #{tpu_custom_call.1} parent=11 // pred_check_branch
          %361 = sbr.rel (%p359) target = $region40
        $region39: #{tpu_custom_call.1} parent=11 // pred_region
          _
        $region40: #{tpu_custom_call.1} parent=11 // pred_fallthru
          _
        // Predicated region
        $region41: #{tpu_custom_call.1} parent=11 // pred_check
          %p362 = pneg %p216
        $region42: #{tpu_custom_call.1} parent=11 // pred_check_branch
          %364 = sbr.rel (%p362) target = $region44
        $region43: #{tpu_custom_call.1} parent=11 // pred_region
          _
        $region44: #{tpu_custom_call.1} parent=11 // pred_fallthru
          _
        // Predicated region
        $region45: #{tpu_custom_call.1} parent=11 // pred_check
          %p365 = pneg %p237
        $region46: #{tpu_custom_call.1} parent=11 // pred_check_branch
          %367 = sbr.rel (%p365) target = $region48
        $region47: #{tpu_custom_call.1} parent=11 // pred_region
          _
        $region48: #{tpu_custom_call.1} parent=11 // pred_fallthru
          _
        // Predicated region
        $region49: #{tpu_custom_call.1} parent=11 // pred_check
          %p368 = pneg %p258
        $region50: #{tpu_custom_call.1} parent=11 // pred_check_branch
          %370 = sbr.rel (%p368) target = $region52
        $region51: #{tpu_custom_call.1} parent=11 // pred_region
          _
        $region52: #{tpu_custom_call.1} parent=11 // pred_fallthru
          _
        // Predicated region
        $region53: #{tpu_custom_call.1} parent=11 // pred_check
          %p371 = pneg %p279
        $region54: #{tpu_custom_call.1} parent=11 // pred_check_branch
          %373 = sbr.rel (%p371) target = $region56
        $region55: #{tpu_custom_call.1} parent=11 // pred_region
          _
        $region56: #{tpu_custom_call.1} parent=11 // pred_fallthru
          _
        // Predicated region
        $region57: #{tpu_custom_call.1} parent=11 // pred_check
          %p374 = pneg %p300
        $region58: #{tpu_custom_call.1} parent=11 // pred_check_branch
          %376 = sbr.rel (%p374) target = $region60
        $region59: #{tpu_custom_call.1} parent=11 // pred_region
          _
        $region60: #{tpu_custom_call.1} parent=11 // pred_fallthru
          _
      $region12: #{tpu_custom_call.1} parent=5 // pred_fallthru
        _
      %p377 = scmp.lt.s32.totalorder %s22, 2
      // Predicated region
      $region61: #{tpu_custom_call.1} parent=5 // pred_check
        %p378 = pneg %p377
      $region62: #{tpu_custom_call.1} parent=5 // pred_check_branch
        %380 = sbr.rel (%p378) target = $region64
      $region63: #{tpu_custom_call.1} parent=5 // pred_region
        // Predicated region
        $region65: #{tpu_custom_call.1} parent=63 // pred_check
          %p381 = pneg %p42
        $region66: #{tpu_custom_call.1} parent=63 // pred_check_branch
          %383 = sbr.rel (%p381) target = $region68
        $region67: #{tpu_custom_call.1} parent=63 // pred_region
          %s384 = smul.u32 16, %s22
          %p385 = scmp.lt.s32.totalorder %s384, 31
          %s386 = scalar_select %p385, %s384, 31
          %s387 = smul.addr %s386, 8
          %s388 = scalar_lea.vmem %s0, %s387
          %s389 = smul.u32 16, %s22
        $region68: #{tpu_custom_call.1} parent=63 // pred_fallthru
          _
      $region64: #{tpu_custom_call.1} parent=5 // pred_fallthru
        _
      %p390 = scmp.le.s32.totalorder 1, %s22
      %p391 = scmp.lt.s32.totalorder %s22, 3
      %p392 = pnand %p390, %p391
      %p393 = pneg %p392
      // Predicated region
      $region69: #{tpu_custom_call.1} parent=5 // pred_check
        _
      $region70: #{tpu_custom_call.1} parent=5 // pred_check_branch
        %395 = sbr.rel (%p392) target = $region72
      $region71: #{tpu_custom_call.1} parent=5 // pred_region
        %s396 = ssub.s32 %s22, 1
        %s397 = smul.u32 16, %s27
        %p398 = scmp.lt.s32.totalorder %s397, 31
        %s399 = scalar_select %p398, %s397, 31
        %s400 = smul.addr %s399, 8
        %s401 = scalar_lea.vmem %s0, %s400
        %p402 = pneg %p48
        %p403 = pneg %p45
        %p404 = pneg %p69
        %p405 = pneg %p66
        %p406 = pneg %p90
        %p407 = pneg %p87
        %p408 = pneg %p111
        %p409 = pneg %p108
        %p410 = pneg %p132
        %p411 = pneg %p129
        %p412 = pneg %p153
        %p413 = pneg %p150
        %p414 = pneg %p174
        %p415 = pneg %p171
        %p416 = pneg %p195
        %p417 = pneg %p192
        %p418 = pneg %p216
        %p419 = pneg %p213
        %p420 = pneg %p237
        %p421 = pneg %p234
        %p422 = pneg %p258
        %p423 = pneg %p255
        %p424 = pneg %p279
        %p425 = pneg %p276
        %p426 = pneg %p300
        %p427 = pneg %p297
        %p428 = pneg %p326
        %p429 = pneg %p323
        %s430 = sand.u32 %s313, 1
        %s431 = scalar_lea.sflag [#allocation3], %s430
        %s432 = sand.u32 %s313, 1
        %s433 = smul.addr %s432, 128
        %s434 = scalar_lea.vmem [#allocation2], %s433
        %s435 = smul.u32 16, %s27
        %p436 = scmp.lt.s32.totalorder %s435, 31
        %s437 = scalar_select %p436, %s435, 31
        %s438 = smul.addr %s437, 8
        %s439 = scalar_lea.vmem %s0, %s438
        %s440 = smul.u32 16, %s27
        %s441 = smul.u32 16, %s27
        %v443 = vld [vmem:[%s439] sm:$0xff]
        %v444 = vld [vmem:[%s439 + $0x8] sm:$0xff]
        %v445 = vld [vmem:[%s439 + $0x10] sm:$0xff]
        %v446 = vld [vmem:[%s439 + $0x18] sm:$0xff]
        %v447 = vld [vmem:[%s439 + $0x20] sm:$0xff]
        %v448 = vld [vmem:[%s439 + $0x28] sm:$0xff]
        %v449 = vld [vmem:[%s439 + $0x30] sm:$0xff]
        %v450 = vld [vmem:[%s439 + $0x38] sm:$0xff]
        %v451 = vld [vmem:[%s439 + $0x40] sm:$0xff]
        %v452 = vld [vmem:[%s439 + $0x48] sm:$0xff]
        %v453 = vld [vmem:[%s439 + $0x50] sm:$0xff]
        %v454 = vld [vmem:[%s439 + $0x58] sm:$0xff]
        %v455 = vld [vmem:[%s439 + $0x60] sm:$0xff]
        %v456 = vld [vmem:[%s439 + $0x68] sm:$0xff]
        %v457 = vld [vmem:[%s439 + $0x70] sm:$0xff]
        %v458 = vld [vmem:[%s439 + $0x78] sm:$0xff]
        %v459 = vld [vmem:[%s1] sm:$0x7]
        %461 = vset.pattern.permute.xlu0 0
        %462 = vperm.xlu0 %461, %v443
        %v463 = vpop.permute.xlu0 %462
        %466 = vset.pattern.permute.xlu0 0
        %467 = vperm.xlu0 %466, %v444
        %v468 = vpop.permute.xlu0 %467
        %471 = vset.pattern.permute.xlu0 0
        %472 = vperm.xlu0 %471, %v445
        %v473 = vpop.permute.xlu0 %472
        %476 = vset.pattern.permute.xlu0 0
        %477 = vperm.xlu0 %476, %v446
        %v478 = vpop.permute.xlu0 %477
        %481 = vset.pattern.permute.xlu0 0
        %482 = vperm.xlu0 %481, %v447
        %v483 = vpop.permute.xlu0 %482
        %486 = vset.pattern.permute.xlu0 0
        %487 = vperm.xlu0 %486, %v448
        %v488 = vpop.permute.xlu0 %487
        %491 = vset.pattern.permute.xlu0 0
        %492 = vperm.xlu0 %491, %v449
        %v493 = vpop.permute.xlu0 %492
        %496 = vset.pattern.permute.xlu0 0
        %497 = vperm.xlu0 %496, %v450
        %v498 = vpop.permute.xlu0 %497
        %501 = vset.pattern.permute.xlu0 0
        %502 = vperm.xlu0 %501, %v451
        %v503 = vpop.permute.xlu0 %502
        %506 = vset.pattern.permute.xlu0 0
        %507 = vperm.xlu0 %506, %v452
        %v508 = vpop.permute.xlu0 %507
        %511 = vset.pattern.permute.xlu0 0
        %512 = vperm.xlu0 %511, %v453
        %v513 = vpop.permute.xlu0 %512
        %516 = vset.pattern.permute.xlu0 0
        %517 = vperm.xlu0 %516, %v454
        %v518 = vpop.permute.xlu0 %517
        %521 = vset.pattern.permute.xlu0 0
        %522 = vperm.xlu0 %521, %v455
        %v523 = vpop.permute.xlu0 %522
        %526 = vset.pattern.permute.xlu0 0
        %527 = vperm.xlu0 %526, %v456
        %v528 = vpop.permute.xlu0 %527
        %531 = vset.pattern.permute.xlu0 0
        %532 = vperm.xlu0 %531, %v457
        %v533 = vpop.permute.xlu0 %532
        %536 = vset.pattern.permute.xlu0 0
        %537 = vperm.xlu0 %536, %v458
        %v538 = vpop.permute.xlu0 %537
        %v540 = vlaneseq
        %v541 = vshrl.u32 %v540, 7
        %v542 = vsub.s32 0, %v541
        %v543 = vrot.slane %v459, %v542
        %v544 = vmul.f32 %v463, %v543
        %v545 = vmul.f32 %v468, %v543
        %v546 = vmul.f32 %v473, %v543
        %v547 = vmul.f32 %v478, %v543
        %v548 = vmul.f32 %v483, %v543
        %v549 = vmul.f32 %v488, %v543
        %v550 = vmul.f32 %v493, %v543
        %v551 = vmul.f32 %v498, %v543
        %v552 = vmul.f32 %v503, %v543
        %v553 = vmul.f32 %v508, %v543
        %v554 = vmul.f32 %v513, %v543
        %v555 = vmul.f32 %v518, %v543
        %v556 = vmul.f32 %v523, %v543
        %v557 = vmul.f32 %v528, %v543
        %v558 = vmul.f32 %v533, %v543
        %v559 = vmul.f32 %v538, %v543
        %560 = vset.pattern.permute.xlu0 1
        %561 = vperm.xlu0 %560, %v443
        %v562 = vpop.permute.xlu0 %561
        %564 = vset.pattern.permute.xlu0 1
        %565 = vperm.xlu0 %564, %v444
        %v566 = vpop.permute.xlu0 %565
        %568 = vset.pattern.permute.xlu0 1
        %569 = vperm.xlu0 %568, %v445
        %v570 = vpop.permute.xlu0 %569
        %572 = vset.pattern.permute.xlu0 1
        %573 = vperm.xlu0 %572, %v446
        %v574 = vpop.permute.xlu0 %573
        %576 = vset.pattern.permute.xlu0 1
        %577 = vperm.xlu0 %576, %v447
        %v578 = vpop.permute.xlu0 %577
        %580 = vset.pattern.permute.xlu0 1
        %581 = vperm.xlu0 %580, %v448
        %v582 = vpop.permute.xlu0 %581
        %584 = vset.pattern.permute.xlu0 1
        %585 = vperm.xlu0 %584, %v449
        %v586 = vpop.permute.xlu0 %585
        %588 = vset.pattern.permute.xlu0 1
        %589 = vperm.xlu0 %588, %v450
        %v590 = vpop.permute.xlu0 %589
        %592 = vset.pattern.permute.xlu0 1
        %593 = vperm.xlu0 %592, %v451
        %v594 = vpop.permute.xlu0 %593
        %596 = vset.pattern.permute.xlu0 1
        %597 = vperm.xlu0 %596, %v452
        %v598 = vpop.permute.xlu0 %597
        %600 = vset.pattern.permute.xlu0 1
        %601 = vperm.xlu0 %600, %v453
        %v602 = vpop.permute.xlu0 %601
        %604 = vset.pattern.permute.xlu0 1
        %605 = vperm.xlu0 %604, %v454
        %v606 = vpop.permute.xlu0 %605
        %608 = vset.pattern.permute.xlu0 1
        %609 = vperm.xlu0 %608, %v455
        %v610 = vpop.permute.xlu0 %609
        %612 = vset.pattern.permute.xlu0 1
        %613 = vperm.xlu0 %612, %v456
        %v614 = vpop.permute.xlu0 %613
        %616 = vset.pattern.permute.xlu0 1
        %617 = vperm.xlu0 %616, %v457
        %v618 = vpop.permute.xlu0 %617
        %620 = vset.pattern.permute.xlu0 1
        %621 = vperm.xlu0 %620, %v458
        %v622 = vpop.permute.xlu0 %621
        %v624 = vlaneseq
        %v625 = vshrl.u32 %v624, 7
        %v626 = vsub.s32 1, %v625
        %v627 = vrot.slane %v459, %v626
        %v628 = vmul.f32 %v562, %v627
        %v629 = vmul.f32 %v566, %v627
        %v630 = vmul.f32 %v570, %v627
        %v631 = vmul.f32 %v574, %v627
        %v632 = vmul.f32 %v578, %v627
        %v633 = vmul.f32 %v582, %v627
        %v634 = vmul.f32 %v586, %v627
        %v635 = vmul.f32 %v590, %v627
        %v636 = vmul.f32 %v594, %v627
        %v637 = vmul.f32 %v598, %v627
        %v638 = vmul.f32 %v602, %v627
        %v639 = vmul.f32 %v606, %v627
        %v640 = vmul.f32 %v610, %v627
        %v641 = vmul.f32 %v614, %v627
        %v642 = vmul.f32 %v618, %v627
        %v643 = vmul.f32 %v622, %v627
        %v644 = vadd.f32 %v544, %v628
        %v645 = vadd.f32 %v545, %v629
        %v646 = vadd.f32 %v546, %v630
        %v647 = vadd.f32 %v547, %v631
        %v648 = vadd.f32 %v548, %v632
        %v649 = vadd.f32 %v549, %v633
        %v650 = vadd.f32 %v550, %v634
        %v651 = vadd.f32 %v551, %v635
        %v652 = vadd.f32 %v552, %v636
        %v653 = vadd.f32 %v553, %v637
        %v654 = vadd.f32 %v554, %v638
        %v655 = vadd.f32 %v555, %v639
        %v656 = vadd.f32 %v556, %v640
        %v657 = vadd.f32 %v557, %v641
        %v658 = vadd.f32 %v558, %v642
        %v659 = vadd.f32 %v559, %v643
        %660 = vset.pattern.permute.xlu0 2
        %661 = vperm.xlu0 %660, %v443
        %v662 = vpop.permute.xlu0 %661
        %664 = vset.pattern.permute.xlu0 2
        %665 = vperm.xlu0 %664, %v444
        %v666 = vpop.permute.xlu0 %665
        %668 = vset.pattern.permute.xlu0 2
        %669 = vperm.xlu0 %668, %v445
        %v670 = vpop.permute.xlu0 %669
        %672 = vset.pattern.permute.xlu0 2
        %673 = vperm.xlu0 %672, %v446
        %v674 = vpop.permute.xlu0 %673
        %676 = vset.pattern.permute.xlu0 2
        %677 = vperm.xlu0 %676, %v447
        %v678 = vpop.permute.xlu0 %677
        %680 = vset.pattern.permute.xlu0 2
        %681 = vperm.xlu0 %680, %v448
        %v682 = vpop.permute.xlu0 %681
        %684 = vset.pattern.permute.xlu0 2
        %685 = vperm.xlu0 %684, %v449
        %v686 = vpop.permute.xlu0 %685
        %688 = vset.pattern.permute.xlu0 2
        %689 = vperm.xlu0 %688, %v450
        %v690 = vpop.permute.xlu0 %689
        %692 = vset.pattern.permute.xlu0 2
        %693 = vperm.xlu0 %692, %v451
        %v694 = vpop.permute.xlu0 %693
        %696 = vset.pattern.permute.xlu0 2
        %697 = vperm.xlu0 %696, %v452
        %v698 = vpop.permute.xlu0 %697
        %700 = vset.pattern.permute.xlu0 2
        %701 = vperm.xlu0 %700, %v453
        %v702 = vpop.permute.xlu0 %701
        %704 = vset.pattern.permute.xlu0 2
        %705 = vperm.xlu0 %704, %v454
        %v706 = vpop.permute.xlu0 %705
        %708 = vset.pattern.permute.xlu0 2
        %709 = vperm.xlu0 %708, %v455
        %v710 = vpop.permute.xlu0 %709
        %712 = vset.pattern.permute.xlu0 2
        %713 = vperm.xlu0 %712, %v456
        %v714 = vpop.permute.xlu0 %713
        %716 = vset.pattern.permute.xlu0 2
        %717 = vperm.xlu0 %716, %v457
        %v718 = vpop.permute.xlu0 %717
        %720 = vset.pattern.permute.xlu0 2
        %721 = vperm.xlu0 %720, %v458
        %v722 = vpop.permute.xlu0 %721
        %v724 = vlaneseq
        %v725 = vshrl.u32 %v724, 7
        %v726 = vsub.s32 2, %v725
        %v727 = vrot.slane %v459, %v726
        %v728 = vmul.f32 %v662, %v727
        %v729 = vmul.f32 %v666, %v727
        %v730 = vmul.f32 %v670, %v727
        %v731 = vmul.f32 %v674, %v727
        %v732 = vmul.f32 %v678, %v727
        %v733 = vmul.f32 %v682, %v727
        %v734 = vmul.f32 %v686, %v727
        %v735 = vmul.f32 %v690, %v727
        %v736 = vmul.f32 %v694, %v727
        %v737 = vmul.f32 %v698, %v727
        %v738 = vmul.f32 %v702, %v727
        %v739 = vmul.f32 %v706, %v727
        %v740 = vmul.f32 %v710, %v727
        %v741 = vmul.f32 %v714, %v727
        %v742 = vmul.f32 %v718, %v727
        %v743 = vmul.f32 %v722, %v727
        %v744 = vadd.f32 %v644, %v728
        %v745 = vadd.f32 %v645, %v729
        %v746 = vadd.f32 %v646, %v730
        %v747 = vadd.f32 %v647, %v731
        %v748 = vadd.f32 %v648, %v732
        %v749 = vadd.f32 %v649, %v733
        %v750 = vadd.f32 %v650, %v734
        %v751 = vadd.f32 %v651, %v735
        %v752 = vadd.f32 %v652, %v736
        %v753 = vadd.f32 %v653, %v737
        %v754 = vadd.f32 %v654, %v738
        %v755 = vadd.f32 %v655, %v739
        %v756 = vadd.f32 %v656, %v740
        %v757 = vadd.f32 %v657, %v741
        %v758 = vadd.f32 %v658, %v742
        %v759 = vadd.f32 %v659, %v743
        %v760 = vand.u32 2147483647, %v744
        %vm761 = vcmp.le.f32.partialorder %v760, 0.7853982
        %vm762 = vcmp.lt.s32.totalorder %v744, 0
        %v763 = vand.u32 %v744, 2139095040
        %v764 = vshrl.u32 %v763, 23
        %v765 = vsub.s32 %v764, 127
        %v766 = vand.u32 2147483647, %v744
        %v767 = vand.u32 %v766, 8388607
        %v768 = vor.u32 %v767, 8388608
        %v769 = vsub.s32 0, %v768
        %v770 = vadd.s32 %v765, 1
        %vm771 = vcmp.gt.s32.totalorder %v770, 0
        %v772 = vsel %vm771, %v770, 0
        %v773 = vshrl.u32 %v772, 5
        %v774 = vand.u32 %v772, 31
        %v775 = vsub.s32 32, %v774
        %v776 = vshrl.u32 683565275, %v775
        %v777 = vshll.u32 683565275, %v774
        %v778 = vshrl.u32 2475754826, %v775
        %v779 = vor.u32 %v777, %v778
        %v780 = vshll.u32 2475754826, %v774
        %v781 = vshrl.u32 2131351028, %v775
        %v782 = vor.u32 %v780, %v781
        %v783 = vshll.u32 2131351028, %v774
        %v784 = vshrl.u32 2102212464, %v775
        %v785 = vor.u32 %v783, %v784
        %v786 = vshll.u32 2102212464, %v774
        %v787 = vshrl.u32 920167782, %v775
        %v788 = vor.u32 %v786, %v787
        %v789 = vshll.u32 920167782, %v774
        %v790 = vshrl.u32 1326507024, %v775
        %v791 = vor.u32 %v789, %v790
        %vm792 = vcmp.lt.s32.totalorder %v773, 1
        %vm793 = vcmp.lt.s32.totalorder %v773, 2
        %vm794 = vcmp.lt.s32.totalorder %v773, 3
        %vm795 = vcmp.lt.s32.totalorder %v773, 4
        %v796 = vsel %vm792, %v776, %v779
        %v797 = vsel %vm795, %v785, 2102212464
        %v798 = vsel %vm794, %v782, %v797
        %v799 = vsel %vm793, %v796, %v798
        %v800 = vsel %vm792, %v779, %v782
        %v801 = vsel %vm795, %v788, 920167782
        %v802 = vsel %vm794, %v785, %v801
        %v803 = vsel %vm793, %v800, %v802
        %v804 = vsel %vm792, %v782, %v785
        %v805 = vsel %vm795, %v791, 1326507024
        %v806 = vsel %vm794, %v788, %v805
        %v807 = vsel %vm793, %v804, %v806
        %v808 = vshll.u32 %v768, 8
        %v809 = vmul.u32.u64.compose %v808, %v807
        %v810 = vextract.low.u32 %v809
        %v811 = vextract.high.u32 %v809
        %v812 = vmul.u32.u64.compose %v808, %v803
        %v813 = vextract.low.u32 %v812
        %v814 = vextract.high.u32 %v812
        %v815 = vmul.u32 %v808, %v799
        %v816 = vadd.s32 %v811, %v813
        %vm817 = vc.u32 %v811, %v813
        %v818 = vadd.s32 %v814, 1
        %v819 = vsel %vm817, %v818, %v814
        %v820 = vadd.s32 %v815, %v819
        %v821 = vadd.s32 %v820, 536870912
        %v822 = vshrl.u32 %v821, 30
        %v823 = vshll.u32 %v822, 30
        %v824 = vsub.s32 %v820, %v823
        %vm825 = vcmp.lt.s32.totalorder %v824, 0
        %v826 = vsub.s32 0, %v824
        %v827 = vsel %vm825, %v826, %v824
        %v828 = vclz %v827
        %v829 = vsub.s32 %v828, 2
        %vm830 = vcmp.gt.s32.totalorder 0, %v829
        %v831 = vsel %vm830, 0, %v829
        %v832 = vsub.s32 32, %v831
        %v833 = vshll.u32 %v824, %v831
        %v834 = vshrl.u32 %v816, %v832
        %v835 = vor.u32 %v833, %v834
        %v836 = vsub.s32 4294967266, %v831
        %v837 = vadd.s32 %v836, 127
        %v838 = vshll.u32 %v837, 23
        %v839 = vor.u32 4788187, %v838
        %v840 = vand.u32 2147483647, %v839
        %v842 = vcvt.s32.f32 %v835
        %v843 = vmul.f32 %v842, %v840
        %v844 = vxor.u32 %v843, 2147483648
        %v845 = vsel %vm762, %v844, %v843
        %v846 = vsub.s32 4, %v822
        %v847 = vsel %vm762, %v846, %v822
        %v848 = vsel %vm761, %v744, %v845
        %v849 = vsel %vm761, 0, %v847
        %v850 = vcosq.f32.pop %v848
        %v851 = vsinq.f32.pop %v848
        %vm852 = vweird.f32 %v744
        %v853 = vadd.s32 %v849, 3
        %v854 = vand.u32 %v853, 3
        %vm855 = vcmp.lt.s32.totalorder %v854, 2
        %vm856 = vcmp.eq.s32.totalorder %v854, 0
        %v857 = vxor.u32 %v851, 2147483648
        %v858 = vsel %vm856, %v850, %v857
        %vm859 = vcmp.eq.s32.totalorder %v854, 2
        %v860 = vxor.u32 %v850, 2147483648
        %v861 = vsel %vm859, %v860, %v851
        %v862 = vsel %vm855, %v858, %v861
        %v863 = vsel %vm852, nan, %v862
        %v864 = vand.u32 2147483647, %v745
        %vm865 = vcmp.le.f32.partialorder %v864, 0.7853982
        %vm866 = vcmp.lt.s32.totalorder %v745, 0
        %v867 = vand.u32 %v745, 2139095040
        %v868 = vshrl.u32 %v867, 23
        %v869 = vsub.s32 %v868, 127
        %v870 = vand.u32 2147483647, %v745
        %v871 = vand.u32 %v870, 8388607
        %v872 = vor.u32 %v871, 8388608
        %v873 = vsub.s32 0, %v872
        %v874 = vadd.s32 %v869, 1
        %vm875 = vcmp.gt.s32.totalorder %v874, 0
        %v876 = vsel %vm875, %v874, 0
        %v877 = vshrl.u32 %v876, 5
        %v878 = vand.u32 %v876, 31
        %v879 = vsub.s32 32, %v878
        %v880 = vshrl.u32 683565275, %v879
        %v881 = vshll.u32 683565275, %v878
        %v882 = vshrl.u32 2475754826, %v879
        %v883 = vor.u32 %v881, %v882
        %v884 = vshll.u32 2475754826, %v878
        %v885 = vshrl.u32 2131351028, %v879
        %v886 = vor.u32 %v884, %v885
        %v887 = vshll.u32 2131351028, %v878
        %v888 = vshrl.u32 2102212464, %v879
        %v889 = vor.u32 %v887, %v888
        %v890 = vshll.u32 2102212464, %v878
        %v891 = vshrl.u32 920167782, %v879
        %v892 = vor.u32 %v890, %v891
        %v893 = vshll.u32 920167782, %v878
        %v894 = vshrl.u32 1326507024, %v879
        %v895 = vor.u32 %v893, %v894
        %vm896 = vcmp.lt.s32.totalorder %v877, 1
        %vm897 = vcmp.lt.s32.totalorder %v877, 2
        %vm898 = vcmp.lt.s32.totalorder %v877, 3
        %vm899 = vcmp.lt.s32.totalorder %v877, 4
        %v900 = vsel %vm896, %v880, %v883
        %v901 = vsel %vm899, %v889, 2102212464
        %v902 = vsel %vm898, %v886, %v901
        %v903 = vsel %vm897, %v900, %v902
        %v904 = vsel %vm896, %v883, %v886
        %v905 = vsel %vm899, %v892, 920167782
        %v906 = vsel %vm898, %v889, %v905
        %v907 = vsel %vm897, %v904, %v906
        %v908 = vsel %vm896, %v886, %v889
        %v909 = vsel %vm899, %v895, 1326507024
        %v910 = vsel %vm898, %v892, %v909
        %v911 = vsel %vm897, %v908, %v910
        %v912 = vshll.u32 %v872, 8
        %v913 = vmul.u32.u64.compose %v912, %v911
        %v914 = vextract.low.u32 %v913
        %v915 = vextract.high.u32 %v913
        %v916 = vmul.u32.u64.compose %v912, %v907
        %v917 = vextract.low.u32 %v916
        %v918 = vextract.high.u32 %v916
        %v919 = vmul.u32 %v912, %v903
        %v920 = vadd.s32 %v915, %v917
        %vm921 = vc.u32 %v915, %v917
        %v922 = vadd.s32 %v918, 1
        %v923 = vsel %vm921, %v922, %v918
        %v924 = vadd.s32 %v919, %v923
        %v925 = vadd.s32 %v924, 536870912
        %v926 = vshrl.u32 %v925, 30
        %v927 = vshll.u32 %v926, 30
        %v928 = vsub.s32 %v924, %v927
        %vm929 = vcmp.lt.s32.totalorder %v928, 0
        %v930 = vsub.s32 0, %v928
        %v931 = vsel %vm929, %v930, %v928
        %v932 = vclz %v931
        %v933 = vsub.s32 %v932, 2
        %vm934 = vcmp.gt.s32.totalorder 0, %v933
        %v935 = vsel %vm934, 0, %v933
        %v936 = vsub.s32 32, %v935
        %v937 = vshll.u32 %v928, %v935
        %v938 = vshrl.u32 %v920, %v936
        %v939 = vor.u32 %v937, %v938
        %v940 = vsub.s32 4294967266, %v935
        %v941 = vadd.s32 %v940, 127
        %v942 = vshll.u32 %v941, 23
        %v943 = vor.u32 4788187, %v942
        %v944 = vand.u32 2147483647, %v943
        %v946 = vcvt.s32.f32 %v939
        %v947 = vmul.f32 %v946, %v944
        %v948 = vxor.u32 %v947, 2147483648
        %v949 = vsel %vm866, %v948, %v947
        %v950 = vsub.s32 4, %v926
        %v951 = vsel %vm866, %v950, %v926
        %v952 = vsel %vm865, %v745, %v949
        %v953 = vsel %vm865, 0, %v951
        %v954 = vcosq.f32.pop %v952
        %v955 = vsinq.f32.pop %v952
        %vm956 = vweird.f32 %v745
        %v957 = vadd.s32 %v953, 3
        %v958 = vand.u32 %v957, 3
        %vm959 = vcmp.lt.s32.totalorder %v958, 2
        %vm960 = vcmp.eq.s32.totalorder %v958, 0
        %v961 = vxor.u32 %v955, 2147483648
        %v962 = vsel %vm960, %v954, %v961
        %vm963 = vcmp.eq.s32.totalorder %v958, 2
        %v964 = vxor.u32 %v954, 2147483648
        %v965 = vsel %vm963, %v964, %v955
        %v966 = vsel %vm959, %v962, %v965
        %v967 = vsel %vm956, nan, %v966
        %v968 = vand.u32 2147483647, %v746
        %vm969 = vcmp.le.f32.partialorder %v968, 0.7853982
        %vm970 = vcmp.lt.s32.totalorder %v746, 0
        %v971 = vand.u32 %v746, 2139095040
        %v972 = vshrl.u32 %v971, 23
        %v973 = vsub.s32 %v972, 127
        %v974 = vand.u32 2147483647, %v746
        %v975 = vand.u32 %v974, 8388607
        %v976 = vor.u32 %v975, 8388608
        %v977 = vsub.s32 0, %v976
        %v978 = vadd.s32 %v973, 1
        %vm979 = vcmp.gt.s32.totalorder %v978, 0
        %v980 = vsel %vm979, %v978, 0
        %v981 = vshrl.u32 %v980, 5
        %v982 = vand.u32 %v980, 31
        %v983 = vsub.s32 32, %v982
        %v984 = vshrl.u32 683565275, %v983
        %v985 = vshll.u32 683565275, %v982
        %v986 = vshrl.u32 2475754826, %v983
        %v987 = vor.u32 %v985, %v986
        %v988 = vshll.u32 2475754826, %v982
        %v989 = vshrl.u32 2131351028, %v983
        %v990 = vor.u32 %v988, %v989
        %v991 = vshll.u32 2131351028, %v982
        %v992 = vshrl.u32 2102212464, %v983
        %v993 = vor.u32 %v991, %v992
        %v994 = vshll.u32 2102212464, %v982
        %v995 = vshrl.u32 920167782, %v983
        %v996 = vor.u32 %v994, %v995
        %v997 = vshll.u32 920167782, %v982
        %v998 = vshrl.u32 1326507024, %v983
        %v999 = vor.u32 %v997, %v998
        %vm1000 = vcmp.lt.s32.totalorder %v981, 1
        %vm1001 = vcmp.lt.s32.totalorder %v981, 2
        %vm1002 = vcmp.lt.s32.totalorder %v981, 3
        %vm1003 = vcmp.lt.s32.totalorder %v981, 4
        %v1004 = vsel %vm1000, %v984, %v987
        %v1005 = vsel %vm1003, %v993, 2102212464
        %v1006 = vsel %vm1002, %v990, %v1005
        %v1007 = vsel %vm1001, %v1004, %v1006
        %v1008 = vsel %vm1000, %v987, %v990
        %v1009 = vsel %vm1003, %v996, 920167782
        %v1010 = vsel %vm1002, %v993, %v1009
        %v1011 = vsel %vm1001, %v1008, %v1010
        %v1012 = vsel %vm1000, %v990, %v993
        %v1013 = vsel %vm1003, %v999, 1326507024
        %v1014 = vsel %vm1002, %v996, %v1013
        %v1015 = vsel %vm1001, %v1012, %v1014
        %v1016 = vshll.u32 %v976, 8
        %v1017 = vmul.u32.u64.compose %v1016, %v1015
        %v1018 = vextract.low.u32 %v1017
        %v1019 = vextract.high.u32 %v1017
        %v1020 = vmul.u32.u64.compose %v1016, %v1011
        %v1021 = vextract.low.u32 %v1020
        %v1022 = vextract.high.u32 %v1020
        %v1023 = vmul.u32 %v1016, %v1007
        %v1024 = vadd.s32 %v1019, %v1021
        %vm1025 = vc.u32 %v1019, %v1021
        %v1026 = vadd.s32 %v1022, 1
        %v1027 = vsel %vm1025, %v1026, %v1022
        %v1028 = vadd.s32 %v1023, %v1027
        %v1029 = vadd.s32 %v1028, 536870912
        %v1030 = vshrl.u32 %v1029, 30
        %v1031 = vshll.u32 %v1030, 30
        %v1032 = vsub.s32 %v1028, %v1031
        %vm1033 = vcmp.lt.s32.totalorder %v1032, 0
        %v1034 = vsub.s32 0, %v1032
        %v1035 = vsel %vm1033, %v1034, %v1032
        %v1036 = vclz %v1035
        %v1037 = vsub.s32 %v1036, 2
        %vm1038 = vcmp.gt.s32.totalorder 0, %v1037
        %v1039 = vsel %vm1038, 0, %v1037
        %v1040 = vsub.s32 32, %v1039
        %v1041 = vshll.u32 %v1032, %v1039
        %v1042 = vshrl.u32 %v1024, %v1040
        %v1043 = vor.u32 %v1041, %v1042
        %v1044 = vsub.s32 4294967266, %v1039
        %v1045 = vadd.s32 %v1044, 127
        %v1046 = vshll.u32 %v1045, 23
        %v1047 = vor.u32 4788187, %v1046
        %v1048 = vand.u32 2147483647, %v1047
        %v1050 = vcvt.s32.f32 %v1043
        %v1051 = vmul.f32 %v1050, %v1048
        %v1052 = vxor.u32 %v1051, 2147483648
        %v1053 = vsel %vm970, %v1052, %v1051
        %v1054 = vsub.s32 4, %v1030
        %v1055 = vsel %vm970, %v1054, %v1030
        %v1056 = vsel %vm969, %v746, %v1053
        %v1057 = vsel %vm969, 0, %v1055
        %v1058 = vcosq.f32.pop %v1056
        %v1059 = vsinq.f32.pop %v1056
        %vm1060 = vweird.f32 %v746
        %v1061 = vadd.s32 %v1057, 3
        %v1062 = vand.u32 %v1061, 3
        %vm1063 = vcmp.lt.s32.totalorder %v1062, 2
        %vm1064 = vcmp.eq.s32.totalorder %v1062, 0
        %v1065 = vxor.u32 %v1059, 2147483648
        %v1066 = vsel %vm1064, %v1058, %v1065
        %vm1067 = vcmp.eq.s32.totalorder %v1062, 2
        %v1068 = vxor.u32 %v1058, 2147483648
        %v1069 = vsel %vm1067, %v1068, %v1059
        %v1070 = vsel %vm1063, %v1066, %v1069
        %v1071 = vsel %vm1060, nan, %v1070
        %v1072 = vand.u32 2147483647, %v747
        %vm1073 = vcmp.le.f32.partialorder %v1072, 0.7853982
        %vm1074 = vcmp.lt.s32.totalorder %v747, 0
        %v1075 = vand.u32 %v747, 2139095040
        %v1076 = vshrl.u32 %v1075, 23
        %v1077 = vsub.s32 %v1076, 127
        %v1078 = vand.u32 2147483647, %v747
        %v1079 = vand.u32 %v1078, 8388607
        %v1080 = vor.u32 %v1079, 8388608
        %v1081 = vsub.s32 0, %v1080
        %v1082 = vadd.s32 %v1077, 1
        %vm1083 = vcmp.gt.s32.totalorder %v1082, 0
        %v1084 = vsel %vm1083, %v1082, 0
        %v1085 = vshrl.u32 %v1084, 5
        %v1086 = vand.u32 %v1084, 31
        %v1087 = vsub.s32 32, %v1086
        %v1088 = vshrl.u32 683565275, %v1087
        %v1089 = vshll.u32 683565275, %v1086
        %v1090 = vshrl.u32 2475754826, %v1087
        %v1091 = vor.u32 %v1089, %v1090
        %v1092 = vshll.u32 2475754826, %v1086
        %v1093 = vshrl.u32 2131351028, %v1087
        %v1094 = vor.u32 %v1092, %v1093
        %v1095 = vshll.u32 2131351028, %v1086
        %v1096 = vshrl.u32 2102212464, %v1087
        %v1097 = vor.u32 %v1095, %v1096
        %v1098 = vshll.u32 2102212464, %v1086
        %v1099 = vshrl.u32 920167782, %v1087
        %v1100 = vor.u32 %v1098, %v1099
        %v1101 = vshll.u32 920167782, %v1086
        %v1102 = vshrl.u32 1326507024, %v1087
        %v1103 = vor.u32 %v1101, %v1102
        %vm1104 = vcmp.lt.s32.totalorder %v1085, 1
        %vm1105 = vcmp.lt.s32.totalorder %v1085, 2
        %vm1106 = vcmp.lt.s32.totalorder %v1085, 3
        %vm1107 = vcmp.lt.s32.totalorder %v1085, 4
        %v1108 = vsel %vm1104, %v1088, %v1091
        %v1109 = vsel %vm1107, %v1097, 2102212464
        %v1110 = vsel %vm1106, %v1094, %v1109
        %v1111 = vsel %vm1105, %v1108, %v1110
        %v1112 = vsel %vm1104, %v1091, %v1094
        %v1113 = vsel %vm1107, %v1100, 920167782
        %v1114 = vsel %vm1106, %v1097, %v1113
        %v1115 = vsel %vm1105, %v1112, %v1114
        %v1116 = vsel %vm1104, %v1094, %v1097
        %v1117 = vsel %vm1107, %v1103, 1326507024
        %v1118 = vsel %vm1106, %v1100, %v1117
        %v1119 = vsel %vm1105, %v1116, %v1118
        %v1120 = vshll.u32 %v1080, 8
        %v1121 = vmul.u32.u64.compose %v1120, %v1119
        %v1122 = vextract.low.u32 %v1121
        %v1123 = vextract.high.u32 %v1121
        %v1124 = vmul.u32.u64.compose %v1120, %v1115
        %v1125 = vextract.low.u32 %v1124
        %v1126 = vextract.high.u32 %v1124
        %v1127 = vmul.u32 %v1120, %v1111
        %v1128 = vadd.s32 %v1123, %v1125
        %vm1129 = vc.u32 %v1123, %v1125
        %v1130 = vadd.s32 %v1126, 1
        %v1131 = vsel %vm1129, %v1130, %v1126
        %v1132 = vadd.s32 %v1127, %v1131
        %v1133 = vadd.s32 %v1132, 536870912
        %v1134 = vshrl.u32 %v1133, 30
        %v1135 = vshll.u32 %v1134, 30
        %v1136 = vsub.s32 %v1132, %v1135
        %vm1137 = vcmp.lt.s32.totalorder %v1136, 0
        %v1138 = vsub.s32 0, %v1136
        %v1139 = vsel %vm1137, %v1138, %v1136
        %v1140 = vclz %v1139
        %v1141 = vsub.s32 %v1140, 2
        %vm1142 = vcmp.gt.s32.totalorder 0, %v1141
        %v1143 = vsel %vm1142, 0, %v1141
        %v1144 = vsub.s32 32, %v1143
        %v1145 = vshll.u32 %v1136, %v1143
        %v1146 = vshrl.u32 %v1128, %v1144
        %v1147 = vor.u32 %v1145, %v1146
        %v1148 = vsub.s32 4294967266, %v1143
        %v1149 = vadd.s32 %v1148, 127
        %v1150 = vshll.u32 %v1149, 23
        %v1151 = vor.u32 4788187, %v1150
        %v1152 = vand.u32 2147483647, %v1151
        %v1154 = vcvt.s32.f32 %v1147
        %v1155 = vmul.f32 %v1154, %v1152
        %v1156 = vxor.u32 %v1155, 2147483648
        %v1157 = vsel %vm1074, %v1156, %v1155
        %v1158 = vsub.s32 4, %v1134
        %v1159 = vsel %vm1074, %v1158, %v1134
        %v1160 = vsel %vm1073, %v747, %v1157
        %v1161 = vsel %vm1073, 0, %v1159
        %v1162 = vcosq.f32.pop %v1160
        %v1163 = vsinq.f32.pop %v1160
        %vm1164 = vweird.f32 %v747
        %v1165 = vadd.s32 %v1161, 3
        %v1166 = vand.u32 %v1165, 3
        %vm1167 = vcmp.lt.s32.totalorder %v1166, 2
        %vm1168 = vcmp.eq.s32.totalorder %v1166, 0
        %v1169 = vxor.u32 %v1163, 2147483648
        %v1170 = vsel %vm1168, %v1162, %v1169
        %vm1171 = vcmp.eq.s32.totalorder %v1166, 2
        %v1172 = vxor.u32 %v1162, 2147483648
        %v1173 = vsel %vm1171, %v1172, %v1163
        %v1174 = vsel %vm1167, %v1170, %v1173
        %v1175 = vsel %vm1164, nan, %v1174
        %v1176 = vand.u32 2147483647, %v748
        %vm1177 = vcmp.le.f32.partialorder %v1176, 0.7853982
        %vm1178 = vcmp.lt.s32.totalorder %v748, 0
        %v1179 = vand.u32 %v748, 2139095040
        %v1180 = vshrl.u32 %v1179, 23
        %v1181 = vsub.s32 %v1180, 127
        %v1182 = vand.u32 2147483647, %v748
        %v1183 = vand.u32 %v1182, 8388607
        %v1184 = vor.u32 %v1183, 8388608
        %v1185 = vsub.s32 0, %v1184
        %v1186 = vadd.s32 %v1181, 1
        %vm1187 = vcmp.gt.s32.totalorder %v1186, 0
        %v1188 = vsel %vm1187, %v1186, 0
        %v1189 = vshrl.u32 %v1188, 5
        %v1190 = vand.u32 %v1188, 31
        %v1191 = vsub.s32 32, %v1190
        %v1192 = vshrl.u32 683565275, %v1191
        %v1193 = vshll.u32 683565275, %v1190
        %v1194 = vshrl.u32 2475754826, %v1191
        %v1195 = vor.u32 %v1193, %v1194
        %v1196 = vshll.u32 2475754826, %v1190
        %v1197 = vshrl.u32 2131351028, %v1191
        %v1198 = vor.u32 %v1196, %v1197
        %v1199 = vshll.u32 2131351028, %v1190
        %v1200 = vshrl.u32 2102212464, %v1191
        %v1201 = vor.u32 %v1199, %v1200
        %v1202 = vshll.u32 2102212464, %v1190
        %v1203 = vshrl.u32 920167782, %v1191
        %v1204 = vor.u32 %v1202, %v1203
        %v1205 = vshll.u32 920167782, %v1190
        %v1206 = vshrl.u32 1326507024, %v1191
        %v1207 = vor.u32 %v1205, %v1206
        %vm1208 = vcmp.lt.s32.totalorder %v1189, 1
        %vm1209 = vcmp.lt.s32.totalorder %v1189, 2
        %vm1210 = vcmp.lt.s32.totalorder %v1189, 3
        %vm1211 = vcmp.lt.s32.totalorder %v1189, 4
        %v1212 = vsel %vm1208, %v1192, %v1195
        %v1213 = vsel %vm1211, %v1201, 2102212464
        %v1214 = vsel %vm1210, %v1198, %v1213
        %v1215 = vsel %vm1209, %v1212, %v1214
        %v1216 = vsel %vm1208, %v1195, %v1198
        %v1217 = vsel %vm1211, %v1204, 920167782
        %v1218 = vsel %vm1210, %v1201, %v1217
        %v1219 = vsel %vm1209, %v1216, %v1218
        %v1220 = vsel %vm1208, %v1198, %v1201
        %v1221 = vsel %vm1211, %v1207, 1326507024
        %v1222 = vsel %vm1210, %v1204, %v1221
        %v1223 = vsel %vm1209, %v1220, %v1222
        %v1224 = vshll.u32 %v1184, 8
        %v1225 = vmul.u32.u64.compose %v1224, %v1223
        %v1226 = vextract.low.u32 %v1225
        %v1227 = vextract.high.u32 %v1225
        %v1228 = vmul.u32.u64.compose %v1224, %v1219
        %v1229 = vextract.low.u32 %v1228
        %v1230 = vextract.high.u32 %v1228
        %v1231 = vmul.u32 %v1224, %v1215
        %v1232 = vadd.s32 %v1227, %v1229
        %vm1233 = vc.u32 %v1227, %v1229
        %v1234 = vadd.s32 %v1230, 1
        %v1235 = vsel %vm1233, %v1234, %v1230
        %v1236 = vadd.s32 %v1231, %v1235
        %v1237 = vadd.s32 %v1236, 536870912
        %v1238 = vshrl.u32 %v1237, 30
        %v1239 = vshll.u32 %v1238, 30
        %v1240 = vsub.s32 %v1236, %v1239
        %vm1241 = vcmp.lt.s32.totalorder %v1240, 0
        %v1242 = vsub.s32 0, %v1240
        %v1243 = vsel %vm1241, %v1242, %v1240
        %v1244 = vclz %v1243
        %v1245 = vsub.s32 %v1244, 2
        %vm1246 = vcmp.gt.s32.totalorder 0, %v1245
        %v1247 = vsel %vm1246, 0, %v1245
        %v1248 = vsub.s32 32, %v1247
        %v1249 = vshll.u32 %v1240, %v1247
        %v1250 = vshrl.u32 %v1232, %v1248
        %v1251 = vor.u32 %v1249, %v1250
        %v1252 = vsub.s32 4294967266, %v1247
        %v1253 = vadd.s32 %v1252, 127
        %v1254 = vshll.u32 %v1253, 23
        %v1255 = vor.u32 4788187, %v1254
        %v1256 = vand.u32 2147483647, %v1255
        %v1258 = vcvt.s32.f32 %v1251
        %v1259 = vmul.f32 %v1258, %v1256
        %v1260 = vxor.u32 %v1259, 2147483648
        %v1261 = vsel %vm1178, %v1260, %v1259
        %v1262 = vsub.s32 4, %v1238
        %v1263 = vsel %vm1178, %v1262, %v1238
        %v1264 = vsel %vm1177, %v748, %v1261
        %v1265 = vsel %vm1177, 0, %v1263
        %v1266 = vcosq.f32.pop %v1264
        %v1267 = vsinq.f32.pop %v1264
        %vm1268 = vweird.f32 %v748
        %v1269 = vadd.s32 %v1265, 3
        %v1270 = vand.u32 %v1269, 3
        %vm1271 = vcmp.lt.s32.totalorder %v1270, 2
        %vm1272 = vcmp.eq.s32.totalorder %v1270, 0
        %v1273 = vxor.u32 %v1267, 2147483648
        %v1274 = vsel %vm1272, %v1266, %v1273
        %vm1275 = vcmp.eq.s32.totalorder %v1270, 2
        %v1276 = vxor.u32 %v1266, 2147483648
        %v1277 = vsel %vm1275, %v1276, %v1267
        %v1278 = vsel %vm1271, %v1274, %v1277
        %v1279 = vsel %vm1268, nan, %v1278
        %v1280 = vand.u32 2147483647, %v749
        %vm1281 = vcmp.le.f32.partialorder %v1280, 0.7853982
        %vm1282 = vcmp.lt.s32.totalorder %v749, 0
        %v1283 = vand.u32 %v749, 2139095040
        %v1284 = vshrl.u32 %v1283, 23
        %v1285 = vsub.s32 %v1284, 127
        %v1286 = vand.u32 2147483647, %v749
        %v1287 = vand.u32 %v1286, 8388607
        %v1288 = vor.u32 %v1287, 8388608
        %v1289 = vsub.s32 0, %v1288
        %v1290 = vadd.s32 %v1285, 1
        %vm1291 = vcmp.gt.s32.totalorder %v1290, 0
        %v1292 = vsel %vm1291, %v1290, 0
        %v1293 = vshrl.u32 %v1292, 5
        %v1294 = vand.u32 %v1292, 31
        %v1295 = vsub.s32 32, %v1294
        %v1296 = vshrl.u32 683565275, %v1295
        %v1297 = vshll.u32 683565275, %v1294
        %v1298 = vshrl.u32 2475754826, %v1295
        %v1299 = vor.u32 %v1297, %v1298
        %v1300 = vshll.u32 2475754826, %v1294
        %v1301 = vshrl.u32 2131351028, %v1295
        %v1302 = vor.u32 %v1300, %v1301
        %v1303 = vshll.u32 2131351028, %v1294
        %v1304 = vshrl.u32 2102212464, %v1295
        %v1305 = vor.u32 %v1303, %v1304
        %v1306 = vshll.u32 2102212464, %v1294
        %v1307 = vshrl.u32 920167782, %v1295
        %v1308 = vor.u32 %v1306, %v1307
        %v1309 = vshll.u32 920167782, %v1294
        %v1310 = vshrl.u32 1326507024, %v1295
        %v1311 = vor.u32 %v1309, %v1310
        %vm1312 = vcmp.lt.s32.totalorder %v1293, 1
        %vm1313 = vcmp.lt.s32.totalorder %v1293, 2
        %vm1314 = vcmp.lt.s32.totalorder %v1293, 3
        %vm1315 = vcmp.lt.s32.totalorder %v1293, 4
        %v1316 = vsel %vm1312, %v1296, %v1299
        %v1317 = vsel %vm1315, %v1305, 2102212464
        %v1318 = vsel %vm1314, %v1302, %v1317
        %v1319 = vsel %vm1313, %v1316, %v1318
        %v1320 = vsel %vm1312, %v1299, %v1302
        %v1321 = vsel %vm1315, %v1308, 920167782
        %v1322 = vsel %vm1314, %v1305, %v1321
        %v1323 = vsel %vm1313, %v1320, %v1322
        %v1324 = vsel %vm1312, %v1302, %v1305
        %v1325 = vsel %vm1315, %v1311, 1326507024
        %v1326 = vsel %vm1314, %v1308, %v1325
        %v1327 = vsel %vm1313, %v1324, %v1326
        %v1328 = vshll.u32 %v1288, 8
        %v1329 = vmul.u32.u64.compose %v1328, %v1327
        %v1330 = vextract.low.u32 %v1329
        %v1331 = vextract.high.u32 %v1329
        %v1332 = vmul.u32.u64.compose %v1328, %v1323
        %v1333 = vextract.low.u32 %v1332
        %v1334 = vextract.high.u32 %v1332
        %v1335 = vmul.u32 %v1328, %v1319
        %v1336 = vadd.s32 %v1331, %v1333
        %vm1337 = vc.u32 %v1331, %v1333
        %v1338 = vadd.s32 %v1334, 1
        %v1339 = vsel %vm1337, %v1338, %v1334
        %v1340 = vadd.s32 %v1335, %v1339
        %v1341 = vadd.s32 %v1340, 536870912
        %v1342 = vshrl.u32 %v1341, 30
        %v1343 = vshll.u32 %v1342, 30
        %v1344 = vsub.s32 %v1340, %v1343
        %vm1345 = vcmp.lt.s32.totalorder %v1344, 0
        %v1346 = vsub.s32 0, %v1344
        %v1347 = vsel %vm1345, %v1346, %v1344
        %v1348 = vclz %v1347
        %v1349 = vsub.s32 %v1348, 2
        %vm1350 = vcmp.gt.s32.totalorder 0, %v1349
        %v1351 = vsel %vm1350, 0, %v1349
        %v1352 = vsub.s32 32, %v1351
        %v1353 = vshll.u32 %v1344, %v1351
        %v1354 = vshrl.u32 %v1336, %v1352
        %v1355 = vor.u32 %v1353, %v1354
        %v1356 = vsub.s32 4294967266, %v1351
        %v1357 = vadd.s32 %v1356, 127
        %v1358 = vshll.u32 %v1357, 23
        %v1359 = vor.u32 4788187, %v1358
        %v1360 = vand.u32 2147483647, %v1359
        %v1362 = vcvt.s32.f32 %v1355
        %v1363 = vmul.f32 %v1362, %v1360
        %v1364 = vxor.u32 %v1363, 2147483648
        %v1365 = vsel %vm1282, %v1364, %v1363
        %v1366 = vsub.s32 4, %v1342
        %v1367 = vsel %vm1282, %v1366, %v1342
        %v1368 = vsel %vm1281, %v749, %v1365
        %v1369 = vsel %vm1281, 0, %v1367
        %v1370 = vcosq.f32.pop %v1368
        %v1371 = vsinq.f32.pop %v1368
        %vm1372 = vweird.f32 %v749
        %v1373 = vadd.s32 %v1369, 3
        %v1374 = vand.u32 %v1373, 3
        %vm1375 = vcmp.lt.s32.totalorder %v1374, 2
        %vm1376 = vcmp.eq.s32.totalorder %v1374, 0
        %v1377 = vxor.u32 %v1371, 2147483648
        %v1378 = vsel %vm1376, %v1370, %v1377
        %vm1379 = vcmp.eq.s32.totalorder %v1374, 2
        %v1380 = vxor.u32 %v1370, 2147483648
        %v1381 = vsel %vm1379, %v1380, %v1371
        %v1382 = vsel %vm1375, %v1378, %v1381
        %v1383 = vsel %vm1372, nan, %v1382
        %v1384 = vand.u32 2147483647, %v750
        %vm1385 = vcmp.le.f32.partialorder %v1384, 0.7853982
        %vm1386 = vcmp.lt.s32.totalorder %v750, 0
        %v1387 = vand.u32 %v750, 2139095040
        %v1388 = vshrl.u32 %v1387, 23
        %v1389 = vsub.s32 %v1388, 127
        %v1390 = vand.u32 2147483647, %v750
        %v1391 = vand.u32 %v1390, 8388607
        %v1392 = vor.u32 %v1391, 8388608
        %v1393 = vsub.s32 0, %v1392
        %v1394 = vadd.s32 %v1389, 1
        %vm1395 = vcmp.gt.s32.totalorder %v1394, 0
        %v1396 = vsel %vm1395, %v1394, 0
        %v1397 = vshrl.u32 %v1396, 5
        %v1398 = vand.u32 %v1396, 31
        %v1399 = vsub.s32 32, %v1398
        %v1400 = vshrl.u32 683565275, %v1399
        %v1401 = vshll.u32 683565275, %v1398
        %v1402 = vshrl.u32 2475754826, %v1399
        %v1403 = vor.u32 %v1401, %v1402
        %v1404 = vshll.u32 2475754826, %v1398
        %v1405 = vshrl.u32 2131351028, %v1399
        %v1406 = vor.u32 %v1404, %v1405
        %v1407 = vshll.u32 2131351028, %v1398
        %v1408 = vshrl.u32 2102212464, %v1399
        %v1409 = vor.u32 %v1407, %v1408
        %v1410 = vshll.u32 2102212464, %v1398
        %v1411 = vshrl.u32 920167782, %v1399
        %v1412 = vor.u32 %v1410, %v1411
        %v1413 = vshll.u32 920167782, %v1398
        %v1414 = vshrl.u32 1326507024, %v1399
        %v1415 = vor.u32 %v1413, %v1414
        %vm1416 = vcmp.lt.s32.totalorder %v1397, 1
        %vm1417 = vcmp.lt.s32.totalorder %v1397, 2
        %vm1418 = vcmp.lt.s32.totalorder %v1397, 3
        %vm1419 = vcmp.lt.s32.totalorder %v1397, 4
        %v1420 = vsel %vm1416, %v1400, %v1403
        %v1421 = vsel %vm1419, %v1409, 2102212464
        %v1422 = vsel %vm1418, %v1406, %v1421
        %v1423 = vsel %vm1417, %v1420, %v1422
        %v1424 = vsel %vm1416, %v1403, %v1406
        %v1425 = vsel %vm1419, %v1412, 920167782
        %v1426 = vsel %vm1418, %v1409, %v1425
        %v1427 = vsel %vm1417, %v1424, %v1426
        %v1428 = vsel %vm1416, %v1406, %v1409
        %v1429 = vsel %vm1419, %v1415, 1326507024
        %v1430 = vsel %vm1418, %v1412, %v1429
        %v1431 = vsel %vm1417, %v1428, %v1430
        %v1432 = vshll.u32 %v1392, 8
        %v1433 = vmul.u32.u64.compose %v1432, %v1431
        %v1434 = vextract.low.u32 %v1433
        %v1435 = vextract.high.u32 %v1433
        %v1436 = vmul.u32.u64.compose %v1432, %v1427
        %v1437 = vextract.low.u32 %v1436
        %v1438 = vextract.high.u32 %v1436
        %v1439 = vmul.u32 %v1432, %v1423
        %v1440 = vadd.s32 %v1435, %v1437
        %vm1441 = vc.u32 %v1435, %v1437
        %v1442 = vadd.s32 %v1438, 1
        %v1443 = vsel %vm1441, %v1442, %v1438
        %v1444 = vadd.s32 %v1439, %v1443
        %v1445 = vadd.s32 %v1444, 536870912
        %v1446 = vshrl.u32 %v1445, 30
        %v1447 = vshll.u32 %v1446, 30
        %v1448 = vsub.s32 %v1444, %v1447
        %vm1449 = vcmp.lt.s32.totalorder %v1448, 0
        %v1450 = vsub.s32 0, %v1448
        %v1451 = vsel %vm1449, %v1450, %v1448
        %v1452 = vclz %v1451
        %v1453 = vsub.s32 %v1452, 2
        %vm1454 = vcmp.gt.s32.totalorder 0, %v1453
        %v1455 = vsel %vm1454, 0, %v1453
        %v1456 = vsub.s32 32, %v1455
        %v1457 = vshll.u32 %v1448, %v1455
        %v1458 = vshrl.u32 %v1440, %v1456
        %v1459 = vor.u32 %v1457, %v1458
        %v1460 = vsub.s32 4294967266, %v1455
        %v1461 = vadd.s32 %v1460, 127
        %v1462 = vshll.u32 %v1461, 23
        %v1463 = vor.u32 4788187, %v1462
        %v1464 = vand.u32 2147483647, %v1463
        %v1466 = vcvt.s32.f32 %v1459
        %v1467 = vmul.f32 %v1466, %v1464
        %v1468 = vxor.u32 %v1467, 2147483648
        %v1469 = vsel %vm1386, %v1468, %v1467
        %v1470 = vsub.s32 4, %v1446
        %v1471 = vsel %vm1386, %v1470, %v1446
        %v1472 = vsel %vm1385, %v750, %v1469
        %v1473 = vsel %vm1385, 0, %v1471
        %v1474 = vcosq.f32.pop %v1472
        %v1475 = vsinq.f32.pop %v1472
        %vm1476 = vweird.f32 %v750
        %v1477 = vadd.s32 %v1473, 3
        %v1478 = vand.u32 %v1477, 3
        %vm1479 = vcmp.lt.s32.totalorder %v1478, 2
        %vm1480 = vcmp.eq.s32.totalorder %v1478, 0
        %v1481 = vxor.u32 %v1475, 2147483648
        %v1482 = vsel %vm1480, %v1474, %v1481
        %vm1483 = vcmp.eq.s32.totalorder %v1478, 2
        %v1484 = vxor.u32 %v1474, 2147483648
        %v1485 = vsel %vm1483, %v1484, %v1475
        %v1486 = vsel %vm1479, %v1482, %v1485
        %v1487 = vsel %vm1476, nan, %v1486
        %v1488 = vand.u32 2147483647, %v751
        %vm1489 = vcmp.le.f32.partialorder %v1488, 0.7853982
        %vm1490 = vcmp.lt.s32.totalorder %v751, 0
        %v1491 = vand.u32 %v751, 2139095040
        %v1492 = vshrl.u32 %v1491, 23
        %v1493 = vsub.s32 %v1492, 127
        %v1494 = vand.u32 2147483647, %v751
        %v1495 = vand.u32 %v1494, 8388607
        %v1496 = vor.u32 %v1495, 8388608
        %v1497 = vsub.s32 0, %v1496
        %v1498 = vadd.s32 %v1493, 1
        %vm1499 = vcmp.gt.s32.totalorder %v1498, 0
        %v1500 = vsel %vm1499, %v1498, 0
        %v1501 = vshrl.u32 %v1500, 5
        %v1502 = vand.u32 %v1500, 31
        %v1503 = vsub.s32 32, %v1502
        %v1504 = vshrl.u32 683565275, %v1503
        %v1505 = vshll.u32 683565275, %v1502
        %v1506 = vshrl.u32 2475754826, %v1503
        %v1507 = vor.u32 %v1505, %v1506
        %v1508 = vshll.u32 2475754826, %v1502
        %v1509 = vshrl.u32 2131351028, %v1503
        %v1510 = vor.u32 %v1508, %v1509
        %v1511 = vshll.u32 2131351028, %v1502
        %v1512 = vshrl.u32 2102212464, %v1503
        %v1513 = vor.u32 %v1511, %v1512
        %v1514 = vshll.u32 2102212464, %v1502
        %v1515 = vshrl.u32 920167782, %v1503
        %v1516 = vor.u32 %v1514, %v1515
        %v1517 = vshll.u32 920167782, %v1502
        %v1518 = vshrl.u32 1326507024, %v1503
        %v1519 = vor.u32 %v1517, %v1518
        %vm1520 = vcmp.lt.s32.totalorder %v1501, 1
        %vm1521 = vcmp.lt.s32.totalorder %v1501, 2
        %vm1522 = vcmp.lt.s32.totalorder %v1501, 3
        %vm1523 = vcmp.lt.s32.totalorder %v1501, 4
        %v1524 = vsel %vm1520, %v1504, %v1507
        %v1525 = vsel %vm1523, %v1513, 2102212464
        %v1526 = vsel %vm1522, %v1510, %v1525
        %v1527 = vsel %vm1521, %v1524, %v1526
        %v1528 = vsel %vm1520, %v1507, %v1510
        %v1529 = vsel %vm1523, %v1516, 920167782
        %v1530 = vsel %vm1522, %v1513, %v1529
        %v1531 = vsel %vm1521, %v1528, %v1530
        %v1532 = vsel %vm1520, %v1510, %v1513
        %v1533 = vsel %vm1523, %v1519, 1326507024
        %v1534 = vsel %vm1522, %v1516, %v1533
        %v1535 = vsel %vm1521, %v1532, %v1534
        %v1536 = vshll.u32 %v1496, 8
        %v1537 = vmul.u32.u64.compose %v1536, %v1535
        %v1538 = vextract.low.u32 %v1537
        %v1539 = vextract.high.u32 %v1537
        %v1540 = vmul.u32.u64.compose %v1536, %v1531
        %v1541 = vextract.low.u32 %v1540
        %v1542 = vextract.high.u32 %v1540
        %v1543 = vmul.u32 %v1536, %v1527
        %v1544 = vadd.s32 %v1539, %v1541
        %vm1545 = vc.u32 %v1539, %v1541
        %v1546 = vadd.s32 %v1542, 1
        %v1547 = vsel %vm1545, %v1546, %v1542
        %v1548 = vadd.s32 %v1543, %v1547
        %v1549 = vadd.s32 %v1548, 536870912
        %v1550 = vshrl.u32 %v1549, 30
        %v1551 = vshll.u32 %v1550, 30
        %v1552 = vsub.s32 %v1548, %v1551
        %vm1553 = vcmp.lt.s32.totalorder %v1552, 0
        %v1554 = vsub.s32 0, %v1552
        %v1555 = vsel %vm1553, %v1554, %v1552
        %v1556 = vclz %v1555
        %v1557 = vsub.s32 %v1556, 2
        %vm1558 = vcmp.gt.s32.totalorder 0, %v1557
        %v1559 = vsel %vm1558, 0, %v1557
        %v1560 = vsub.s32 32, %v1559
        %v1561 = vshll.u32 %v1552, %v1559
        %v1562 = vshrl.u32 %v1544, %v1560
        %v1563 = vor.u32 %v1561, %v1562
        %v1564 = vsub.s32 4294967266, %v1559
        %v1565 = vadd.s32 %v1564, 127
        %v1566 = vshll.u32 %v1565, 23
        %v1567 = vor.u32 4788187, %v1566
        %v1568 = vand.u32 2147483647, %v1567
        %v1570 = vcvt.s32.f32 %v1563
        %v1571 = vmul.f32 %v1570, %v1568
        %v1572 = vxor.u32 %v1571, 2147483648
        %v1573 = vsel %vm1490, %v1572, %v1571
        %v1574 = vsub.s32 4, %v1550
        %v1575 = vsel %vm1490, %v1574, %v1550
        %v1576 = vsel %vm1489, %v751, %v1573
        %v1577 = vsel %vm1489, 0, %v1575
        %v1578 = vcosq.f32.pop %v1576
        %v1579 = vsinq.f32.pop %v1576
        %vm1580 = vweird.f32 %v751
        %v1581 = vadd.s32 %v1577, 3
        %v1582 = vand.u32 %v1581, 3
        %vm1583 = vcmp.lt.s32.totalorder %v1582, 2
        %vm1584 = vcmp.eq.s32.totalorder %v1582, 0
        %v1585 = vxor.u32 %v1579, 2147483648
        %v1586 = vsel %vm1584, %v1578, %v1585
        %vm1587 = vcmp.eq.s32.totalorder %v1582, 2
        %v1588 = vxor.u32 %v1578, 2147483648
        %v1589 = vsel %vm1587, %v1588, %v1579
        %v1590 = vsel %vm1583, %v1586, %v1589
        %v1591 = vsel %vm1580, nan, %v1590
        %v1592 = vand.u32 2147483647, %v752
        %vm1593 = vcmp.le.f32.partialorder %v1592, 0.7853982
        %vm1594 = vcmp.lt.s32.totalorder %v752, 0
        %v1595 = vand.u32 %v752, 2139095040
        %v1596 = vshrl.u32 %v1595, 23
        %v1597 = vsub.s32 %v1596, 127
        %v1598 = vand.u32 2147483647, %v752
        %v1599 = vand.u32 %v1598, 8388607
        %v1600 = vor.u32 %v1599, 8388608
        %v1601 = vsub.s32 0, %v1600
        %v1602 = vadd.s32 %v1597, 1
        %vm1603 = vcmp.gt.s32.totalorder %v1602, 0
        %v1604 = vsel %vm1603, %v1602, 0
        %v1605 = vshrl.u32 %v1604, 5
        %v1606 = vand.u32 %v1604, 31
        %v1607 = vsub.s32 32, %v1606
        %v1608 = vshrl.u32 683565275, %v1607
        %v1609 = vshll.u32 683565275, %v1606
        %v1610 = vshrl.u32 2475754826, %v1607
        %v1611 = vor.u32 %v1609, %v1610
        %v1612 = vshll.u32 2475754826, %v1606
        %v1613 = vshrl.u32 2131351028, %v1607
        %v1614 = vor.u32 %v1612, %v1613
        %v1615 = vshll.u32 2131351028, %v1606
        %v1616 = vshrl.u32 2102212464, %v1607
        %v1617 = vor.u32 %v1615, %v1616
        %v1618 = vshll.u32 2102212464, %v1606
        %v1619 = vshrl.u32 920167782, %v1607
        %v1620 = vor.u32 %v1618, %v1619
        %v1621 = vshll.u32 920167782, %v1606
        %v1622 = vshrl.u32 1326507024, %v1607
        %v1623 = vor.u32 %v1621, %v1622
        %vm1624 = vcmp.lt.s32.totalorder %v1605, 1
        %vm1625 = vcmp.lt.s32.totalorder %v1605, 2
        %vm1626 = vcmp.lt.s32.totalorder %v1605, 3
        %vm1627 = vcmp.lt.s32.totalorder %v1605, 4
        %v1628 = vsel %vm1624, %v1608, %v1611
        %v1629 = vsel %vm1627, %v1617, 2102212464
        %v1630 = vsel %vm1626, %v1614, %v1629
        %v1631 = vsel %vm1625, %v1628, %v1630
        %v1632 = vsel %vm1624, %v1611, %v1614
        %v1633 = vsel %vm1627, %v1620, 920167782
        %v1634 = vsel %vm1626, %v1617, %v1633
        %v1635 = vsel %vm1625, %v1632, %v1634
        %v1636 = vsel %vm1624, %v1614, %v1617
        %v1637 = vsel %vm1627, %v1623, 1326507024
        %v1638 = vsel %vm1626, %v1620, %v1637
        %v1639 = vsel %vm1625, %v1636, %v1638
        %v1640 = vshll.u32 %v1600, 8
        %v1641 = vmul.u32.u64.compose %v1640, %v1639
        %v1642 = vextract.low.u32 %v1641
        %v1643 = vextract.high.u32 %v1641
        %v1644 = vmul.u32.u64.compose %v1640, %v1635
        %v1645 = vextract.low.u32 %v1644
        %v1646 = vextract.high.u32 %v1644
        %v1647 = vmul.u32 %v1640, %v1631
        %v1648 = vadd.s32 %v1643, %v1645
        %vm1649 = vc.u32 %v1643, %v1645
        %v1650 = vadd.s32 %v1646, 1
        %v1651 = vsel %vm1649, %v1650, %v1646
        %v1652 = vadd.s32 %v1647, %v1651
        %v1653 = vadd.s32 %v1652, 536870912
        %v1654 = vshrl.u32 %v1653, 30
        %v1655 = vshll.u32 %v1654, 30
        %v1656 = vsub.s32 %v1652, %v1655
        %vm1657 = vcmp.lt.s32.totalorder %v1656, 0
        %v1658 = vsub.s32 0, %v1656
        %v1659 = vsel %vm1657, %v1658, %v1656
        %v1660 = vclz %v1659
        %v1661 = vsub.s32 %v1660, 2
        %vm1662 = vcmp.gt.s32.totalorder 0, %v1661
        %v1663 = vsel %vm1662, 0, %v1661
        %v1664 = vsub.s32 32, %v1663
        %v1665 = vshll.u32 %v1656, %v1663
        %v1666 = vshrl.u32 %v1648, %v1664
        %v1667 = vor.u32 %v1665, %v1666
        %v1668 = vsub.s32 4294967266, %v1663
        %v1669 = vadd.s32 %v1668, 127
        %v1670 = vshll.u32 %v1669, 23
        %v1671 = vor.u32 4788187, %v1670
        %v1672 = vand.u32 2147483647, %v1671
        %v1674 = vcvt.s32.f32 %v1667
        %v1675 = vmul.f32 %v1674, %v1672
        %v1676 = vxor.u32 %v1675, 2147483648
        %v1677 = vsel %vm1594, %v1676, %v1675
        %v1678 = vsub.s32 4, %v1654
        %v1679 = vsel %vm1594, %v1678, %v1654
        %v1680 = vsel %vm1593, %v752, %v1677
        %v1681 = vsel %vm1593, 0, %v1679
        %v1682 = vcosq.f32.pop %v1680
        %v1683 = vsinq.f32.pop %v1680
        %vm1684 = vweird.f32 %v752
        %v1685 = vadd.s32 %v1681, 3
        %v1686 = vand.u32 %v1685, 3
        %vm1687 = vcmp.lt.s32.totalorder %v1686, 2
        %vm1688 = vcmp.eq.s32.totalorder %v1686, 0
        %v1689 = vxor.u32 %v1683, 2147483648
        %v1690 = vsel %vm1688, %v1682, %v1689
        %vm1691 = vcmp.eq.s32.totalorder %v1686, 2
        %v1692 = vxor.u32 %v1682, 2147483648
        %v1693 = vsel %vm1691, %v1692, %v1683
        %v1694 = vsel %vm1687, %v1690, %v1693
        %v1695 = vsel %vm1684, nan, %v1694
        %v1696 = vand.u32 2147483647, %v753
        %vm1697 = vcmp.le.f32.partialorder %v1696, 0.7853982
        %vm1698 = vcmp.lt.s32.totalorder %v753, 0
        %v1699 = vand.u32 %v753, 2139095040
        %v1700 = vshrl.u32 %v1699, 23
        %v1701 = vsub.s32 %v1700, 127
        %v1702 = vand.u32 2147483647, %v753
        %v1703 = vand.u32 %v1702, 8388607
        %v1704 = vor.u32 %v1703, 8388608
        %v1705 = vsub.s32 0, %v1704
        %v1706 = vadd.s32 %v1701, 1
        %vm1707 = vcmp.gt.s32.totalorder %v1706, 0
        %v1708 = vsel %vm1707, %v1706, 0
        %v1709 = vshrl.u32 %v1708, 5
        %v1710 = vand.u32 %v1708, 31
        %v1711 = vsub.s32 32, %v1710
        %v1712 = vshrl.u32 683565275, %v1711
        %v1713 = vshll.u32 683565275, %v1710
        %v1714 = vshrl.u32 2475754826, %v1711
        %v1715 = vor.u32 %v1713, %v1714
        %v1716 = vshll.u32 2475754826, %v1710
        %v1717 = vshrl.u32 2131351028, %v1711
        %v1718 = vor.u32 %v1716, %v1717
        %v1719 = vshll.u32 2131351028, %v1710
        %v1720 = vshrl.u32 2102212464, %v1711
        %v1721 = vor.u32 %v1719, %v1720
        %v1722 = vshll.u32 2102212464, %v1710
        %v1723 = vshrl.u32 920167782, %v1711
        %v1724 = vor.u32 %v1722, %v1723
        %v1725 = vshll.u32 920167782, %v1710
        %v1726 = vshrl.u32 1326507024, %v1711
        %v1727 = vor.u32 %v1725, %v1726
        %vm1728 = vcmp.lt.s32.totalorder %v1709, 1
        %vm1729 = vcmp.lt.s32.totalorder %v1709, 2
        %vm1730 = vcmp.lt.s32.totalorder %v1709, 3
        %vm1731 = vcmp.lt.s32.totalorder %v1709, 4
        %v1732 = vsel %vm1728, %v1712, %v1715
        %v1733 = vsel %vm1731, %v1721, 2102212464
        %v1734 = vsel %vm1730, %v1718, %v1733
        %v1735 = vsel %vm1729, %v1732, %v1734
        %v1736 = vsel %vm1728, %v1715, %v1718
        %v1737 = vsel %vm1731, %v1724, 920167782
        %v1738 = vsel %vm1730, %v1721, %v1737
        %v1739 = vsel %vm1729, %v1736, %v1738
        %v1740 = vsel %vm1728, %v1718, %v1721
        %v1741 = vsel %vm1731, %v1727, 1326507024
        %v1742 = vsel %vm1730, %v1724, %v1741
        %v1743 = vsel %vm1729, %v1740, %v1742
        %v1744 = vshll.u32 %v1704, 8
        %v1745 = vmul.u32.u64.compose %v1744, %v1743
        %v1746 = vextract.low.u32 %v1745
        %v1747 = vextract.high.u32 %v1745
        %v1748 = vmul.u32.u64.compose %v1744, %v1739
        %v1749 = vextract.low.u32 %v1748
        %v1750 = vextract.high.u32 %v1748
        %v1751 = vmul.u32 %v1744, %v1735
        %v1752 = vadd.s32 %v1747, %v1749
        %vm1753 = vc.u32 %v1747, %v1749
        %v1754 = vadd.s32 %v1750, 1
        %v1755 = vsel %vm1753, %v1754, %v1750
        %v1756 = vadd.s32 %v1751, %v1755
        %v1757 = vadd.s32 %v1756, 536870912
        %v1758 = vshrl.u32 %v1757, 30
        %v1759 = vshll.u32 %v1758, 30
        %v1760 = vsub.s32 %v1756, %v1759
        %vm1761 = vcmp.lt.s32.totalorder %v1760, 0
        %v1762 = vsub.s32 0, %v1760
        %v1763 = vsel %vm1761, %v1762, %v1760
        %v1764 = vclz %v1763
        %v1765 = vsub.s32 %v1764, 2
        %vm1766 = vcmp.gt.s32.totalorder 0, %v1765
        %v1767 = vsel %vm1766, 0, %v1765
        %v1768 = vsub.s32 32, %v1767
        %v1769 = vshll.u32 %v1760, %v1767
        %v1770 = vshrl.u32 %v1752, %v1768
        %v1771 = vor.u32 %v1769, %v1770
        %v1772 = vsub.s32 4294967266, %v1767
        %v1773 = vadd.s32 %v1772, 127
        %v1774 = vshll.u32 %v1773, 23
        %v1775 = vor.u32 4788187, %v1774
        %v1776 = vand.u32 2147483647, %v1775
        %v1778 = vcvt.s32.f32 %v1771
        %v1779 = vmul.f32 %v1778, %v1776
        %v1780 = vxor.u32 %v1779, 2147483648
        %v1781 = vsel %vm1698, %v1780, %v1779
        %v1782 = vsub.s32 4, %v1758
        %v1783 = vsel %vm1698, %v1782, %v1758
        %v1784 = vsel %vm1697, %v753, %v1781
        %v1785 = vsel %vm1697, 0, %v1783
        %v1786 = vcosq.f32.pop %v1784
        %v1787 = vsinq.f32.pop %v1784
        %vm1788 = vweird.f32 %v753
        %v1789 = vadd.s32 %v1785, 3
        %v1790 = vand.u32 %v1789, 3
        %vm1791 = vcmp.lt.s32.totalorder %v1790, 2
        %vm1792 = vcmp.eq.s32.totalorder %v1790, 0
        %v1793 = vxor.u32 %v1787, 2147483648
        %v1794 = vsel %vm1792, %v1786, %v1793
        %vm1795 = vcmp.eq.s32.totalorder %v1790, 2
        %v1796 = vxor.u32 %v1786, 2147483648
        %v1797 = vsel %vm1795, %v1796, %v1787
        %v1798 = vsel %vm1791, %v1794, %v1797
        %v1799 = vsel %vm1788, nan, %v1798
        %v1800 = vand.u32 2147483647, %v754
        %vm1801 = vcmp.le.f32.partialorder %v1800, 0.7853982
        %vm1802 = vcmp.lt.s32.totalorder %v754, 0
        %v1803 = vand.u32 %v754, 2139095040
        %v1804 = vshrl.u32 %v1803, 23
        %v1805 = vsub.s32 %v1804, 127
        %v1806 = vand.u32 2147483647, %v754
        %v1807 = vand.u32 %v1806, 8388607
        %v1808 = vor.u32 %v1807, 8388608
        %v1809 = vsub.s32 0, %v1808
        %v1810 = vadd.s32 %v1805, 1
        %vm1811 = vcmp.gt.s32.totalorder %v1810, 0
        %v1812 = vsel %vm1811, %v1810, 0
        %v1813 = vshrl.u32 %v1812, 5
        %v1814 = vand.u32 %v1812, 31
        %v1815 = vsub.s32 32, %v1814
        %v1816 = vshrl.u32 683565275, %v1815
        %v1817 = vshll.u32 683565275, %v1814
        %v1818 = vshrl.u32 2475754826, %v1815
        %v1819 = vor.u32 %v1817, %v1818
        %v1820 = vshll.u32 2475754826, %v1814
        %v1821 = vshrl.u32 2131351028, %v1815
        %v1822 = vor.u32 %v1820, %v1821
        %v1823 = vshll.u32 2131351028, %v1814
        %v1824 = vshrl.u32 2102212464, %v1815
        %v1825 = vor.u32 %v1823, %v1824
        %v1826 = vshll.u32 2102212464, %v1814
        %v1827 = vshrl.u32 920167782, %v1815
        %v1828 = vor.u32 %v1826, %v1827
        %v1829 = vshll.u32 920167782, %v1814
        %v1830 = vshrl.u32 1326507024, %v1815
        %v1831 = vor.u32 %v1829, %v1830
        %vm1832 = vcmp.lt.s32.totalorder %v1813, 1
        %vm1833 = vcmp.lt.s32.totalorder %v1813, 2
        %vm1834 = vcmp.lt.s32.totalorder %v1813, 3
        %vm1835 = vcmp.lt.s32.totalorder %v1813, 4
        %v1836 = vsel %vm1832, %v1816, %v1819
        %v1837 = vsel %vm1835, %v1825, 2102212464
        %v1838 = vsel %vm1834, %v1822, %v1837
        %v1839 = vsel %vm1833, %v1836, %v1838
        %v1840 = vsel %vm1832, %v1819, %v1822
        %v1841 = vsel %vm1835, %v1828, 920167782
        %v1842 = vsel %vm1834, %v1825, %v1841
        %v1843 = vsel %vm1833, %v1840, %v1842
        %v1844 = vsel %vm1832, %v1822, %v1825
        %v1845 = vsel %vm1835, %v1831, 1326507024
        %v1846 = vsel %vm1834, %v1828, %v1845
        %v1847 = vsel %vm1833, %v1844, %v1846
        %v1848 = vshll.u32 %v1808, 8
        %v1849 = vmul.u32.u64.compose %v1848, %v1847
        %v1850 = vextract.low.u32 %v1849
        %v1851 = vextract.high.u32 %v1849
        %v1852 = vmul.u32.u64.compose %v1848, %v1843
        %v1853 = vextract.low.u32 %v1852
        %v1854 = vextract.high.u32 %v1852
        %v1855 = vmul.u32 %v1848, %v1839
        %v1856 = vadd.s32 %v1851, %v1853
        %vm1857 = vc.u32 %v1851, %v1853
        %v1858 = vadd.s32 %v1854, 1
        %v1859 = vsel %vm1857, %v1858, %v1854
        %v1860 = vadd.s32 %v1855, %v1859
        %v1861 = vadd.s32 %v1860, 536870912
        %v1862 = vshrl.u32 %v1861, 30
        %v1863 = vshll.u32 %v1862, 30
        %v1864 = vsub.s32 %v1860, %v1863
        %vm1865 = vcmp.lt.s32.totalorder %v1864, 0
        %v1866 = vsub.s32 0, %v1864
        %v1867 = vsel %vm1865, %v1866, %v1864
        %v1868 = vclz %v1867
        %v1869 = vsub.s32 %v1868, 2
        %vm1870 = vcmp.gt.s32.totalorder 0, %v1869
        %v1871 = vsel %vm1870, 0, %v1869
        %v1872 = vsub.s32 32, %v1871
        %v1873 = vshll.u32 %v1864, %v1871
        %v1874 = vshrl.u32 %v1856, %v1872
        %v1875 = vor.u32 %v1873, %v1874
        %v1876 = vsub.s32 4294967266, %v1871
        %v1877 = vadd.s32 %v1876, 127
        %v1878 = vshll.u32 %v1877, 23
        %v1879 = vor.u32 4788187, %v1878
        %v1880 = vand.u32 2147483647, %v1879
        %v1882 = vcvt.s32.f32 %v1875
        %v1883 = vmul.f32 %v1882, %v1880
        %v1884 = vxor.u32 %v1883, 2147483648
        %v1885 = vsel %vm1802, %v1884, %v1883
        %v1886 = vsub.s32 4, %v1862
        %v1887 = vsel %vm1802, %v1886, %v1862
        %v1888 = vsel %vm1801, %v754, %v1885
        %v1889 = vsel %vm1801, 0, %v1887
        %v1890 = vcosq.f32.pop %v1888
        %v1891 = vsinq.f32.pop %v1888
        %vm1892 = vweird.f32 %v754
        %v1893 = vadd.s32 %v1889, 3
        %v1894 = vand.u32 %v1893, 3
        %vm1895 = vcmp.lt.s32.totalorder %v1894, 2
        %vm1896 = vcmp.eq.s32.totalorder %v1894, 0
        %v1897 = vxor.u32 %v1891, 2147483648
        %v1898 = vsel %vm1896, %v1890, %v1897
        %vm1899 = vcmp.eq.s32.totalorder %v1894, 2
        %v1900 = vxor.u32 %v1890, 2147483648
        %v1901 = vsel %vm1899, %v1900, %v1891
        %v1902 = vsel %vm1895, %v1898, %v1901
        %v1903 = vsel %vm1892, nan, %v1902
        %v1904 = vand.u32 2147483647, %v755
        %vm1905 = vcmp.le.f32.partialorder %v1904, 0.7853982
        %vm1906 = vcmp.lt.s32.totalorder %v755, 0
        %v1907 = vand.u32 %v755, 2139095040
        %v1908 = vshrl.u32 %v1907, 23
        %v1909 = vsub.s32 %v1908, 127
        %v1910 = vand.u32 2147483647, %v755
        %v1911 = vand.u32 %v1910, 8388607
        %v1912 = vor.u32 %v1911, 8388608
        %v1913 = vsub.s32 0, %v1912
        %v1914 = vadd.s32 %v1909, 1
        %vm1915 = vcmp.gt.s32.totalorder %v1914, 0
        %v1916 = vsel %vm1915, %v1914, 0
        %v1917 = vshrl.u32 %v1916, 5
        %v1918 = vand.u32 %v1916, 31
        %v1919 = vsub.s32 32, %v1918
        %v1920 = vshrl.u32 683565275, %v1919
        %v1921 = vshll.u32 683565275, %v1918
        %v1922 = vshrl.u32 2475754826, %v1919
        %v1923 = vor.u32 %v1921, %v1922
        %v1924 = vshll.u32 2475754826, %v1918
        %v1925 = vshrl.u32 2131351028, %v1919
        %v1926 = vor.u32 %v1924, %v1925
        %v1927 = vshll.u32 2131351028, %v1918
        %v1928 = vshrl.u32 2102212464, %v1919
        %v1929 = vor.u32 %v1927, %v1928
        %v1930 = vshll.u32 2102212464, %v1918
        %v1931 = vshrl.u32 920167782, %v1919
        %v1932 = vor.u32 %v1930, %v1931
        %v1933 = vshll.u32 920167782, %v1918
        %v1934 = vshrl.u32 1326507024, %v1919
        %v1935 = vor.u32 %v1933, %v1934
        %vm1936 = vcmp.lt.s32.totalorder %v1917, 1
        %vm1937 = vcmp.lt.s32.totalorder %v1917, 2
        %vm1938 = vcmp.lt.s32.totalorder %v1917, 3
        %vm1939 = vcmp.lt.s32.totalorder %v1917, 4
        %v1940 = vsel %vm1936, %v1920, %v1923
        %v1941 = vsel %vm1939, %v1929, 2102212464
        %v1942 = vsel %vm1938, %v1926, %v1941
        %v1943 = vsel %vm1937, %v1940, %v1942
        %v1944 = vsel %vm1936, %v1923, %v1926
        %v1945 = vsel %vm1939, %v1932, 920167782
        %v1946 = vsel %vm1938, %v1929, %v1945
        %v1947 = vsel %vm1937, %v1944, %v1946
        %v1948 = vsel %vm1936, %v1926, %v1929
        %v1949 = vsel %vm1939, %v1935, 1326507024
        %v1950 = vsel %vm1938, %v1932, %v1949
        %v1951 = vsel %vm1937, %v1948, %v1950
        %v1952 = vshll.u32 %v1912, 8
        %v1953 = vmul.u32.u64.compose %v1952, %v1951
        %v1954 = vextract.low.u32 %v1953
        %v1955 = vextract.high.u32 %v1953
        %v1956 = vmul.u32.u64.compose %v1952, %v1947
        %v1957 = vextract.low.u32 %v1956
        %v1958 = vextract.high.u32 %v1956
        %v1959 = vmul.u32 %v1952, %v1943
        %v1960 = vadd.s32 %v1955, %v1957
        %vm1961 = vc.u32 %v1955, %v1957
        %v1962 = vadd.s32 %v1958, 1
        %v1963 = vsel %vm1961, %v1962, %v1958
        %v1964 = vadd.s32 %v1959, %v1963
        %v1965 = vadd.s32 %v1964, 536870912
        %v1966 = vshrl.u32 %v1965, 30
        %v1967 = vshll.u32 %v1966, 30
        %v1968 = vsub.s32 %v1964, %v1967
        %vm1969 = vcmp.lt.s32.totalorder %v1968, 0
        %v1970 = vsub.s32 0, %v1968
        %v1971 = vsel %vm1969, %v1970, %v1968
        %v1972 = vclz %v1971
        %v1973 = vsub.s32 %v1972, 2
        %vm1974 = vcmp.gt.s32.totalorder 0, %v1973
        %v1975 = vsel %vm1974, 0, %v1973
        %v1976 = vsub.s32 32, %v1975
        %v1977 = vshll.u32 %v1968, %v1975
        %v1978 = vshrl.u32 %v1960, %v1976
        %v1979 = vor.u32 %v1977, %v1978
        %v1980 = vsub.s32 4294967266, %v1975
        %v1981 = vadd.s32 %v1980, 127
        %v1982 = vshll.u32 %v1981, 23
        %v1983 = vor.u32 4788187, %v1982
        %v1984 = vand.u32 2147483647, %v1983
        %v1986 = vcvt.s32.f32 %v1979
        %v1987 = vmul.f32 %v1986, %v1984
        %v1988 = vxor.u32 %v1987, 2147483648
        %v1989 = vsel %vm1906, %v1988, %v1987
        %v1990 = vsub.s32 4, %v1966
        %v1991 = vsel %vm1906, %v1990, %v1966
        %v1992 = vsel %vm1905, %v755, %v1989
        %v1993 = vsel %vm1905, 0, %v1991
        %v1994 = vcosq.f32.pop %v1992
        %v1995 = vsinq.f32.pop %v1992
        %vm1996 = vweird.f32 %v755
        %v1997 = vadd.s32 %v1993, 3
        %v1998 = vand.u32 %v1997, 3
        %vm1999 = vcmp.lt.s32.totalorder %v1998, 2
        %vm2000 = vcmp.eq.s32.totalorder %v1998, 0
        %v2001 = vxor.u32 %v1995, 2147483648
        %v2002 = vsel %vm2000, %v1994, %v2001
        %vm2003 = vcmp.eq.s32.totalorder %v1998, 2
        %v2004 = vxor.u32 %v1994, 2147483648
        %v2005 = vsel %vm2003, %v2004, %v1995
        %v2006 = vsel %vm1999, %v2002, %v2005
        %v2007 = vsel %vm1996, nan, %v2006
        %v2008 = vand.u32 2147483647, %v756
        %vm2009 = vcmp.le.f32.partialorder %v2008, 0.7853982
        %vm2010 = vcmp.lt.s32.totalorder %v756, 0
        %v2011 = vand.u32 %v756, 2139095040
        %v2012 = vshrl.u32 %v2011, 23
        %v2013 = vsub.s32 %v2012, 127
        %v2014 = vand.u32 2147483647, %v756
        %v2015 = vand.u32 %v2014, 8388607
        %v2016 = vor.u32 %v2015, 8388608
        %v2017 = vsub.s32 0, %v2016
        %v2018 = vadd.s32 %v2013, 1
        %vm2019 = vcmp.gt.s32.totalorder %v2018, 0
        %v2020 = vsel %vm2019, %v2018, 0
        %v2021 = vshrl.u32 %v2020, 5
        %v2022 = vand.u32 %v2020, 31
        %v2023 = vsub.s32 32, %v2022
        %v2024 = vshrl.u32 683565275, %v2023
        %v2025 = vshll.u32 683565275, %v2022
        %v2026 = vshrl.u32 2475754826, %v2023
        %v2027 = vor.u32 %v2025, %v2026
        %v2028 = vshll.u32 2475754826, %v2022
        %v2029 = vshrl.u32 2131351028, %v2023
        %v2030 = vor.u32 %v2028, %v2029
        %v2031 = vshll.u32 2131351028, %v2022
        %v2032 = vshrl.u32 2102212464, %v2023
        %v2033 = vor.u32 %v2031, %v2032
        %v2034 = vshll.u32 2102212464, %v2022
        %v2035 = vshrl.u32 920167782, %v2023
        %v2036 = vor.u32 %v2034, %v2035
        %v2037 = vshll.u32 920167782, %v2022
        %v2038 = vshrl.u32 1326507024, %v2023
        %v2039 = vor.u32 %v2037, %v2038
        %vm2040 = vcmp.lt.s32.totalorder %v2021, 1
        %vm2041 = vcmp.lt.s32.totalorder %v2021, 2
        %vm2042 = vcmp.lt.s32.totalorder %v2021, 3
        %vm2043 = vcmp.lt.s32.totalorder %v2021, 4
        %v2044 = vsel %vm2040, %v2024, %v2027
        %v2045 = vsel %vm2043, %v2033, 2102212464
        %v2046 = vsel %vm2042, %v2030, %v2045
        %v2047 = vsel %vm2041, %v2044, %v2046
        %v2048 = vsel %vm2040, %v2027, %v2030
        %v2049 = vsel %vm2043, %v2036, 920167782
        %v2050 = vsel %vm2042, %v2033, %v2049
        %v2051 = vsel %vm2041, %v2048, %v2050
        %v2052 = vsel %vm2040, %v2030, %v2033
        %v2053 = vsel %vm2043, %v2039, 1326507024
        %v2054 = vsel %vm2042, %v2036, %v2053
        %v2055 = vsel %vm2041, %v2052, %v2054
        %v2056 = vshll.u32 %v2016, 8
        %v2057 = vmul.u32.u64.compose %v2056, %v2055
        %v2058 = vextract.low.u32 %v2057
        %v2059 = vextract.high.u32 %v2057
        %v2060 = vmul.u32.u64.compose %v2056, %v2051
        %v2061 = vextract.low.u32 %v2060
        %v2062 = vextract.high.u32 %v2060
        %v2063 = vmul.u32 %v2056, %v2047
        %v2064 = vadd.s32 %v2059, %v2061
        %vm2065 = vc.u32 %v2059, %v2061
        %v2066 = vadd.s32 %v2062, 1
        %v2067 = vsel %vm2065, %v2066, %v2062
        %v2068 = vadd.s32 %v2063, %v2067
        %v2069 = vadd.s32 %v2068, 536870912
        %v2070 = vshrl.u32 %v2069, 30
        %v2071 = vshll.u32 %v2070, 30
        %v2072 = vsub.s32 %v2068, %v2071
        %vm2073 = vcmp.lt.s32.totalorder %v2072, 0
        %v2074 = vsub.s32 0, %v2072
        %v2075 = vsel %vm2073, %v2074, %v2072
        %v2076 = vclz %v2075
        %v2077 = vsub.s32 %v2076, 2
        %vm2078 = vcmp.gt.s32.totalorder 0, %v2077
        %v2079 = vsel %vm2078, 0, %v2077
        %v2080 = vsub.s32 32, %v2079
        %v2081 = vshll.u32 %v2072, %v2079
        %v2082 = vshrl.u32 %v2064, %v2080
        %v2083 = vor.u32 %v2081, %v2082
        %v2084 = vsub.s32 4294967266, %v2079
        %v2085 = vadd.s32 %v2084, 127
        %v2086 = vshll.u32 %v2085, 23
        %v2087 = vor.u32 4788187, %v2086
        %v2088 = vand.u32 2147483647, %v2087
        %v2090 = vcvt.s32.f32 %v2083
        %v2091 = vmul.f32 %v2090, %v2088
        %v2092 = vxor.u32 %v2091, 2147483648
        %v2093 = vsel %vm2010, %v2092, %v2091
        %v2094 = vsub.s32 4, %v2070
        %v2095 = vsel %vm2010, %v2094, %v2070
        %v2096 = vsel %vm2009, %v756, %v2093
        %v2097 = vsel %vm2009, 0, %v2095
        %v2098 = vcosq.f32.pop %v2096
        %v2099 = vsinq.f32.pop %v2096
        %vm2100 = vweird.f32 %v756
        %v2101 = vadd.s32 %v2097, 3
        %v2102 = vand.u32 %v2101, 3
        %vm2103 = vcmp.lt.s32.totalorder %v2102, 2
        %vm2104 = vcmp.eq.s32.totalorder %v2102, 0
        %v2105 = vxor.u32 %v2099, 2147483648
        %v2106 = vsel %vm2104, %v2098, %v2105
        %vm2107 = vcmp.eq.s32.totalorder %v2102, 2
        %v2108 = vxor.u32 %v2098, 2147483648
        %v2109 = vsel %vm2107, %v2108, %v2099
        %v2110 = vsel %vm2103, %v2106, %v2109
        %v2111 = vsel %vm2100, nan, %v2110
        %v2112 = vand.u32 2147483647, %v757
        %vm2113 = vcmp.le.f32.partialorder %v2112, 0.7853982
        %vm2114 = vcmp.lt.s32.totalorder %v757, 0
        %v2115 = vand.u32 %v757, 2139095040
        %v2116 = vshrl.u32 %v2115, 23
        %v2117 = vsub.s32 %v2116, 127
        %v2118 = vand.u32 2147483647, %v757
        %v2119 = vand.u32 %v2118, 8388607
        %v2120 = vor.u32 %v2119, 8388608
        %v2121 = vsub.s32 0, %v2120
        %v2122 = vadd.s32 %v2117, 1
        %vm2123 = vcmp.gt.s32.totalorder %v2122, 0
        %v2124 = vsel %vm2123, %v2122, 0
        %v2125 = vshrl.u32 %v2124, 5
        %v2126 = vand.u32 %v2124, 31
        %v2127 = vsub.s32 32, %v2126
        %v2128 = vshrl.u32 683565275, %v2127
        %v2129 = vshll.u32 683565275, %v2126
        %v2130 = vshrl.u32 2475754826, %v2127
        %v2131 = vor.u32 %v2129, %v2130
        %v2132 = vshll.u32 2475754826, %v2126
        %v2133 = vshrl.u32 2131351028, %v2127
        %v2134 = vor.u32 %v2132, %v2133
        %v2135 = vshll.u32 2131351028, %v2126
        %v2136 = vshrl.u32 2102212464, %v2127
        %v2137 = vor.u32 %v2135, %v2136
        %v2138 = vshll.u32 2102212464, %v2126
        %v2139 = vshrl.u32 920167782, %v2127
        %v2140 = vor.u32 %v2138, %v2139
        %v2141 = vshll.u32 920167782, %v2126
        %v2142 = vshrl.u32 1326507024, %v2127
        %v2143 = vor.u32 %v2141, %v2142
        %vm2144 = vcmp.lt.s32.totalorder %v2125, 1
        %vm2145 = vcmp.lt.s32.totalorder %v2125, 2
        %vm2146 = vcmp.lt.s32.totalorder %v2125, 3
        %vm2147 = vcmp.lt.s32.totalorder %v2125, 4
        %v2148 = vsel %vm2144, %v2128, %v2131
        %v2149 = vsel %vm2147, %v2137, 2102212464
        %v2150 = vsel %vm2146, %v2134, %v2149
        %v2151 = vsel %vm2145, %v2148, %v2150
        %v2152 = vsel %vm2144, %v2131, %v2134
        %v2153 = vsel %vm2147, %v2140, 920167782
        %v2154 = vsel %vm2146, %v2137, %v2153
        %v2155 = vsel %vm2145, %v2152, %v2154
        %v2156 = vsel %vm2144, %v2134, %v2137
        %v2157 = vsel %vm2147, %v2143, 1326507024
        %v2158 = vsel %vm2146, %v2140, %v2157
        %v2159 = vsel %vm2145, %v2156, %v2158
        %v2160 = vshll.u32 %v2120, 8
        %v2161 = vmul.u32.u64.compose %v2160, %v2159
        %v2162 = vextract.low.u32 %v2161
        %v2163 = vextract.high.u32 %v2161
        %v2164 = vmul.u32.u64.compose %v2160, %v2155
        %v2165 = vextract.low.u32 %v2164
        %v2166 = vextract.high.u32 %v2164
        %v2167 = vmul.u32 %v2160, %v2151
        %v2168 = vadd.s32 %v2163, %v2165
        %vm2169 = vc.u32 %v2163, %v2165
        %v2170 = vadd.s32 %v2166, 1
        %v2171 = vsel %vm2169, %v2170, %v2166
        %v2172 = vadd.s32 %v2167, %v2171
        %v2173 = vadd.s32 %v2172, 536870912
        %v2174 = vshrl.u32 %v2173, 30
        %v2175 = vshll.u32 %v2174, 30
        %v2176 = vsub.s32 %v2172, %v2175
        %vm2177 = vcmp.lt.s32.totalorder %v2176, 0
        %v2178 = vsub.s32 0, %v2176
        %v2179 = vsel %vm2177, %v2178, %v2176
        %v2180 = vclz %v2179
        %v2181 = vsub.s32 %v2180, 2
        %vm2182 = vcmp.gt.s32.totalorder 0, %v2181
        %v2183 = vsel %vm2182, 0, %v2181
        %v2184 = vsub.s32 32, %v2183
        %v2185 = vshll.u32 %v2176, %v2183
        %v2186 = vshrl.u32 %v2168, %v2184
        %v2187 = vor.u32 %v2185, %v2186
        %v2188 = vsub.s32 4294967266, %v2183
        %v2189 = vadd.s32 %v2188, 127
        %v2190 = vshll.u32 %v2189, 23
        %v2191 = vor.u32 4788187, %v2190
        %v2192 = vand.u32 2147483647, %v2191
        %v2194 = vcvt.s32.f32 %v2187
        %v2195 = vmul.f32 %v2194, %v2192
        %v2196 = vxor.u32 %v2195, 2147483648
        %v2197 = vsel %vm2114, %v2196, %v2195
        %v2198 = vsub.s32 4, %v2174
        %v2199 = vsel %vm2114, %v2198, %v2174
        %v2200 = vsel %vm2113, %v757, %v2197
        %v2201 = vsel %vm2113, 0, %v2199
        %v2202 = vcosq.f32.pop %v2200
        %v2203 = vsinq.f32.pop %v2200
        %vm2204 = vweird.f32 %v757
        %v2205 = vadd.s32 %v2201, 3
        %v2206 = vand.u32 %v2205, 3
        %vm2207 = vcmp.lt.s32.totalorder %v2206, 2
        %vm2208 = vcmp.eq.s32.totalorder %v2206, 0
        %v2209 = vxor.u32 %v2203, 2147483648
        %v2210 = vsel %vm2208, %v2202, %v2209
        %vm2211 = vcmp.eq.s32.totalorder %v2206, 2
        %v2212 = vxor.u32 %v2202, 2147483648
        %v2213 = vsel %vm2211, %v2212, %v2203
        %v2214 = vsel %vm2207, %v2210, %v2213
        %v2215 = vsel %vm2204, nan, %v2214
        %v2216 = vand.u32 2147483647, %v758
        %vm2217 = vcmp.le.f32.partialorder %v2216, 0.7853982
        %vm2218 = vcmp.lt.s32.totalorder %v758, 0
        %v2219 = vand.u32 %v758, 2139095040
        %v2220 = vshrl.u32 %v2219, 23
        %v2221 = vsub.s32 %v2220, 127
        %v2222 = vand.u32 2147483647, %v758
        %v2223 = vand.u32 %v2222, 8388607
        %v2224 = vor.u32 %v2223, 8388608
        %v2225 = vsub.s32 0, %v2224
        %v2226 = vadd.s32 %v2221, 1
        %vm2227 = vcmp.gt.s32.totalorder %v2226, 0
        %v2228 = vsel %vm2227, %v2226, 0
        %v2229 = vshrl.u32 %v2228, 5
        %v2230 = vand.u32 %v2228, 31
        %v2231 = vsub.s32 32, %v2230
        %v2232 = vshrl.u32 683565275, %v2231
        %v2233 = vshll.u32 683565275, %v2230
        %v2234 = vshrl.u32 2475754826, %v2231
        %v2235 = vor.u32 %v2233, %v2234
        %v2236 = vshll.u32 2475754826, %v2230
        %v2237 = vshrl.u32 2131351028, %v2231
        %v2238 = vor.u32 %v2236, %v2237
        %v2239 = vshll.u32 2131351028, %v2230
        %v2240 = vshrl.u32 2102212464, %v2231
        %v2241 = vor.u32 %v2239, %v2240
        %v2242 = vshll.u32 2102212464, %v2230
        %v2243 = vshrl.u32 920167782, %v2231
        %v2244 = vor.u32 %v2242, %v2243
        %v2245 = vshll.u32 920167782, %v2230
        %v2246 = vshrl.u32 1326507024, %v2231
        %v2247 = vor.u32 %v2245, %v2246
        %vm2248 = vcmp.lt.s32.totalorder %v2229, 1
        %vm2249 = vcmp.lt.s32.totalorder %v2229, 2
        %vm2250 = vcmp.lt.s32.totalorder %v2229, 3
        %vm2251 = vcmp.lt.s32.totalorder %v2229, 4
        %v2252 = vsel %vm2248, %v2232, %v2235
        %v2253 = vsel %vm2251, %v2241, 2102212464
        %v2254 = vsel %vm2250, %v2238, %v2253
        %v2255 = vsel %vm2249, %v2252, %v2254
        %v2256 = vsel %vm2248, %v2235, %v2238
        %v2257 = vsel %vm2251, %v2244, 920167782
        %v2258 = vsel %vm2250, %v2241, %v2257
        %v2259 = vsel %vm2249, %v2256, %v2258
        %v2260 = vsel %vm2248, %v2238, %v2241
        %v2261 = vsel %vm2251, %v2247, 1326507024
        %v2262 = vsel %vm2250, %v2244, %v2261
        %v2263 = vsel %vm2249, %v2260, %v2262
        %v2264 = vshll.u32 %v2224, 8
        %v2265 = vmul.u32.u64.compose %v2264, %v2263
        %v2266 = vextract.low.u32 %v2265
        %v2267 = vextract.high.u32 %v2265
        %v2268 = vmul.u32.u64.compose %v2264, %v2259
        %v2269 = vextract.low.u32 %v2268
        %v2270 = vextract.high.u32 %v2268
        %v2271 = vmul.u32 %v2264, %v2255
        %v2272 = vadd.s32 %v2267, %v2269
        %vm2273 = vc.u32 %v2267, %v2269
        %v2274 = vadd.s32 %v2270, 1
        %v2275 = vsel %vm2273, %v2274, %v2270
        %v2276 = vadd.s32 %v2271, %v2275
        %v2277 = vadd.s32 %v2276, 536870912
        %v2278 = vshrl.u32 %v2277, 30
        %v2279 = vshll.u32 %v2278, 30
        %v2280 = vsub.s32 %v2276, %v2279
        %vm2281 = vcmp.lt.s32.totalorder %v2280, 0
        %v2282 = vsub.s32 0, %v2280
        %v2283 = vsel %vm2281, %v2282, %v2280
        %v2284 = vclz %v2283
        %v2285 = vsub.s32 %v2284, 2
        %vm2286 = vcmp.gt.s32.totalorder 0, %v2285
        %v2287 = vsel %vm2286, 0, %v2285
        %v2288 = vsub.s32 32, %v2287
        %v2289 = vshll.u32 %v2280, %v2287
        %v2290 = vshrl.u32 %v2272, %v2288
        %v2291 = vor.u32 %v2289, %v2290
        %v2292 = vsub.s32 4294967266, %v2287
        %v2293 = vadd.s32 %v2292, 127
        %v2294 = vshll.u32 %v2293, 23
        %v2295 = vor.u32 4788187, %v2294
        %v2296 = vand.u32 2147483647, %v2295
        %v2298 = vcvt.s32.f32 %v2291
        %v2299 = vmul.f32 %v2298, %v2296
        %v2300 = vxor.u32 %v2299, 2147483648
        %v2301 = vsel %vm2218, %v2300, %v2299
        %v2302 = vsub.s32 4, %v2278
        %v2303 = vsel %vm2218, %v2302, %v2278
        %v2304 = vsel %vm2217, %v758, %v2301
        %v2305 = vsel %vm2217, 0, %v2303
        %v2306 = vcosq.f32.pop %v2304
        %v2307 = vsinq.f32.pop %v2304
        %vm2308 = vweird.f32 %v758
        %v2309 = vadd.s32 %v2305, 3
        %v2310 = vand.u32 %v2309, 3
        %vm2311 = vcmp.lt.s32.totalorder %v2310, 2
        %vm2312 = vcmp.eq.s32.totalorder %v2310, 0
        %v2313 = vxor.u32 %v2307, 2147483648
        %v2314 = vsel %vm2312, %v2306, %v2313
        %vm2315 = vcmp.eq.s32.totalorder %v2310, 2
        %v2316 = vxor.u32 %v2306, 2147483648
        %v2317 = vsel %vm2315, %v2316, %v2307
        %v2318 = vsel %vm2311, %v2314, %v2317
        %v2319 = vsel %vm2308, nan, %v2318
        %v2320 = vand.u32 2147483647, %v759
        %vm2321 = vcmp.le.f32.partialorder %v2320, 0.7853982
        %vm2322 = vcmp.lt.s32.totalorder %v759, 0
        %v2323 = vand.u32 %v759, 2139095040
        %v2324 = vshrl.u32 %v2323, 23
        %v2325 = vsub.s32 %v2324, 127
        %v2326 = vand.u32 2147483647, %v759
        %v2327 = vand.u32 %v2326, 8388607
        %v2328 = vor.u32 %v2327, 8388608
        %v2329 = vsub.s32 0, %v2328
        %v2330 = vadd.s32 %v2325, 1
        %vm2331 = vcmp.gt.s32.totalorder %v2330, 0
        %v2332 = vsel %vm2331, %v2330, 0
        %v2333 = vshrl.u32 %v2332, 5
        %v2334 = vand.u32 %v2332, 31
        %v2335 = vsub.s32 32, %v2334
        %v2336 = vshrl.u32 683565275, %v2335
        %v2337 = vshll.u32 683565275, %v2334
        %v2338 = vshrl.u32 2475754826, %v2335
        %v2339 = vor.u32 %v2337, %v2338
        %v2340 = vshll.u32 2475754826, %v2334
        %v2341 = vshrl.u32 2131351028, %v2335
        %v2342 = vor.u32 %v2340, %v2341
        %v2343 = vshll.u32 2131351028, %v2334
        %v2344 = vshrl.u32 2102212464, %v2335
        %v2345 = vor.u32 %v2343, %v2344
        %v2346 = vshll.u32 2102212464, %v2334
        %v2347 = vshrl.u32 920167782, %v2335
        %v2348 = vor.u32 %v2346, %v2347
        %v2349 = vshll.u32 920167782, %v2334
        %v2350 = vshrl.u32 1326507024, %v2335
        %v2351 = vor.u32 %v2349, %v2350
        %vm2352 = vcmp.lt.s32.totalorder %v2333, 1
        %vm2353 = vcmp.lt.s32.totalorder %v2333, 2
        %vm2354 = vcmp.lt.s32.totalorder %v2333, 3
        %vm2355 = vcmp.lt.s32.totalorder %v2333, 4
        %v2356 = vsel %vm2352, %v2336, %v2339
        %v2357 = vsel %vm2355, %v2345, 2102212464
        %v2358 = vsel %vm2354, %v2342, %v2357
        %v2359 = vsel %vm2353, %v2356, %v2358
        %v2360 = vsel %vm2352, %v2339, %v2342
        %v2361 = vsel %vm2355, %v2348, 920167782
        %v2362 = vsel %vm2354, %v2345, %v2361
        %v2363 = vsel %vm2353, %v2360, %v2362
        %v2364 = vsel %vm2352, %v2342, %v2345
        %v2365 = vsel %vm2355, %v2351, 1326507024
        %v2366 = vsel %vm2354, %v2348, %v2365
        %v2367 = vsel %vm2353, %v2364, %v2366
        %v2368 = vshll.u32 %v2328, 8
        %v2369 = vmul.u32.u64.compose %v2368, %v2367
        %v2370 = vextract.low.u32 %v2369
        %v2371 = vextract.high.u32 %v2369
        %v2372 = vmul.u32.u64.compose %v2368, %v2363
        %v2373 = vextract.low.u32 %v2372
        %v2374 = vextract.high.u32 %v2372
        %v2375 = vmul.u32 %v2368, %v2359
        %v2376 = vadd.s32 %v2371, %v2373
        %vm2377 = vc.u32 %v2371, %v2373
        %v2378 = vadd.s32 %v2374, 1
        %v2379 = vsel %vm2377, %v2378, %v2374
        %v2380 = vadd.s32 %v2375, %v2379
        %v2381 = vadd.s32 %v2380, 536870912
        %v2382 = vshrl.u32 %v2381, 30
        %v2383 = vshll.u32 %v2382, 30
        %v2384 = vsub.s32 %v2380, %v2383
        %vm2385 = vcmp.lt.s32.totalorder %v2384, 0
        %v2386 = vsub.s32 0, %v2384
        %v2387 = vsel %vm2385, %v2386, %v2384
        %v2388 = vclz %v2387
        %v2389 = vsub.s32 %v2388, 2
        %vm2390 = vcmp.gt.s32.totalorder 0, %v2389
        %v2391 = vsel %vm2390, 0, %v2389
        %v2392 = vsub.s32 32, %v2391
        %v2393 = vshll.u32 %v2384, %v2391
        %v2394 = vshrl.u32 %v2376, %v2392
        %v2395 = vor.u32 %v2393, %v2394
        %v2396 = vsub.s32 4294967266, %v2391
        %v2397 = vadd.s32 %v2396, 127
        %v2398 = vshll.u32 %v2397, 23
        %v2399 = vor.u32 4788187, %v2398
        %v2400 = vand.u32 2147483647, %v2399
        %v2402 = vcvt.s32.f32 %v2395
        %v2403 = vmul.f32 %v2402, %v2400
        %v2404 = vxor.u32 %v2403, 2147483648
        %v2405 = vsel %vm2322, %v2404, %v2403
        %v2406 = vsub.s32 4, %v2382
        %v2407 = vsel %vm2322, %v2406, %v2382
        %v2408 = vsel %vm2321, %v759, %v2405
        %v2409 = vsel %vm2321, 0, %v2407
        %v2410 = vcosq.f32.pop %v2408
        %v2411 = vsinq.f32.pop %v2408
        %vm2412 = vweird.f32 %v759
        %v2413 = vadd.s32 %v2409, 3
        %v2414 = vand.u32 %v2413, 3
        %vm2415 = vcmp.lt.s32.totalorder %v2414, 2
        %vm2416 = vcmp.eq.s32.totalorder %v2414, 0
        %v2417 = vxor.u32 %v2411, 2147483648
        %v2418 = vsel %vm2416, %v2410, %v2417
        %vm2419 = vcmp.eq.s32.totalorder %v2414, 2
        %v2420 = vxor.u32 %v2410, 2147483648
        %v2421 = vsel %vm2419, %v2420, %v2411
        %v2422 = vsel %vm2415, %v2418, %v2421
        %v2423 = vsel %vm2412, nan, %v2422
        %v2424 = vpack.c.bf16 %v967, %v863
        %v2425 = vpack.c.bf16 %v1175, %v1071
        %v2426 = vpack.c.bf16 %v1383, %v1279
        %v2427 = vpack.c.bf16 %v1591, %v1487
        %v2428 = vpack.c.bf16 %v1799, %v1695
        %v2429 = vpack.c.bf16 %v2007, %v1903
        %v2430 = vpack.c.bf16 %v2215, %v2111
        %v2431 = vpack.c.bf16 %v2423, %v2319
        %v2432 = vand.u32 2147483647, %v744
        %vm2433 = vcmp.le.f32.partialorder %v2432, 0.7853982
        %vm2434 = vcmp.lt.s32.totalorder %v744, 0
        %v2435 = vand.u32 %v744, 2139095040
        %v2436 = vshrl.u32 %v2435, 23
        %v2437 = vsub.s32 %v2436, 127
        %v2438 = vand.u32 2147483647, %v744
        %v2439 = vand.u32 %v2438, 8388607
        %v2440 = vor.u32 %v2439, 8388608
        %v2441 = vsub.s32 0, %v2440
        %v2442 = vadd.s32 %v2437, 1
        %vm2443 = vcmp.gt.s32.totalorder %v2442, 0
        %v2444 = vsel %vm2443, %v2442, 0
        %v2445 = vshrl.u32 %v2444, 5
        %v2446 = vand.u32 %v2444, 31
        %v2447 = vsub.s32 32, %v2446
        %v2448 = vshrl.u32 683565275, %v2447
        %v2449 = vshll.u32 683565275, %v2446
        %v2450 = vshrl.u32 2475754826, %v2447
        %v2451 = vor.u32 %v2449, %v2450
        %v2452 = vshll.u32 2475754826, %v2446
        %v2453 = vshrl.u32 2131351028, %v2447
        %v2454 = vor.u32 %v2452, %v2453
        %v2455 = vshll.u32 2131351028, %v2446
        %v2456 = vshrl.u32 2102212464, %v2447
        %v2457 = vor.u32 %v2455, %v2456
        %v2458 = vshll.u32 2102212464, %v2446
        %v2459 = vshrl.u32 920167782, %v2447
        %v2460 = vor.u32 %v2458, %v2459
        %v2461 = vshll.u32 920167782, %v2446
        %v2462 = vshrl.u32 1326507024, %v2447
        %v2463 = vor.u32 %v2461, %v2462
        %vm2464 = vcmp.lt.s32.totalorder %v2445, 1
        %vm2465 = vcmp.lt.s32.totalorder %v2445, 2
        %vm2466 = vcmp.lt.s32.totalorder %v2445, 3
        %vm2467 = vcmp.lt.s32.totalorder %v2445, 4
        %v2468 = vsel %vm2464, %v2448, %v2451
        %v2469 = vsel %vm2467, %v2457, 2102212464
        %v2470 = vsel %vm2466, %v2454, %v2469
        %v2471 = vsel %vm2465, %v2468, %v2470
        %v2472 = vsel %vm2464, %v2451, %v2454
        %v2473 = vsel %vm2467, %v2460, 920167782
        %v2474 = vsel %vm2466, %v2457, %v2473
        %v2475 = vsel %vm2465, %v2472, %v2474
        %v2476 = vsel %vm2464, %v2454, %v2457
        %v2477 = vsel %vm2467, %v2463, 1326507024
        %v2478 = vsel %vm2466, %v2460, %v2477
        %v2479 = vsel %vm2465, %v2476, %v2478
        %v2480 = vshll.u32 %v2440, 8
        %v2481 = vmul.u32.u64.compose %v2480, %v2479
        %v2482 = vextract.low.u32 %v2481
        %v2483 = vextract.high.u32 %v2481
        %v2484 = vmul.u32.u64.compose %v2480, %v2475
        %v2485 = vextract.low.u32 %v2484
        %v2486 = vextract.high.u32 %v2484
        %v2487 = vmul.u32 %v2480, %v2471
        %v2488 = vadd.s32 %v2483, %v2485
        %vm2489 = vc.u32 %v2483, %v2485
        %v2490 = vadd.s32 %v2486, 1
        %v2491 = vsel %vm2489, %v2490, %v2486
        %v2492 = vadd.s32 %v2487, %v2491
        %v2493 = vadd.s32 %v2492, 536870912
        %v2494 = vshrl.u32 %v2493, 30
        %v2495 = vshll.u32 %v2494, 30
        %v2496 = vsub.s32 %v2492, %v2495
        %vm2497 = vcmp.lt.s32.totalorder %v2496, 0
        %v2498 = vsub.s32 0, %v2496
        %v2499 = vsel %vm2497, %v2498, %v2496
        %v2500 = vclz %v2499
        %v2501 = vsub.s32 %v2500, 2
        %vm2502 = vcmp.gt.s32.totalorder 0, %v2501
        %v2503 = vsel %vm2502, 0, %v2501
        %v2504 = vsub.s32 32, %v2503
        %v2505 = vshll.u32 %v2496, %v2503
        %v2506 = vshrl.u32 %v2488, %v2504
        %v2507 = vor.u32 %v2505, %v2506
        %v2508 = vsub.s32 4294967266, %v2503
        %v2509 = vadd.s32 %v2508, 127
        %v2510 = vshll.u32 %v2509, 23
        %v2511 = vor.u32 4788187, %v2510
        %v2512 = vand.u32 2147483647, %v2511
        %v2514 = vcvt.s32.f32 %v2507
        %v2515 = vmul.f32 %v2514, %v2512
        %v2516 = vxor.u32 %v2515, 2147483648
        %v2517 = vsel %vm2434, %v2516, %v2515
        %v2518 = vsub.s32 4, %v2494
        %v2519 = vsel %vm2434, %v2518, %v2494
        %v2520 = vsel %vm2433, %v744, %v2517
        %v2521 = vsel %vm2433, 0, %v2519
        %v2522 = vcosq.f32.pop %v2520
        %v2523 = vsinq.f32.pop %v2520
        %vm2524 = vweird.f32 %v744
        %v2525 = vand.u32 %v2521, 3
        %vm2526 = vcmp.lt.s32.totalorder %v2525, 2
        %vm2527 = vcmp.eq.s32.totalorder %v2525, 0
        %v2528 = vxor.u32 %v2523, 2147483648
        %v2529 = vsel %vm2527, %v2522, %v2528
        %vm2530 = vcmp.eq.s32.totalorder %v2525, 2
        %v2531 = vxor.u32 %v2522, 2147483648
        %v2532 = vsel %vm2530, %v2531, %v2523
        %v2533 = vsel %vm2526, %v2529, %v2532
        %v2534 = vsel %vm2524, nan, %v2533
        %v2535 = vand.u32 2147483647, %v745
        %vm2536 = vcmp.le.f32.partialorder %v2535, 0.7853982
        %vm2537 = vcmp.lt.s32.totalorder %v745, 0
        %v2538 = vand.u32 %v745, 2139095040
        %v2539 = vshrl.u32 %v2538, 23
        %v2540 = vsub.s32 %v2539, 127
        %v2541 = vand.u32 2147483647, %v745
        %v2542 = vand.u32 %v2541, 8388607
        %v2543 = vor.u32 %v2542, 8388608
        %v2544 = vsub.s32 0, %v2543
        %v2545 = vadd.s32 %v2540, 1
        %vm2546 = vcmp.gt.s32.totalorder %v2545, 0
        %v2547 = vsel %vm2546, %v2545, 0
        %v2548 = vshrl.u32 %v2547, 5
        %v2549 = vand.u32 %v2547, 31
        %v2550 = vsub.s32 32, %v2549
        %v2551 = vshrl.u32 683565275, %v2550
        %v2552 = vshll.u32 683565275, %v2549
        %v2553 = vshrl.u32 2475754826, %v2550
        %v2554 = vor.u32 %v2552, %v2553
        %v2555 = vshll.u32 2475754826, %v2549
        %v2556 = vshrl.u32 2131351028, %v2550
        %v2557 = vor.u32 %v2555, %v2556
        %v2558 = vshll.u32 2131351028, %v2549
        %v2559 = vshrl.u32 2102212464, %v2550
        %v2560 = vor.u32 %v2558, %v2559
        %v2561 = vshll.u32 2102212464, %v2549
        %v2562 = vshrl.u32 920167782, %v2550
        %v2563 = vor.u32 %v2561, %v2562
        %v2564 = vshll.u32 920167782, %v2549
        %v2565 = vshrl.u32 1326507024, %v2550
        %v2566 = vor.u32 %v2564, %v2565
        %vm2567 = vcmp.lt.s32.totalorder %v2548, 1
        %vm2568 = vcmp.lt.s32.totalorder %v2548, 2
        %vm2569 = vcmp.lt.s32.totalorder %v2548, 3
        %vm2570 = vcmp.lt.s32.totalorder %v2548, 4
        %v2571 = vsel %vm2567, %v2551, %v2554
        %v2572 = vsel %vm2570, %v2560, 2102212464
        %v2573 = vsel %vm2569, %v2557, %v2572
        %v2574 = vsel %vm2568, %v2571, %v2573
        %v2575 = vsel %vm2567, %v2554, %v2557
        %v2576 = vsel %vm2570, %v2563, 920167782
        %v2577 = vsel %vm2569, %v2560, %v2576
        %v2578 = vsel %vm2568, %v2575, %v2577
        %v2579 = vsel %vm2567, %v2557, %v2560
        %v2580 = vsel %vm2570, %v2566, 1326507024
        %v2581 = vsel %vm2569, %v2563, %v2580
        %v2582 = vsel %vm2568, %v2579, %v2581
        %v2583 = vshll.u32 %v2543, 8
        %v2584 = vmul.u32.u64.compose %v2583, %v2582
        %v2585 = vextract.low.u32 %v2584
        %v2586 = vextract.high.u32 %v2584
        %v2587 = vmul.u32.u64.compose %v2583, %v2578
        %v2588 = vextract.low.u32 %v2587
        %v2589 = vextract.high.u32 %v2587
        %v2590 = vmul.u32 %v2583, %v2574
        %v2591 = vadd.s32 %v2586, %v2588
        %vm2592 = vc.u32 %v2586, %v2588
        %v2593 = vadd.s32 %v2589, 1
        %v2594 = vsel %vm2592, %v2593, %v2589
        %v2595 = vadd.s32 %v2590, %v2594
        %v2596 = vadd.s32 %v2595, 536870912
        %v2597 = vshrl.u32 %v2596, 30
        %v2598 = vshll.u32 %v2597, 30
        %v2599 = vsub.s32 %v2595, %v2598
        %vm2600 = vcmp.lt.s32.totalorder %v2599, 0
        %v2601 = vsub.s32 0, %v2599
        %v2602 = vsel %vm2600, %v2601, %v2599
        %v2603 = vclz %v2602
        %v2604 = vsub.s32 %v2603, 2
        %vm2605 = vcmp.gt.s32.totalorder 0, %v2604
        %v2606 = vsel %vm2605, 0, %v2604
        %v2607 = vsub.s32 32, %v2606
        %v2608 = vshll.u32 %v2599, %v2606
        %v2609 = vshrl.u32 %v2591, %v2607
        %v2610 = vor.u32 %v2608, %v2609
        %v2611 = vsub.s32 4294967266, %v2606
        %v2612 = vadd.s32 %v2611, 127
        %v2613 = vshll.u32 %v2612, 23
        %v2614 = vor.u32 4788187, %v2613
        %v2615 = vand.u32 2147483647, %v2614
        %v2617 = vcvt.s32.f32 %v2610
        %v2618 = vmul.f32 %v2617, %v2615
        %v2619 = vxor.u32 %v2618, 2147483648
        %v2620 = vsel %vm2537, %v2619, %v2618
        %v2621 = vsub.s32 4, %v2597
        %v2622 = vsel %vm2537, %v2621, %v2597
        %v2623 = vsel %vm2536, %v745, %v2620
        %v2624 = vsel %vm2536, 0, %v2622
        %v2625 = vcosq.f32.pop %v2623
        %v2626 = vsinq.f32.pop %v2623
        %vm2627 = vweird.f32 %v745
        %v2628 = vand.u32 %v2624, 3
        %vm2629 = vcmp.lt.s32.totalorder %v2628, 2
        %vm2630 = vcmp.eq.s32.totalorder %v2628, 0
        %v2631 = vxor.u32 %v2626, 2147483648
        %v2632 = vsel %vm2630, %v2625, %v2631
        %vm2633 = vcmp.eq.s32.totalorder %v2628, 2
        %v2634 = vxor.u32 %v2625, 2147483648
        %v2635 = vsel %vm2633, %v2634, %v2626
        %v2636 = vsel %vm2629, %v2632, %v2635
        %v2637 = vsel %vm2627, nan, %v2636
        %v2638 = vand.u32 2147483647, %v746
        %vm2639 = vcmp.le.f32.partialorder %v2638, 0.7853982
        %vm2640 = vcmp.lt.s32.totalorder %v746, 0
        %v2641 = vand.u32 %v746, 2139095040
        %v2642 = vshrl.u32 %v2641, 23
        %v2643 = vsub.s32 %v2642, 127
        %v2644 = vand.u32 2147483647, %v746
        %v2645 = vand.u32 %v2644, 8388607
        %v2646 = vor.u32 %v2645, 8388608
        %v2647 = vsub.s32 0, %v2646
        %v2648 = vadd.s32 %v2643, 1
        %vm2649 = vcmp.gt.s32.totalorder %v2648, 0
        %v2650 = vsel %vm2649, %v2648, 0
        %v2651 = vshrl.u32 %v2650, 5
        %v2652 = vand.u32 %v2650, 31
        %v2653 = vsub.s32 32, %v2652
        %v2654 = vshrl.u32 683565275, %v2653
        %v2655 = vshll.u32 683565275, %v2652
        %v2656 = vshrl.u32 2475754826, %v2653
        %v2657 = vor.u32 %v2655, %v2656
        %v2658 = vshll.u32 2475754826, %v2652
        %v2659 = vshrl.u32 2131351028, %v2653
        %v2660 = vor.u32 %v2658, %v2659
        %v2661 = vshll.u32 2131351028, %v2652
        %v2662 = vshrl.u32 2102212464, %v2653
        %v2663 = vor.u32 %v2661, %v2662
        %v2664 = vshll.u32 2102212464, %v2652
        %v2665 = vshrl.u32 920167782, %v2653
        %v2666 = vor.u32 %v2664, %v2665
        %v2667 = vshll.u32 920167782, %v2652
        %v2668 = vshrl.u32 1326507024, %v2653
        %v2669 = vor.u32 %v2667, %v2668
        %vm2670 = vcmp.lt.s32.totalorder %v2651, 1
        %vm2671 = vcmp.lt.s32.totalorder %v2651, 2
        %vm2672 = vcmp.lt.s32.totalorder %v2651, 3
        %vm2673 = vcmp.lt.s32.totalorder %v2651, 4
        %v2674 = vsel %vm2670, %v2654, %v2657
        %v2675 = vsel %vm2673, %v2663, 2102212464
        %v2676 = vsel %vm2672, %v2660, %v2675
        %v2677 = vsel %vm2671, %v2674, %v2676
        %v2678 = vsel %vm2670, %v2657, %v2660
        %v2679 = vsel %vm2673, %v2666, 920167782
        %v2680 = vsel %vm2672, %v2663, %v2679
        %v2681 = vsel %vm2671, %v2678, %v2680
        %v2682 = vsel %vm2670, %v2660, %v2663
        %v2683 = vsel %vm2673, %v2669, 1326507024
        %v2684 = vsel %vm2672, %v2666, %v2683
        %v2685 = vsel %vm2671, %v2682, %v2684
        %v2686 = vshll.u32 %v2646, 8
        %v2687 = vmul.u32.u64.compose %v2686, %v2685
        %v2688 = vextract.low.u32 %v2687
        %v2689 = vextract.high.u32 %v2687
        %v2690 = vmul.u32.u64.compose %v2686, %v2681
        %v2691 = vextract.low.u32 %v2690
        %v2692 = vextract.high.u32 %v2690
        %v2693 = vmul.u32 %v2686, %v2677
        %v2694 = vadd.s32 %v2689, %v2691
        %vm2695 = vc.u32 %v2689, %v2691
        %v2696 = vadd.s32 %v2692, 1
        %v2697 = vsel %vm2695, %v2696, %v2692
        %v2698 = vadd.s32 %v2693, %v2697
        %v2699 = vadd.s32 %v2698, 536870912
        %v2700 = vshrl.u32 %v2699, 30
        %v2701 = vshll.u32 %v2700, 30
        %v2702 = vsub.s32 %v2698, %v2701
        %vm2703 = vcmp.lt.s32.totalorder %v2702, 0
        %v2704 = vsub.s32 0, %v2702
        %v2705 = vsel %vm2703, %v2704, %v2702
        %v2706 = vclz %v2705
        %v2707 = vsub.s32 %v2706, 2
        %vm2708 = vcmp.gt.s32.totalorder 0, %v2707
        %v2709 = vsel %vm2708, 0, %v2707
        %v2710 = vsub.s32 32, %v2709
        %v2711 = vshll.u32 %v2702, %v2709
        %v2712 = vshrl.u32 %v2694, %v2710
        %v2713 = vor.u32 %v2711, %v2712
        %v2714 = vsub.s32 4294967266, %v2709
        %v2715 = vadd.s32 %v2714, 127
        %v2716 = vshll.u32 %v2715, 23
        %v2717 = vor.u32 4788187, %v2716
        %v2718 = vand.u32 2147483647, %v2717
        %v2720 = vcvt.s32.f32 %v2713
        %v2721 = vmul.f32 %v2720, %v2718
        %v2722 = vxor.u32 %v2721, 2147483648
        %v2723 = vsel %vm2640, %v2722, %v2721
        %v2724 = vsub.s32 4, %v2700
        %v2725 = vsel %vm2640, %v2724, %v2700
        %v2726 = vsel %vm2639, %v746, %v2723
        %v2727 = vsel %vm2639, 0, %v2725
        %v2728 = vcosq.f32.pop %v2726
        %v2729 = vsinq.f32.pop %v2726
        %vm2730 = vweird.f32 %v746
        %v2731 = vand.u32 %v2727, 3
        %vm2732 = vcmp.lt.s32.totalorder %v2731, 2
        %vm2733 = vcmp.eq.s32.totalorder %v2731, 0
        %v2734 = vxor.u32 %v2729, 2147483648
        %v2735 = vsel %vm2733, %v2728, %v2734
        %vm2736 = vcmp.eq.s32.totalorder %v2731, 2
        %v2737 = vxor.u32 %v2728, 2147483648
        %v2738 = vsel %vm2736, %v2737, %v2729
        %v2739 = vsel %vm2732, %v2735, %v2738
        %v2740 = vsel %vm2730, nan, %v2739
        %v2741 = vand.u32 2147483647, %v747
        %vm2742 = vcmp.le.f32.partialorder %v2741, 0.7853982
        %vm2743 = vcmp.lt.s32.totalorder %v747, 0
        %v2744 = vand.u32 %v747, 2139095040
        %v2745 = vshrl.u32 %v2744, 23
        %v2746 = vsub.s32 %v2745, 127
        %v2747 = vand.u32 2147483647, %v747
        %v2748 = vand.u32 %v2747, 8388607
        %v2749 = vor.u32 %v2748, 8388608
        %v2750 = vsub.s32 0, %v2749
        %v2751 = vadd.s32 %v2746, 1
        %vm2752 = vcmp.gt.s32.totalorder %v2751, 0
        %v2753 = vsel %vm2752, %v2751, 0
        %v2754 = vshrl.u32 %v2753, 5
        %v2755 = vand.u32 %v2753, 31
        %v2756 = vsub.s32 32, %v2755
        %v2757 = vshrl.u32 683565275, %v2756
        %v2758 = vshll.u32 683565275, %v2755
        %v2759 = vshrl.u32 2475754826, %v2756
        %v2760 = vor.u32 %v2758, %v2759
        %v2761 = vshll.u32 2475754826, %v2755
        %v2762 = vshrl.u32 2131351028, %v2756
        %v2763 = vor.u32 %v2761, %v2762
        %v2764 = vshll.u32 2131351028, %v2755
        %v2765 = vshrl.u32 2102212464, %v2756
        %v2766 = vor.u32 %v2764, %v2765
        %v2767 = vshll.u32 2102212464, %v2755
        %v2768 = vshrl.u32 920167782, %v2756
        %v2769 = vor.u32 %v2767, %v2768
        %v2770 = vshll.u32 920167782, %v2755
        %v2771 = vshrl.u32 1326507024, %v2756
        %v2772 = vor.u32 %v2770, %v2771
        %vm2773 = vcmp.lt.s32.totalorder %v2754, 1
        %vm2774 = vcmp.lt.s32.totalorder %v2754, 2
        %vm2775 = vcmp.lt.s32.totalorder %v2754, 3
        %vm2776 = vcmp.lt.s32.totalorder %v2754, 4
        %v2777 = vsel %vm2773, %v2757, %v2760
        %v2778 = vsel %vm2776, %v2766, 2102212464
        %v2779 = vsel %vm2775, %v2763, %v2778
        %v2780 = vsel %vm2774, %v2777, %v2779
        %v2781 = vsel %vm2773, %v2760, %v2763
        %v2782 = vsel %vm2776, %v2769, 920167782
        %v2783 = vsel %vm2775, %v2766, %v2782
        %v2784 = vsel %vm2774, %v2781, %v2783
        %v2785 = vsel %vm2773, %v2763, %v2766
        %v2786 = vsel %vm2776, %v2772, 1326507024
        %v2787 = vsel %vm2775, %v2769, %v2786
        %v2788 = vsel %vm2774, %v2785, %v2787
        %v2789 = vshll.u32 %v2749, 8
        %v2790 = vmul.u32.u64.compose %v2789, %v2788
        %v2791 = vextract.low.u32 %v2790
        %v2792 = vextract.high.u32 %v2790
        %v2793 = vmul.u32.u64.compose %v2789, %v2784
        %v2794 = vextract.low.u32 %v2793
        %v2795 = vextract.high.u32 %v2793
        %v2796 = vmul.u32 %v2789, %v2780
        %v2797 = vadd.s32 %v2792, %v2794
        %vm2798 = vc.u32 %v2792, %v2794
        %v2799 = vadd.s32 %v2795, 1
        %v2800 = vsel %vm2798, %v2799, %v2795
        %v2801 = vadd.s32 %v2796, %v2800
        %v2802 = vadd.s32 %v2801, 536870912
        %v2803 = vshrl.u32 %v2802, 30
        %v2804 = vshll.u32 %v2803, 30
        %v2805 = vsub.s32 %v2801, %v2804
        %vm2806 = vcmp.lt.s32.totalorder %v2805, 0
        %v2807 = vsub.s32 0, %v2805
        %v2808 = vsel %vm2806, %v2807, %v2805
        %v2809 = vclz %v2808
        %v2810 = vsub.s32 %v2809, 2
        %vm2811 = vcmp.gt.s32.totalorder 0, %v2810
        %v2812 = vsel %vm2811, 0, %v2810
        %v2813 = vsub.s32 32, %v2812
        %v2814 = vshll.u32 %v2805, %v2812
        %v2815 = vshrl.u32 %v2797, %v2813
        %v2816 = vor.u32 %v2814, %v2815
        %v2817 = vsub.s32 4294967266, %v2812
        %v2818 = vadd.s32 %v2817, 127
        %v2819 = vshll.u32 %v2818, 23
        %v2820 = vor.u32 4788187, %v2819
        %v2821 = vand.u32 2147483647, %v2820
        %v2823 = vcvt.s32.f32 %v2816
        %v2824 = vmul.f32 %v2823, %v2821
        %v2825 = vxor.u32 %v2824, 2147483648
        %v2826 = vsel %vm2743, %v2825, %v2824
        %v2827 = vsub.s32 4, %v2803
        %v2828 = vsel %vm2743, %v2827, %v2803
        %v2829 = vsel %vm2742, %v747, %v2826
        %v2830 = vsel %vm2742, 0, %v2828
        %v2831 = vcosq.f32.pop %v2829
        %v2832 = vsinq.f32.pop %v2829
        %vm2833 = vweird.f32 %v747
        %v2834 = vand.u32 %v2830, 3
        %vm2835 = vcmp.lt.s32.totalorder %v2834, 2
        %vm2836 = vcmp.eq.s32.totalorder %v2834, 0
        %v2837 = vxor.u32 %v2832, 2147483648
        %v2838 = vsel %vm2836, %v2831, %v2837
        %vm2839 = vcmp.eq.s32.totalorder %v2834, 2
        %v2840 = vxor.u32 %v2831, 2147483648
        %v2841 = vsel %vm2839, %v2840, %v2832
        %v2842 = vsel %vm2835, %v2838, %v2841
        %v2843 = vsel %vm2833, nan, %v2842
        %v2844 = vand.u32 2147483647, %v748
        %vm2845 = vcmp.le.f32.partialorder %v2844, 0.7853982
        %vm2846 = vcmp.lt.s32.totalorder %v748, 0
        %v2847 = vand.u32 %v748, 2139095040
        %v2848 = vshrl.u32 %v2847, 23
        %v2849 = vsub.s32 %v2848, 127
        %v2850 = vand.u32 2147483647, %v748
        %v2851 = vand.u32 %v2850, 8388607
        %v2852 = vor.u32 %v2851, 8388608
        %v2853 = vsub.s32 0, %v2852
        %v2854 = vadd.s32 %v2849, 1
        %vm2855 = vcmp.gt.s32.totalorder %v2854, 0
        %v2856 = vsel %vm2855, %v2854, 0
        %v2857 = vshrl.u32 %v2856, 5
        %v2858 = vand.u32 %v2856, 31
        %v2859 = vsub.s32 32, %v2858
        %v2860 = vshrl.u32 683565275, %v2859
        %v2861 = vshll.u32 683565275, %v2858
        %v2862 = vshrl.u32 2475754826, %v2859
        %v2863 = vor.u32 %v2861, %v2862
        %v2864 = vshll.u32 2475754826, %v2858
        %v2865 = vshrl.u32 2131351028, %v2859
        %v2866 = vor.u32 %v2864, %v2865
        %v2867 = vshll.u32 2131351028, %v2858
        %v2868 = vshrl.u32 2102212464, %v2859
        %v2869 = vor.u32 %v2867, %v2868
        %v2870 = vshll.u32 2102212464, %v2858
        %v2871 = vshrl.u32 920167782, %v2859
        %v2872 = vor.u32 %v2870, %v2871
        %v2873 = vshll.u32 920167782, %v2858
        %v2874 = vshrl.u32 1326507024, %v2859
        %v2875 = vor.u32 %v2873, %v2874
        %vm2876 = vcmp.lt.s32.totalorder %v2857, 1
        %vm2877 = vcmp.lt.s32.totalorder %v2857, 2
        %vm2878 = vcmp.lt.s32.totalorder %v2857, 3
        %vm2879 = vcmp.lt.s32.totalorder %v2857, 4
        %v2880 = vsel %vm2876, %v2860, %v2863
        %v2881 = vsel %vm2879, %v2869, 2102212464
        %v2882 = vsel %vm2878, %v2866, %v2881
        %v2883 = vsel %vm2877, %v2880, %v2882
        %v2884 = vsel %vm2876, %v2863, %v2866
        %v2885 = vsel %vm2879, %v2872, 920167782
        %v2886 = vsel %vm2878, %v2869, %v2885
        %v2887 = vsel %vm2877, %v2884, %v2886
        %v2888 = vsel %vm2876, %v2866, %v2869
        %v2889 = vsel %vm2879, %v2875, 1326507024
        %v2890 = vsel %vm2878, %v2872, %v2889
        %v2891 = vsel %vm2877, %v2888, %v2890
        %v2892 = vshll.u32 %v2852, 8
        %v2893 = vmul.u32.u64.compose %v2892, %v2891
        %v2894 = vextract.low.u32 %v2893
        %v2895 = vextract.high.u32 %v2893
        %v2896 = vmul.u32.u64.compose %v2892, %v2887
        %v2897 = vextract.low.u32 %v2896
        %v2898 = vextract.high.u32 %v2896
        %v2899 = vmul.u32 %v2892, %v2883
        %v2900 = vadd.s32 %v2895, %v2897
        %vm2901 = vc.u32 %v2895, %v2897
        %v2902 = vadd.s32 %v2898, 1
        %v2903 = vsel %vm2901, %v2902, %v2898
        %v2904 = vadd.s32 %v2899, %v2903
        %v2905 = vadd.s32 %v2904, 536870912
        %v2906 = vshrl.u32 %v2905, 30
        %v2907 = vshll.u32 %v2906, 30
        %v2908 = vsub.s32 %v2904, %v2907
        %vm2909 = vcmp.lt.s32.totalorder %v2908, 0
        %v2910 = vsub.s32 0, %v2908
        %v2911 = vsel %vm2909, %v2910, %v2908
        %v2912 = vclz %v2911
        %v2913 = vsub.s32 %v2912, 2
        %vm2914 = vcmp.gt.s32.totalorder 0, %v2913
        %v2915 = vsel %vm2914, 0, %v2913
        %v2916 = vsub.s32 32, %v2915
        %v2917 = vshll.u32 %v2908, %v2915
        %v2918 = vshrl.u32 %v2900, %v2916
        %v2919 = vor.u32 %v2917, %v2918
        %v2920 = vsub.s32 4294967266, %v2915
        %v2921 = vadd.s32 %v2920, 127
        %v2922 = vshll.u32 %v2921, 23
        %v2923 = vor.u32 4788187, %v2922
        %v2924 = vand.u32 2147483647, %v2923
        %v2926 = vcvt.s32.f32 %v2919
        %v2927 = vmul.f32 %v2926, %v2924
        %v2928 = vxor.u32 %v2927, 2147483648
        %v2929 = vsel %vm2846, %v2928, %v2927
        %v2930 = vsub.s32 4, %v2906
        %v2931 = vsel %vm2846, %v2930, %v2906
        %v2932 = vsel %vm2845, %v748, %v2929
        %v2933 = vsel %vm2845, 0, %v2931
        %v2934 = vcosq.f32.pop %v2932
        %v2935 = vsinq.f32.pop %v2932
        %vm2936 = vweird.f32 %v748
        %v2937 = vand.u32 %v2933, 3
        %vm2938 = vcmp.lt.s32.totalorder %v2937, 2
        %vm2939 = vcmp.eq.s32.totalorder %v2937, 0
        %v2940 = vxor.u32 %v2935, 2147483648
        %v2941 = vsel %vm2939, %v2934, %v2940
        %vm2942 = vcmp.eq.s32.totalorder %v2937, 2
        %v2943 = vxor.u32 %v2934, 2147483648
        %v2944 = vsel %vm2942, %v2943, %v2935
        %v2945 = vsel %vm2938, %v2941, %v2944
        %v2946 = vsel %vm2936, nan, %v2945
        %v2947 = vand.u32 2147483647, %v749
        %vm2948 = vcmp.le.f32.partialorder %v2947, 0.7853982
        %vm2949 = vcmp.lt.s32.totalorder %v749, 0
        %v2950 = vand.u32 %v749, 2139095040
        %v2951 = vshrl.u32 %v2950, 23
        %v2952 = vsub.s32 %v2951, 127
        %v2953 = vand.u32 2147483647, %v749
        %v2954 = vand.u32 %v2953, 8388607
        %v2955 = vor.u32 %v2954, 8388608
        %v2956 = vsub.s32 0, %v2955
        %v2957 = vadd.s32 %v2952, 1
        %vm2958 = vcmp.gt.s32.totalorder %v2957, 0
        %v2959 = vsel %vm2958, %v2957, 0
        %v2960 = vshrl.u32 %v2959, 5
        %v2961 = vand.u32 %v2959, 31
        %v2962 = vsub.s32 32, %v2961
        %v2963 = vshrl.u32 683565275, %v2962
        %v2964 = vshll.u32 683565275, %v2961
        %v2965 = vshrl.u32 2475754826, %v2962
        %v2966 = vor.u32 %v2964, %v2965
        %v2967 = vshll.u32 2475754826, %v2961
        %v2968 = vshrl.u32 2131351028, %v2962
        %v2969 = vor.u32 %v2967, %v2968
        %v2970 = vshll.u32 2131351028, %v2961
        %v2971 = vshrl.u32 2102212464, %v2962
        %v2972 = vor.u32 %v2970, %v2971
        %v2973 = vshll.u32 2102212464, %v2961
        %v2974 = vshrl.u32 920167782, %v2962
        %v2975 = vor.u32 %v2973, %v2974
        %v2976 = vshll.u32 920167782, %v2961
        %v2977 = vshrl.u32 1326507024, %v2962
        %v2978 = vor.u32 %v2976, %v2977
        %vm2979 = vcmp.lt.s32.totalorder %v2960, 1
        %vm2980 = vcmp.lt.s32.totalorder %v2960, 2
        %vm2981 = vcmp.lt.s32.totalorder %v2960, 3
        %vm2982 = vcmp.lt.s32.totalorder %v2960, 4
        %v2983 = vsel %vm2979, %v2963, %v2966
        %v2984 = vsel %vm2982, %v2972, 2102212464
        %v2985 = vsel %vm2981, %v2969, %v2984
        %v2986 = vsel %vm2980, %v2983, %v2985
        %v2987 = vsel %vm2979, %v2966, %v2969
        %v2988 = vsel %vm2982, %v2975, 920167782
        %v2989 = vsel %vm2981, %v2972, %v2988
        %v2990 = vsel %vm2980, %v2987, %v2989
        %v2991 = vsel %vm2979, %v2969, %v2972
        %v2992 = vsel %vm2982, %v2978, 1326507024
        %v2993 = vsel %vm2981, %v2975, %v2992
        %v2994 = vsel %vm2980, %v2991, %v2993
        %v2995 = vshll.u32 %v2955, 8
        %v2996 = vmul.u32.u64.compose %v2995, %v2994
        %v2997 = vextract.low.u32 %v2996
        %v2998 = vextract.high.u32 %v2996
        %v2999 = vmul.u32.u64.compose %v2995, %v2990
        %v3000 = vextract.low.u32 %v2999
        %v3001 = vextract.high.u32 %v2999
        %v3002 = vmul.u32 %v2995, %v2986
        %v3003 = vadd.s32 %v2998, %v3000
        %vm3004 = vc.u32 %v2998, %v3000
        %v3005 = vadd.s32 %v3001, 1
        %v3006 = vsel %vm3004, %v3005, %v3001
        %v3007 = vadd.s32 %v3002, %v3006
        %v3008 = vadd.s32 %v3007, 536870912
        %v3009 = vshrl.u32 %v3008, 30
        %v3010 = vshll.u32 %v3009, 30
        %v3011 = vsub.s32 %v3007, %v3010
        %vm3012 = vcmp.lt.s32.totalorder %v3011, 0
        %v3013 = vsub.s32 0, %v3011
        %v3014 = vsel %vm3012, %v3013, %v3011
        %v3015 = vclz %v3014
        %v3016 = vsub.s32 %v3015, 2
        %vm3017 = vcmp.gt.s32.totalorder 0, %v3016
        %v3018 = vsel %vm3017, 0, %v3016
        %v3019 = vsub.s32 32, %v3018
        %v3020 = vshll.u32 %v3011, %v3018
        %v3021 = vshrl.u32 %v3003, %v3019
        %v3022 = vor.u32 %v3020, %v3021
        %v3023 = vsub.s32 4294967266, %v3018
        %v3024 = vadd.s32 %v3023, 127
        %v3025 = vshll.u32 %v3024, 23
        %v3026 = vor.u32 4788187, %v3025
        %v3027 = vand.u32 2147483647, %v3026
        %v3029 = vcvt.s32.f32 %v3022
        %v3030 = vmul.f32 %v3029, %v3027
        %v3031 = vxor.u32 %v3030, 2147483648
        %v3032 = vsel %vm2949, %v3031, %v3030
        %v3033 = vsub.s32 4, %v3009
        %v3034 = vsel %vm2949, %v3033, %v3009
        %v3035 = vsel %vm2948, %v749, %v3032
        %v3036 = vsel %vm2948, 0, %v3034
        %v3037 = vcosq.f32.pop %v3035
        %v3038 = vsinq.f32.pop %v3035
        %vm3039 = vweird.f32 %v749
        %v3040 = vand.u32 %v3036, 3
        %vm3041 = vcmp.lt.s32.totalorder %v3040, 2
        %vm3042 = vcmp.eq.s32.totalorder %v3040, 0
        %v3043 = vxor.u32 %v3038, 2147483648
        %v3044 = vsel %vm3042, %v3037, %v3043
        %vm3045 = vcmp.eq.s32.totalorder %v3040, 2
        %v3046 = vxor.u32 %v3037, 2147483648
        %v3047 = vsel %vm3045, %v3046, %v3038
        %v3048 = vsel %vm3041, %v3044, %v3047
        %v3049 = vsel %vm3039, nan, %v3048
        %v3050 = vand.u32 2147483647, %v750
        %vm3051 = vcmp.le.f32.partialorder %v3050, 0.7853982
        %vm3052 = vcmp.lt.s32.totalorder %v750, 0
        %v3053 = vand.u32 %v750, 2139095040
        %v3054 = vshrl.u32 %v3053, 23
        %v3055 = vsub.s32 %v3054, 127
        %v3056 = vand.u32 2147483647, %v750
        %v3057 = vand.u32 %v3056, 8388607
        %v3058 = vor.u32 %v3057, 8388608
        %v3059 = vsub.s32 0, %v3058
        %v3060 = vadd.s32 %v3055, 1
        %vm3061 = vcmp.gt.s32.totalorder %v3060, 0
        %v3062 = vsel %vm3061, %v3060, 0
        %v3063 = vshrl.u32 %v3062, 5
        %v3064 = vand.u32 %v3062, 31
        %v3065 = vsub.s32 32, %v3064
        %v3066 = vshrl.u32 683565275, %v3065
        %v3067 = vshll.u32 683565275, %v3064
        %v3068 = vshrl.u32 2475754826, %v3065
        %v3069 = vor.u32 %v3067, %v3068
        %v3070 = vshll.u32 2475754826, %v3064
        %v3071 = vshrl.u32 2131351028, %v3065
        %v3072 = vor.u32 %v3070, %v3071
        %v3073 = vshll.u32 2131351028, %v3064
        %v3074 = vshrl.u32 2102212464, %v3065
        %v3075 = vor.u32 %v3073, %v3074
        %v3076 = vshll.u32 2102212464, %v3064
        %v3077 = vshrl.u32 920167782, %v3065
        %v3078 = vor.u32 %v3076, %v3077
        %v3079 = vshll.u32 920167782, %v3064
        %v3080 = vshrl.u32 1326507024, %v3065
        %v3081 = vor.u32 %v3079, %v3080
        %vm3082 = vcmp.lt.s32.totalorder %v3063, 1
        %vm3083 = vcmp.lt.s32.totalorder %v3063, 2
        %vm3084 = vcmp.lt.s32.totalorder %v3063, 3
        %vm3085 = vcmp.lt.s32.totalorder %v3063, 4
        %v3086 = vsel %vm3082, %v3066, %v3069
        %v3087 = vsel %vm3085, %v3075, 2102212464
        %v3088 = vsel %vm3084, %v3072, %v3087
        %v3089 = vsel %vm3083, %v3086, %v3088
        %v3090 = vsel %vm3082, %v3069, %v3072
        %v3091 = vsel %vm3085, %v3078, 920167782
        %v3092 = vsel %vm3084, %v3075, %v3091
        %v3093 = vsel %vm3083, %v3090, %v3092
        %v3094 = vsel %vm3082, %v3072, %v3075
        %v3095 = vsel %vm3085, %v3081, 1326507024
        %v3096 = vsel %vm3084, %v3078, %v3095
        %v3097 = vsel %vm3083, %v3094, %v3096
        %v3098 = vshll.u32 %v3058, 8
        %v3099 = vmul.u32.u64.compose %v3098, %v3097
        %v3100 = vextract.low.u32 %v3099
        %v3101 = vextract.high.u32 %v3099
        %v3102 = vmul.u32.u64.compose %v3098, %v3093
        %v3103 = vextract.low.u32 %v3102
        %v3104 = vextract.high.u32 %v3102
        %v3105 = vmul.u32 %v3098, %v3089
        %v3106 = vadd.s32 %v3101, %v3103
        %vm3107 = vc.u32 %v3101, %v3103
        %v3108 = vadd.s32 %v3104, 1
        %v3109 = vsel %vm3107, %v3108, %v3104
        %v3110 = vadd.s32 %v3105, %v3109
        %v3111 = vadd.s32 %v3110, 536870912
        %v3112 = vshrl.u32 %v3111, 30
        %v3113 = vshll.u32 %v3112, 30
        %v3114 = vsub.s32 %v3110, %v3113
        %vm3115 = vcmp.lt.s32.totalorder %v3114, 0
        %v3116 = vsub.s32 0, %v3114
        %v3117 = vsel %vm3115, %v3116, %v3114
        %v3118 = vclz %v3117
        %v3119 = vsub.s32 %v3118, 2
        %vm3120 = vcmp.gt.s32.totalorder 0, %v3119
        %v3121 = vsel %vm3120, 0, %v3119
        %v3122 = vsub.s32 32, %v3121
        %v3123 = vshll.u32 %v3114, %v3121
        %v3124 = vshrl.u32 %v3106, %v3122
        %v3125 = vor.u32 %v3123, %v3124
        %v3126 = vsub.s32 4294967266, %v3121
        %v3127 = vadd.s32 %v3126, 127
        %v3128 = vshll.u32 %v3127, 23
        %v3129 = vor.u32 4788187, %v3128
        %v3130 = vand.u32 2147483647, %v3129
        %v3132 = vcvt.s32.f32 %v3125
        %v3133 = vmul.f32 %v3132, %v3130
        %v3134 = vxor.u32 %v3133, 2147483648
        %v3135 = vsel %vm3052, %v3134, %v3133
        %v3136 = vsub.s32 4, %v3112
        %v3137 = vsel %vm3052, %v3136, %v3112
        %v3138 = vsel %vm3051, %v750, %v3135
        %v3139 = vsel %vm3051, 0, %v3137
        %v3140 = vcosq.f32.pop %v3138
        %v3141 = vsinq.f32.pop %v3138
        %vm3142 = vweird.f32 %v750
        %v3143 = vand.u32 %v3139, 3
        %vm3144 = vcmp.lt.s32.totalorder %v3143, 2
        %vm3145 = vcmp.eq.s32.totalorder %v3143, 0
        %v3146 = vxor.u32 %v3141, 2147483648
        %v3147 = vsel %vm3145, %v3140, %v3146
        %vm3148 = vcmp.eq.s32.totalorder %v3143, 2
        %v3149 = vxor.u32 %v3140, 2147483648
        %v3150 = vsel %vm3148, %v3149, %v3141
        %v3151 = vsel %vm3144, %v3147, %v3150
        %v3152 = vsel %vm3142, nan, %v3151
        %v3153 = vand.u32 2147483647, %v751
        %vm3154 = vcmp.le.f32.partialorder %v3153, 0.7853982
        %vm3155 = vcmp.lt.s32.totalorder %v751, 0
        %v3156 = vand.u32 %v751, 2139095040
        %v3157 = vshrl.u32 %v3156, 23
        %v3158 = vsub.s32 %v3157, 127
        %v3159 = vand.u32 2147483647, %v751
        %v3160 = vand.u32 %v3159, 8388607
        %v3161 = vor.u32 %v3160, 8388608
        %v3162 = vsub.s32 0, %v3161
        %v3163 = vadd.s32 %v3158, 1
        %vm3164 = vcmp.gt.s32.totalorder %v3163, 0
        %v3165 = vsel %vm3164, %v3163, 0
        %v3166 = vshrl.u32 %v3165, 5
        %v3167 = vand.u32 %v3165, 31
        %v3168 = vsub.s32 32, %v3167
        %v3169 = vshrl.u32 683565275, %v3168
        %v3170 = vshll.u32 683565275, %v3167
        %v3171 = vshrl.u32 2475754826, %v3168
        %v3172 = vor.u32 %v3170, %v3171
        %v3173 = vshll.u32 2475754826, %v3167
        %v3174 = vshrl.u32 2131351028, %v3168
        %v3175 = vor.u32 %v3173, %v3174
        %v3176 = vshll.u32 2131351028, %v3167
        %v3177 = vshrl.u32 2102212464, %v3168
        %v3178 = vor.u32 %v3176, %v3177
        %v3179 = vshll.u32 2102212464, %v3167
        %v3180 = vshrl.u32 920167782, %v3168
        %v3181 = vor.u32 %v3179, %v3180
        %v3182 = vshll.u32 920167782, %v3167
        %v3183 = vshrl.u32 1326507024, %v3168
        %v3184 = vor.u32 %v3182, %v3183
        %vm3185 = vcmp.lt.s32.totalorder %v3166, 1
        %vm3186 = vcmp.lt.s32.totalorder %v3166, 2
        %vm3187 = vcmp.lt.s32.totalorder %v3166, 3
        %vm3188 = vcmp.lt.s32.totalorder %v3166, 4
        %v3189 = vsel %vm3185, %v3169, %v3172
        %v3190 = vsel %vm3188, %v3178, 2102212464
        %v3191 = vsel %vm3187, %v3175, %v3190
        %v3192 = vsel %vm3186, %v3189, %v3191
        %v3193 = vsel %vm3185, %v3172, %v3175
        %v3194 = vsel %vm3188, %v3181, 920167782
        %v3195 = vsel %vm3187, %v3178, %v3194
        %v3196 = vsel %vm3186, %v3193, %v3195
        %v3197 = vsel %vm3185, %v3175, %v3178
        %v3198 = vsel %vm3188, %v3184, 1326507024
        %v3199 = vsel %vm3187, %v3181, %v3198
        %v3200 = vsel %vm3186, %v3197, %v3199
        %v3201 = vshll.u32 %v3161, 8
        %v3202 = vmul.u32.u64.compose %v3201, %v3200
        %v3203 = vextract.low.u32 %v3202
        %v3204 = vextract.high.u32 %v3202
        %v3205 = vmul.u32.u64.compose %v3201, %v3196
        %v3206 = vextract.low.u32 %v3205
        %v3207 = vextract.high.u32 %v3205
        %v3208 = vmul.u32 %v3201, %v3192
        %v3209 = vadd.s32 %v3204, %v3206
        %vm3210 = vc.u32 %v3204, %v3206
        %v3211 = vadd.s32 %v3207, 1
        %v3212 = vsel %vm3210, %v3211, %v3207
        %v3213 = vadd.s32 %v3208, %v3212
        %v3214 = vadd.s32 %v3213, 536870912
        %v3215 = vshrl.u32 %v3214, 30
        %v3216 = vshll.u32 %v3215, 30
        %v3217 = vsub.s32 %v3213, %v3216
        %vm3218 = vcmp.lt.s32.totalorder %v3217, 0
        %v3219 = vsub.s32 0, %v3217
        %v3220 = vsel %vm3218, %v3219, %v3217
        %v3221 = vclz %v3220
        %v3222 = vsub.s32 %v3221, 2
        %vm3223 = vcmp.gt.s32.totalorder 0, %v3222
        %v3224 = vsel %vm3223, 0, %v3222
        %v3225 = vsub.s32 32, %v3224
        %v3226 = vshll.u32 %v3217, %v3224
        %v3227 = vshrl.u32 %v3209, %v3225
        %v3228 = vor.u32 %v3226, %v3227
        %v3229 = vsub.s32 4294967266, %v3224
        %v3230 = vadd.s32 %v3229, 127
        %v3231 = vshll.u32 %v3230, 23
        %v3232 = vor.u32 4788187, %v3231
        %v3233 = vand.u32 2147483647, %v3232
        %v3235 = vcvt.s32.f32 %v3228
        %v3236 = vmul.f32 %v3235, %v3233
        %v3237 = vxor.u32 %v3236, 2147483648
        %v3238 = vsel %vm3155, %v3237, %v3236
        %v3239 = vsub.s32 4, %v3215
        %v3240 = vsel %vm3155, %v3239, %v3215
        %v3241 = vsel %vm3154, %v751, %v3238
        %v3242 = vsel %vm3154, 0, %v3240
        %v3243 = vcosq.f32.pop %v3241
        %v3244 = vsinq.f32.pop %v3241
        %vm3245 = vweird.f32 %v751
        %v3246 = vand.u32 %v3242, 3
        %vm3247 = vcmp.lt.s32.totalorder %v3246, 2
        %vm3248 = vcmp.eq.s32.totalorder %v3246, 0
        %v3249 = vxor.u32 %v3244, 2147483648
        %v3250 = vsel %vm3248, %v3243, %v3249
        %vm3251 = vcmp.eq.s32.totalorder %v3246, 2
        %v3252 = vxor.u32 %v3243, 2147483648
        %v3253 = vsel %vm3251, %v3252, %v3244
        %v3254 = vsel %vm3247, %v3250, %v3253
        %v3255 = vsel %vm3245, nan, %v3254
        %v3256 = vand.u32 2147483647, %v752
        %vm3257 = vcmp.le.f32.partialorder %v3256, 0.7853982
        %vm3258 = vcmp.lt.s32.totalorder %v752, 0
        %v3259 = vand.u32 %v752, 2139095040
        %v3260 = vshrl.u32 %v3259, 23
        %v3261 = vsub.s32 %v3260, 127
        %v3262 = vand.u32 2147483647, %v752
        %v3263 = vand.u32 %v3262, 8388607
        %v3264 = vor.u32 %v3263, 8388608
        %v3265 = vsub.s32 0, %v3264
        %v3266 = vadd.s32 %v3261, 1
        %vm3267 = vcmp.gt.s32.totalorder %v3266, 0
        %v3268 = vsel %vm3267, %v3266, 0
        %v3269 = vshrl.u32 %v3268, 5
        %v3270 = vand.u32 %v3268, 31
        %v3271 = vsub.s32 32, %v3270
        %v3272 = vshrl.u32 683565275, %v3271
        %v3273 = vshll.u32 683565275, %v3270
        %v3274 = vshrl.u32 2475754826, %v3271
        %v3275 = vor.u32 %v3273, %v3274
        %v3276 = vshll.u32 2475754826, %v3270
        %v3277 = vshrl.u32 2131351028, %v3271
        %v3278 = vor.u32 %v3276, %v3277
        %v3279 = vshll.u32 2131351028, %v3270
        %v3280 = vshrl.u32 2102212464, %v3271
        %v3281 = vor.u32 %v3279, %v3280
        %v3282 = vshll.u32 2102212464, %v3270
        %v3283 = vshrl.u32 920167782, %v3271
        %v3284 = vor.u32 %v3282, %v3283
        %v3285 = vshll.u32 920167782, %v3270
        %v3286 = vshrl.u32 1326507024, %v3271
        %v3287 = vor.u32 %v3285, %v3286
        %vm3288 = vcmp.lt.s32.totalorder %v3269, 1
        %vm3289 = vcmp.lt.s32.totalorder %v3269, 2
        %vm3290 = vcmp.lt.s32.totalorder %v3269, 3
        %vm3291 = vcmp.lt.s32.totalorder %v3269, 4
        %v3292 = vsel %vm3288, %v3272, %v3275
        %v3293 = vsel %vm3291, %v3281, 2102212464
        %v3294 = vsel %vm3290, %v3278, %v3293
        %v3295 = vsel %vm3289, %v3292, %v3294
        %v3296 = vsel %vm3288, %v3275, %v3278
        %v3297 = vsel %vm3291, %v3284, 920167782
        %v3298 = vsel %vm3290, %v3281, %v3297
        %v3299 = vsel %vm3289, %v3296, %v3298
        %v3300 = vsel %vm3288, %v3278, %v3281
        %v3301 = vsel %vm3291, %v3287, 1326507024
        %v3302 = vsel %vm3290, %v3284, %v3301
        %v3303 = vsel %vm3289, %v3300, %v3302
        %v3304 = vshll.u32 %v3264, 8
        %v3305 = vmul.u32.u64.compose %v3304, %v3303
        %v3306 = vextract.low.u32 %v3305
        %v3307 = vextract.high.u32 %v3305
        %v3308 = vmul.u32.u64.compose %v3304, %v3299
        %v3309 = vextract.low.u32 %v3308
        %v3310 = vextract.high.u32 %v3308
        %v3311 = vmul.u32 %v3304, %v3295
        %v3312 = vadd.s32 %v3307, %v3309
        %vm3313 = vc.u32 %v3307, %v3309
        %v3314 = vadd.s32 %v3310, 1
        %v3315 = vsel %vm3313, %v3314, %v3310
        %v3316 = vadd.s32 %v3311, %v3315
        %v3317 = vadd.s32 %v3316, 536870912
        %v3318 = vshrl.u32 %v3317, 30
        %v3319 = vshll.u32 %v3318, 30
        %v3320 = vsub.s32 %v3316, %v3319
        %vm3321 = vcmp.lt.s32.totalorder %v3320, 0
        %v3322 = vsub.s32 0, %v3320
        %v3323 = vsel %vm3321, %v3322, %v3320
        %v3324 = vclz %v3323
        %v3325 = vsub.s32 %v3324, 2
        %vm3326 = vcmp.gt.s32.totalorder 0, %v3325
        %v3327 = vsel %vm3326, 0, %v3325
        %v3328 = vsub.s32 32, %v3327
        %v3329 = vshll.u32 %v3320, %v3327
        %v3330 = vshrl.u32 %v3312, %v3328
        %v3331 = vor.u32 %v3329, %v3330
        %v3332 = vsub.s32 4294967266, %v3327
        %v3333 = vadd.s32 %v3332, 127
        %v3334 = vshll.u32 %v3333, 23
        %v3335 = vor.u32 4788187, %v3334
        %v3336 = vand.u32 2147483647, %v3335
        %v3338 = vcvt.s32.f32 %v3331
        %v3339 = vmul.f32 %v3338, %v3336
        %v3340 = vxor.u32 %v3339, 2147483648
        %v3341 = vsel %vm3258, %v3340, %v3339
        %v3342 = vsub.s32 4, %v3318
        %v3343 = vsel %vm3258, %v3342, %v3318
        %v3344 = vsel %vm3257, %v752, %v3341
        %v3345 = vsel %vm3257, 0, %v3343
        %v3346 = vcosq.f32.pop %v3344
        %v3347 = vsinq.f32.pop %v3344
        %vm3348 = vweird.f32 %v752
        %v3349 = vand.u32 %v3345, 3
        %vm3350 = vcmp.lt.s32.totalorder %v3349, 2
        %vm3351 = vcmp.eq.s32.totalorder %v3349, 0
        %v3352 = vxor.u32 %v3347, 2147483648
        %v3353 = vsel %vm3351, %v3346, %v3352
        %vm3354 = vcmp.eq.s32.totalorder %v3349, 2
        %v3355 = vxor.u32 %v3346, 2147483648
        %v3356 = vsel %vm3354, %v3355, %v3347
        %v3357 = vsel %vm3350, %v3353, %v3356
        %v3358 = vsel %vm3348, nan, %v3357
        %v3359 = vand.u32 2147483647, %v753
        %vm3360 = vcmp.le.f32.partialorder %v3359, 0.7853982
        %vm3361 = vcmp.lt.s32.totalorder %v753, 0
        %v3362 = vand.u32 %v753, 2139095040
        %v3363 = vshrl.u32 %v3362, 23
        %v3364 = vsub.s32 %v3363, 127
        %v3365 = vand.u32 2147483647, %v753
        %v3366 = vand.u32 %v3365, 8388607
        %v3367 = vor.u32 %v3366, 8388608
        %v3368 = vsub.s32 0, %v3367
        %v3369 = vadd.s32 %v3364, 1
        %vm3370 = vcmp.gt.s32.totalorder %v3369, 0
        %v3371 = vsel %vm3370, %v3369, 0
        %v3372 = vshrl.u32 %v3371, 5
        %v3373 = vand.u32 %v3371, 31
        %v3374 = vsub.s32 32, %v3373
        %v3375 = vshrl.u32 683565275, %v3374
        %v3376 = vshll.u32 683565275, %v3373
        %v3377 = vshrl.u32 2475754826, %v3374
        %v3378 = vor.u32 %v3376, %v3377
        %v3379 = vshll.u32 2475754826, %v3373
        %v3380 = vshrl.u32 2131351028, %v3374
        %v3381 = vor.u32 %v3379, %v3380
        %v3382 = vshll.u32 2131351028, %v3373
        %v3383 = vshrl.u32 2102212464, %v3374
        %v3384 = vor.u32 %v3382, %v3383
        %v3385 = vshll.u32 2102212464, %v3373
        %v3386 = vshrl.u32 920167782, %v3374
        %v3387 = vor.u32 %v3385, %v3386
        %v3388 = vshll.u32 920167782, %v3373
        %v3389 = vshrl.u32 1326507024, %v3374
        %v3390 = vor.u32 %v3388, %v3389
        %vm3391 = vcmp.lt.s32.totalorder %v3372, 1
        %vm3392 = vcmp.lt.s32.totalorder %v3372, 2
        %vm3393 = vcmp.lt.s32.totalorder %v3372, 3
        %vm3394 = vcmp.lt.s32.totalorder %v3372, 4
        %v3395 = vsel %vm3391, %v3375, %v3378
        %v3396 = vsel %vm3394, %v3384, 2102212464
        %v3397 = vsel %vm3393, %v3381, %v3396
        %v3398 = vsel %vm3392, %v3395, %v3397
        %v3399 = vsel %vm3391, %v3378, %v3381
        %v3400 = vsel %vm3394, %v3387, 920167782
        %v3401 = vsel %vm3393, %v3384, %v3400
        %v3402 = vsel %vm3392, %v3399, %v3401
        %v3403 = vsel %vm3391, %v3381, %v3384
        %v3404 = vsel %vm3394, %v3390, 1326507024
        %v3405 = vsel %vm3393, %v3387, %v3404
        %v3406 = vsel %vm3392, %v3403, %v3405
        %v3407 = vshll.u32 %v3367, 8
        %v3408 = vmul.u32.u64.compose %v3407, %v3406
        %v3409 = vextract.low.u32 %v3408
        %v3410 = vextract.high.u32 %v3408
        %v3411 = vmul.u32.u64.compose %v3407, %v3402
        %v3412 = vextract.low.u32 %v3411
        %v3413 = vextract.high.u32 %v3411
        %v3414 = vmul.u32 %v3407, %v3398
        %v3415 = vadd.s32 %v3410, %v3412
        %vm3416 = vc.u32 %v3410, %v3412
        %v3417 = vadd.s32 %v3413, 1
        %v3418 = vsel %vm3416, %v3417, %v3413
        %v3419 = vadd.s32 %v3414, %v3418
        %v3420 = vadd.s32 %v3419, 536870912
        %v3421 = vshrl.u32 %v3420, 30
        %v3422 = vshll.u32 %v3421, 30
        %v3423 = vsub.s32 %v3419, %v3422
        %vm3424 = vcmp.lt.s32.totalorder %v3423, 0
        %v3425 = vsub.s32 0, %v3423
        %v3426 = vsel %vm3424, %v3425, %v3423
        %v3427 = vclz %v3426
        %v3428 = vsub.s32 %v3427, 2
        %vm3429 = vcmp.gt.s32.totalorder 0, %v3428
        %v3430 = vsel %vm3429, 0, %v3428
        %v3431 = vsub.s32 32, %v3430
        %v3432 = vshll.u32 %v3423, %v3430
        %v3433 = vshrl.u32 %v3415, %v3431
        %v3434 = vor.u32 %v3432, %v3433
        %v3435 = vsub.s32 4294967266, %v3430
        %v3436 = vadd.s32 %v3435, 127
        %v3437 = vshll.u32 %v3436, 23
        %v3438 = vor.u32 4788187, %v3437
        %v3439 = vand.u32 2147483647, %v3438
        %v3441 = vcvt.s32.f32 %v3434
        %v3442 = vmul.f32 %v3441, %v3439
        %v3443 = vxor.u32 %v3442, 2147483648
        %v3444 = vsel %vm3361, %v3443, %v3442
        %v3445 = vsub.s32 4, %v3421
        %v3446 = vsel %vm3361, %v3445, %v3421
        %v3447 = vsel %vm3360, %v753, %v3444
        %v3448 = vsel %vm3360, 0, %v3446
        %v3449 = vcosq.f32.pop %v3447
        %v3450 = vsinq.f32.pop %v3447
        %vm3451 = vweird.f32 %v753
        %v3452 = vand.u32 %v3448, 3
        %vm3453 = vcmp.lt.s32.totalorder %v3452, 2
        %vm3454 = vcmp.eq.s32.totalorder %v3452, 0
        %v3455 = vxor.u32 %v3450, 2147483648
        %v3456 = vsel %vm3454, %v3449, %v3455
        %vm3457 = vcmp.eq.s32.totalorder %v3452, 2
        %v3458 = vxor.u32 %v3449, 2147483648
        %v3459 = vsel %vm3457, %v3458, %v3450
        %v3460 = vsel %vm3453, %v3456, %v3459
        %v3461 = vsel %vm3451, nan, %v3460
        %v3462 = vand.u32 2147483647, %v754
        %vm3463 = vcmp.le.f32.partialorder %v3462, 0.7853982
        %vm3464 = vcmp.lt.s32.totalorder %v754, 0
        %v3465 = vand.u32 %v754, 2139095040
        %v3466 = vshrl.u32 %v3465, 23
        %v3467 = vsub.s32 %v3466, 127
        %v3468 = vand.u32 2147483647, %v754
        %v3469 = vand.u32 %v3468, 8388607
        %v3470 = vor.u32 %v3469, 8388608
        %v3471 = vsub.s32 0, %v3470
        %v3472 = vadd.s32 %v3467, 1
        %vm3473 = vcmp.gt.s32.totalorder %v3472, 0
        %v3474 = vsel %vm3473, %v3472, 0
        %v3475 = vshrl.u32 %v3474, 5
        %v3476 = vand.u32 %v3474, 31
        %v3477 = vsub.s32 32, %v3476
        %v3478 = vshrl.u32 683565275, %v3477
        %v3479 = vshll.u32 683565275, %v3476
        %v3480 = vshrl.u32 2475754826, %v3477
        %v3481 = vor.u32 %v3479, %v3480
        %v3482 = vshll.u32 2475754826, %v3476
        %v3483 = vshrl.u32 2131351028, %v3477
        %v3484 = vor.u32 %v3482, %v3483
        %v3485 = vshll.u32 2131351028, %v3476
        %v3486 = vshrl.u32 2102212464, %v3477
        %v3487 = vor.u32 %v3485, %v3486
        %v3488 = vshll.u32 2102212464, %v3476
        %v3489 = vshrl.u32 920167782, %v3477
        %v3490 = vor.u32 %v3488, %v3489
        %v3491 = vshll.u32 920167782, %v3476
        %v3492 = vshrl.u32 1326507024, %v3477
        %v3493 = vor.u32 %v3491, %v3492
        %vm3494 = vcmp.lt.s32.totalorder %v3475, 1
        %vm3495 = vcmp.lt.s32.totalorder %v3475, 2
        %vm3496 = vcmp.lt.s32.totalorder %v3475, 3
        %vm3497 = vcmp.lt.s32.totalorder %v3475, 4
        %v3498 = vsel %vm3494, %v3478, %v3481
        %v3499 = vsel %vm3497, %v3487, 2102212464
        %v3500 = vsel %vm3496, %v3484, %v3499
        %v3501 = vsel %vm3495, %v3498, %v3500
        %v3502 = vsel %vm3494, %v3481, %v3484
        %v3503 = vsel %vm3497, %v3490, 920167782
        %v3504 = vsel %vm3496, %v3487, %v3503
        %v3505 = vsel %vm3495, %v3502, %v3504
        %v3506 = vsel %vm3494, %v3484, %v3487
        %v3507 = vsel %vm3497, %v3493, 1326507024
        %v3508 = vsel %vm3496, %v3490, %v3507
        %v3509 = vsel %vm3495, %v3506, %v3508
        %v3510 = vshll.u32 %v3470, 8
        %v3511 = vmul.u32.u64.compose %v3510, %v3509
        %v3512 = vextract.low.u32 %v3511
        %v3513 = vextract.high.u32 %v3511
        %v3514 = vmul.u32.u64.compose %v3510, %v3505
        %v3515 = vextract.low.u32 %v3514
        %v3516 = vextract.high.u32 %v3514
        %v3517 = vmul.u32 %v3510, %v3501
        %v3518 = vadd.s32 %v3513, %v3515
        %vm3519 = vc.u32 %v3513, %v3515
        %v3520 = vadd.s32 %v3516, 1
        %v3521 = vsel %vm3519, %v3520, %v3516
        %v3522 = vadd.s32 %v3517, %v3521
        %v3523 = vadd.s32 %v3522, 536870912
        %v3524 = vshrl.u32 %v3523, 30
        %v3525 = vshll.u32 %v3524, 30
        %v3526 = vsub.s32 %v3522, %v3525
        %vm3527 = vcmp.lt.s32.totalorder %v3526, 0
        %v3528 = vsub.s32 0, %v3526
        %v3529 = vsel %vm3527, %v3528, %v3526
        %v3530 = vclz %v3529
        %v3531 = vsub.s32 %v3530, 2
        %vm3532 = vcmp.gt.s32.totalorder 0, %v3531
        %v3533 = vsel %vm3532, 0, %v3531
        %v3534 = vsub.s32 32, %v3533
        %v3535 = vshll.u32 %v3526, %v3533
        %v3536 = vshrl.u32 %v3518, %v3534
        %v3537 = vor.u32 %v3535, %v3536
        %v3538 = vsub.s32 4294967266, %v3533
        %v3539 = vadd.s32 %v3538, 127
        %v3540 = vshll.u32 %v3539, 23
        %v3541 = vor.u32 4788187, %v3540
        %v3542 = vand.u32 2147483647, %v3541
        %v3544 = vcvt.s32.f32 %v3537
        %v3545 = vmul.f32 %v3544, %v3542
        %v3546 = vxor.u32 %v3545, 2147483648
        %v3547 = vsel %vm3464, %v3546, %v3545
        %v3548 = vsub.s32 4, %v3524
        %v3549 = vsel %vm3464, %v3548, %v3524
        %v3550 = vsel %vm3463, %v754, %v3547
        %v3551 = vsel %vm3463, 0, %v3549
        %v3552 = vcosq.f32.pop %v3550
        %v3553 = vsinq.f32.pop %v3550
        %vm3554 = vweird.f32 %v754
        %v3555 = vand.u32 %v3551, 3
        %vm3556 = vcmp.lt.s32.totalorder %v3555, 2
        %vm3557 = vcmp.eq.s32.totalorder %v3555, 0
        %v3558 = vxor.u32 %v3553, 2147483648
        %v3559 = vsel %vm3557, %v3552, %v3558
        %vm3560 = vcmp.eq.s32.totalorder %v3555, 2
        %v3561 = vxor.u32 %v3552, 2147483648
        %v3562 = vsel %vm3560, %v3561, %v3553
        %v3563 = vsel %vm3556, %v3559, %v3562
        %v3564 = vsel %vm3554, nan, %v3563
        %v3565 = vand.u32 2147483647, %v755
        %vm3566 = vcmp.le.f32.partialorder %v3565, 0.7853982
        %vm3567 = vcmp.lt.s32.totalorder %v755, 0
        %v3568 = vand.u32 %v755, 2139095040
        %v3569 = vshrl.u32 %v3568, 23
        %v3570 = vsub.s32 %v3569, 127
        %v3571 = vand.u32 2147483647, %v755
        %v3572 = vand.u32 %v3571, 8388607
        %v3573 = vor.u32 %v3572, 8388608
        %v3574 = vsub.s32 0, %v3573
        %v3575 = vadd.s32 %v3570, 1
        %vm3576 = vcmp.gt.s32.totalorder %v3575, 0
        %v3577 = vsel %vm3576, %v3575, 0
        %v3578 = vshrl.u32 %v3577, 5
        %v3579 = vand.u32 %v3577, 31
        %v3580 = vsub.s32 32, %v3579
        %v3581 = vshrl.u32 683565275, %v3580
        %v3582 = vshll.u32 683565275, %v3579
        %v3583 = vshrl.u32 2475754826, %v3580
        %v3584 = vor.u32 %v3582, %v3583
        %v3585 = vshll.u32 2475754826, %v3579
        %v3586 = vshrl.u32 2131351028, %v3580
        %v3587 = vor.u32 %v3585, %v3586
        %v3588 = vshll.u32 2131351028, %v3579
        %v3589 = vshrl.u32 2102212464, %v3580
        %v3590 = vor.u32 %v3588, %v3589
        %v3591 = vshll.u32 2102212464, %v3579
        %v3592 = vshrl.u32 920167782, %v3580
        %v3593 = vor.u32 %v3591, %v3592
        %v3594 = vshll.u32 920167782, %v3579
        %v3595 = vshrl.u32 1326507024, %v3580
        %v3596 = vor.u32 %v3594, %v3595
        %vm3597 = vcmp.lt.s32.totalorder %v3578, 1
        %vm3598 = vcmp.lt.s32.totalorder %v3578, 2
        %vm3599 = vcmp.lt.s32.totalorder %v3578, 3
        %vm3600 = vcmp.lt.s32.totalorder %v3578, 4
        %v3601 = vsel %vm3597, %v3581, %v3584
        %v3602 = vsel %vm3600, %v3590, 2102212464
        %v3603 = vsel %vm3599, %v3587, %v3602
        %v3604 = vsel %vm3598, %v3601, %v3603
        %v3605 = vsel %vm3597, %v3584, %v3587
        %v3606 = vsel %vm3600, %v3593, 920167782
        %v3607 = vsel %vm3599, %v3590, %v3606
        %v3608 = vsel %vm3598, %v3605, %v3607
        %v3609 = vsel %vm3597, %v3587, %v3590
        %v3610 = vsel %vm3600, %v3596, 1326507024
        %v3611 = vsel %vm3599, %v3593, %v3610
        %v3612 = vsel %vm3598, %v3609, %v3611
        %v3613 = vshll.u32 %v3573, 8
        %v3614 = vmul.u32.u64.compose %v3613, %v3612
        %v3615 = vextract.low.u32 %v3614
        %v3616 = vextract.high.u32 %v3614
        %v3617 = vmul.u32.u64.compose %v3613, %v3608
        %v3618 = vextract.low.u32 %v3617
        %v3619 = vextract.high.u32 %v3617
        %v3620 = vmul.u32 %v3613, %v3604
        %v3621 = vadd.s32 %v3616, %v3618
        %vm3622 = vc.u32 %v3616, %v3618
        %v3623 = vadd.s32 %v3619, 1
        %v3624 = vsel %vm3622, %v3623, %v3619
        %v3625 = vadd.s32 %v3620, %v3624
        %v3626 = vadd.s32 %v3625, 536870912
        %v3627 = vshrl.u32 %v3626, 30
        %v3628 = vshll.u32 %v3627, 30
        %v3629 = vsub.s32 %v3625, %v3628
        %vm3630 = vcmp.lt.s32.totalorder %v3629, 0
        %v3631 = vsub.s32 0, %v3629
        %v3632 = vsel %vm3630, %v3631, %v3629
        %v3633 = vclz %v3632
        %v3634 = vsub.s32 %v3633, 2
        %vm3635 = vcmp.gt.s32.totalorder 0, %v3634
        %v3636 = vsel %vm3635, 0, %v3634
        %v3637 = vsub.s32 32, %v3636
        %v3638 = vshll.u32 %v3629, %v3636
        %v3639 = vshrl.u32 %v3621, %v3637
        %v3640 = vor.u32 %v3638, %v3639
        %v3641 = vsub.s32 4294967266, %v3636
        %v3642 = vadd.s32 %v3641, 127
        %v3643 = vshll.u32 %v3642, 23
        %v3644 = vor.u32 4788187, %v3643
        %v3645 = vand.u32 2147483647, %v3644
        %v3647 = vcvt.s32.f32 %v3640
        %v3648 = vmul.f32 %v3647, %v3645
        %v3649 = vxor.u32 %v3648, 2147483648
        %v3650 = vsel %vm3567, %v3649, %v3648
        %v3651 = vsub.s32 4, %v3627
        %v3652 = vsel %vm3567, %v3651, %v3627
        %v3653 = vsel %vm3566, %v755, %v3650
        %v3654 = vsel %vm3566, 0, %v3652
        %v3655 = vcosq.f32.pop %v3653
        %v3656 = vsinq.f32.pop %v3653
        %vm3657 = vweird.f32 %v755
        %v3658 = vand.u32 %v3654, 3
        %vm3659 = vcmp.lt.s32.totalorder %v3658, 2
        %vm3660 = vcmp.eq.s32.totalorder %v3658, 0
        %v3661 = vxor.u32 %v3656, 2147483648
        %v3662 = vsel %vm3660, %v3655, %v3661
        %vm3663 = vcmp.eq.s32.totalorder %v3658, 2
        %v3664 = vxor.u32 %v3655, 2147483648
        %v3665 = vsel %vm3663, %v3664, %v3656
        %v3666 = vsel %vm3659, %v3662, %v3665
        %v3667 = vsel %vm3657, nan, %v3666
        %v3668 = vand.u32 2147483647, %v756
        %vm3669 = vcmp.le.f32.partialorder %v3668, 0.7853982
        %vm3670 = vcmp.lt.s32.totalorder %v756, 0
        %v3671 = vand.u32 %v756, 2139095040
        %v3672 = vshrl.u32 %v3671, 23
        %v3673 = vsub.s32 %v3672, 127
        %v3674 = vand.u32 2147483647, %v756
        %v3675 = vand.u32 %v3674, 8388607
        %v3676 = vor.u32 %v3675, 8388608
        %v3677 = vsub.s32 0, %v3676
        %v3678 = vadd.s32 %v3673, 1
        %vm3679 = vcmp.gt.s32.totalorder %v3678, 0
        %v3680 = vsel %vm3679, %v3678, 0
        %v3681 = vshrl.u32 %v3680, 5
        %v3682 = vand.u32 %v3680, 31
        %v3683 = vsub.s32 32, %v3682
        %v3684 = vshrl.u32 683565275, %v3683
        %v3685 = vshll.u32 683565275, %v3682
        %v3686 = vshrl.u32 2475754826, %v3683
        %v3687 = vor.u32 %v3685, %v3686
        %v3688 = vshll.u32 2475754826, %v3682
        %v3689 = vshrl.u32 2131351028, %v3683
        %v3690 = vor.u32 %v3688, %v3689
        %v3691 = vshll.u32 2131351028, %v3682
        %v3692 = vshrl.u32 2102212464, %v3683
        %v3693 = vor.u32 %v3691, %v3692
        %v3694 = vshll.u32 2102212464, %v3682
        %v3695 = vshrl.u32 920167782, %v3683
        %v3696 = vor.u32 %v3694, %v3695
        %v3697 = vshll.u32 920167782, %v3682
        %v3698 = vshrl.u32 1326507024, %v3683
        %v3699 = vor.u32 %v3697, %v3698
        %vm3700 = vcmp.lt.s32.totalorder %v3681, 1
        %vm3701 = vcmp.lt.s32.totalorder %v3681, 2
        %vm3702 = vcmp.lt.s32.totalorder %v3681, 3
        %vm3703 = vcmp.lt.s32.totalorder %v3681, 4
        %v3704 = vsel %vm3700, %v3684, %v3687
        %v3705 = vsel %vm3703, %v3693, 2102212464
        %v3706 = vsel %vm3702, %v3690, %v3705
        %v3707 = vsel %vm3701, %v3704, %v3706
        %v3708 = vsel %vm3700, %v3687, %v3690
        %v3709 = vsel %vm3703, %v3696, 920167782
        %v3710 = vsel %vm3702, %v3693, %v3709
        %v3711 = vsel %vm3701, %v3708, %v3710
        %v3712 = vsel %vm3700, %v3690, %v3693
        %v3713 = vsel %vm3703, %v3699, 1326507024
        %v3714 = vsel %vm3702, %v3696, %v3713
        %v3715 = vsel %vm3701, %v3712, %v3714
        %v3716 = vshll.u32 %v3676, 8
        %v3717 = vmul.u32.u64.compose %v3716, %v3715
        %v3718 = vextract.low.u32 %v3717
        %v3719 = vextract.high.u32 %v3717
        %v3720 = vmul.u32.u64.compose %v3716, %v3711
        %v3721 = vextract.low.u32 %v3720
        %v3722 = vextract.high.u32 %v3720
        %v3723 = vmul.u32 %v3716, %v3707
        %v3724 = vadd.s32 %v3719, %v3721
        %vm3725 = vc.u32 %v3719, %v3721
        %v3726 = vadd.s32 %v3722, 1
        %v3727 = vsel %vm3725, %v3726, %v3722
        %v3728 = vadd.s32 %v3723, %v3727
        %v3729 = vadd.s32 %v3728, 536870912
        %v3730 = vshrl.u32 %v3729, 30
        %v3731 = vshll.u32 %v3730, 30
        %v3732 = vsub.s32 %v3728, %v3731
        %vm3733 = vcmp.lt.s32.totalorder %v3732, 0
        %v3734 = vsub.s32 0, %v3732
        %v3735 = vsel %vm3733, %v3734, %v3732
        %v3736 = vclz %v3735
        %v3737 = vsub.s32 %v3736, 2
        %vm3738 = vcmp.gt.s32.totalorder 0, %v3737
        %v3739 = vsel %vm3738, 0, %v3737
        %v3740 = vsub.s32 32, %v3739
        %v3741 = vshll.u32 %v3732, %v3739
        %v3742 = vshrl.u32 %v3724, %v3740
        %v3743 = vor.u32 %v3741, %v3742
        %v3744 = vsub.s32 4294967266, %v3739
        %v3745 = vadd.s32 %v3744, 127
        %v3746 = vshll.u32 %v3745, 23
        %v3747 = vor.u32 4788187, %v3746
        %v3748 = vand.u32 2147483647, %v3747
        %v3750 = vcvt.s32.f32 %v3743
        %v3751 = vmul.f32 %v3750, %v3748
        %v3752 = vxor.u32 %v3751, 2147483648
        %v3753 = vsel %vm3670, %v3752, %v3751
        %v3754 = vsub.s32 4, %v3730
        %v3755 = vsel %vm3670, %v3754, %v3730
        %v3756 = vsel %vm3669, %v756, %v3753
        %v3757 = vsel %vm3669, 0, %v3755
        %v3758 = vcosq.f32.pop %v3756
        %v3759 = vsinq.f32.pop %v3756
        %vm3760 = vweird.f32 %v756
        %v3761 = vand.u32 %v3757, 3
        %vm3762 = vcmp.lt.s32.totalorder %v3761, 2
        %vm3763 = vcmp.eq.s32.totalorder %v3761, 0
        %v3764 = vxor.u32 %v3759, 2147483648
        %v3765 = vsel %vm3763, %v3758, %v3764
        %vm3766 = vcmp.eq.s32.totalorder %v3761, 2
        %v3767 = vxor.u32 %v3758, 2147483648
        %v3768 = vsel %vm3766, %v3767, %v3759
        %v3769 = vsel %vm3762, %v3765, %v3768
        %v3770 = vsel %vm3760, nan, %v3769
        %v3771 = vand.u32 2147483647, %v757
        %vm3772 = vcmp.le.f32.partialorder %v3771, 0.7853982
        %vm3773 = vcmp.lt.s32.totalorder %v757, 0
        %v3774 = vand.u32 %v757, 2139095040
        %v3775 = vshrl.u32 %v3774, 23
        %v3776 = vsub.s32 %v3775, 127
        %v3777 = vand.u32 2147483647, %v757
        %v3778 = vand.u32 %v3777, 8388607
        %v3779 = vor.u32 %v3778, 8388608
        %v3780 = vsub.s32 0, %v3779
        %v3781 = vadd.s32 %v3776, 1
        %vm3782 = vcmp.gt.s32.totalorder %v3781, 0
        %v3783 = vsel %vm3782, %v3781, 0
        %v3784 = vshrl.u32 %v3783, 5
        %v3785 = vand.u32 %v3783, 31
        %v3786 = vsub.s32 32, %v3785
        %v3787 = vshrl.u32 683565275, %v3786
        %v3788 = vshll.u32 683565275, %v3785
        %v3789 = vshrl.u32 2475754826, %v3786
        %v3790 = vor.u32 %v3788, %v3789
        %v3791 = vshll.u32 2475754826, %v3785
        %v3792 = vshrl.u32 2131351028, %v3786
        %v3793 = vor.u32 %v3791, %v3792
        %v3794 = vshll.u32 2131351028, %v3785
        %v3795 = vshrl.u32 2102212464, %v3786
        %v3796 = vor.u32 %v3794, %v3795
        %v3797 = vshll.u32 2102212464, %v3785
        %v3798 = vshrl.u32 920167782, %v3786
        %v3799 = vor.u32 %v3797, %v3798
        %v3800 = vshll.u32 920167782, %v3785
        %v3801 = vshrl.u32 1326507024, %v3786
        %v3802 = vor.u32 %v3800, %v3801
        %vm3803 = vcmp.lt.s32.totalorder %v3784, 1
        %vm3804 = vcmp.lt.s32.totalorder %v3784, 2
        %vm3805 = vcmp.lt.s32.totalorder %v3784, 3
        %vm3806 = vcmp.lt.s32.totalorder %v3784, 4
        %v3807 = vsel %vm3803, %v3787, %v3790
        %v3808 = vsel %vm3806, %v3796, 2102212464
        %v3809 = vsel %vm3805, %v3793, %v3808
        %v3810 = vsel %vm3804, %v3807, %v3809
        %v3811 = vsel %vm3803, %v3790, %v3793
        %v3812 = vsel %vm3806, %v3799, 920167782
        %v3813 = vsel %vm3805, %v3796, %v3812
        %v3814 = vsel %vm3804, %v3811, %v3813
        %v3815 = vsel %vm3803, %v3793, %v3796
        %v3816 = vsel %vm3806, %v3802, 1326507024
        %v3817 = vsel %vm3805, %v3799, %v3816
        %v3818 = vsel %vm3804, %v3815, %v3817
        %v3819 = vshll.u32 %v3779, 8
        %v3820 = vmul.u32.u64.compose %v3819, %v3818
        %v3821 = vextract.low.u32 %v3820
        %v3822 = vextract.high.u32 %v3820
        %v3823 = vmul.u32.u64.compose %v3819, %v3814
        %v3824 = vextract.low.u32 %v3823
        %v3825 = vextract.high.u32 %v3823
        %v3826 = vmul.u32 %v3819, %v3810
        %v3827 = vadd.s32 %v3822, %v3824
        %vm3828 = vc.u32 %v3822, %v3824
        %v3829 = vadd.s32 %v3825, 1
        %v3830 = vsel %vm3828, %v3829, %v3825
        %v3831 = vadd.s32 %v3826, %v3830
        %v3832 = vadd.s32 %v3831, 536870912
        %v3833 = vshrl.u32 %v3832, 30
        %v3834 = vshll.u32 %v3833, 30
        %v3835 = vsub.s32 %v3831, %v3834
        %vm3836 = vcmp.lt.s32.totalorder %v3835, 0
        %v3837 = vsub.s32 0, %v3835
        %v3838 = vsel %vm3836, %v3837, %v3835
        %v3839 = vclz %v3838
        %v3840 = vsub.s32 %v3839, 2
        %vm3841 = vcmp.gt.s32.totalorder 0, %v3840
        %v3842 = vsel %vm3841, 0, %v3840
        %v3843 = vsub.s32 32, %v3842
        %v3844 = vshll.u32 %v3835, %v3842
        %v3845 = vshrl.u32 %v3827, %v3843
        %v3846 = vor.u32 %v3844, %v3845
        %v3847 = vsub.s32 4294967266, %v3842
        %v3848 = vadd.s32 %v3847, 127
        %v3849 = vshll.u32 %v3848, 23
        %v3850 = vor.u32 4788187, %v3849
        %v3851 = vand.u32 2147483647, %v3850
        %v3853 = vcvt.s32.f32 %v3846
        %v3854 = vmul.f32 %v3853, %v3851
        %v3855 = vxor.u32 %v3854, 2147483648
        %v3856 = vsel %vm3773, %v3855, %v3854
        %v3857 = vsub.s32 4, %v3833
        %v3858 = vsel %vm3773, %v3857, %v3833
        %v3859 = vsel %vm3772, %v757, %v3856
        %v3860 = vsel %vm3772, 0, %v3858
        %v3861 = vcosq.f32.pop %v3859
        %v3862 = vsinq.f32.pop %v3859
        %vm3863 = vweird.f32 %v757
        %v3864 = vand.u32 %v3860, 3
        %vm3865 = vcmp.lt.s32.totalorder %v3864, 2
        %vm3866 = vcmp.eq.s32.totalorder %v3864, 0
        %v3867 = vxor.u32 %v3862, 2147483648
        %v3868 = vsel %vm3866, %v3861, %v3867
        %vm3869 = vcmp.eq.s32.totalorder %v3864, 2
        %v3870 = vxor.u32 %v3861, 2147483648
        %v3871 = vsel %vm3869, %v3870, %v3862
        %v3872 = vsel %vm3865, %v3868, %v3871
        %v3873 = vsel %vm3863, nan, %v3872
        %v3874 = vand.u32 2147483647, %v758
        %vm3875 = vcmp.le.f32.partialorder %v3874, 0.7853982
        %vm3876 = vcmp.lt.s32.totalorder %v758, 0
        %v3877 = vand.u32 %v758, 2139095040
        %v3878 = vshrl.u32 %v3877, 23
        %v3879 = vsub.s32 %v3878, 127
        %v3880 = vand.u32 2147483647, %v758
        %v3881 = vand.u32 %v3880, 8388607
        %v3882 = vor.u32 %v3881, 8388608
        %v3883 = vsub.s32 0, %v3882
        %v3884 = vadd.s32 %v3879, 1
        %vm3885 = vcmp.gt.s32.totalorder %v3884, 0
        %v3886 = vsel %vm3885, %v3884, 0
        %v3887 = vshrl.u32 %v3886, 5
        %v3888 = vand.u32 %v3886, 31
        %v3889 = vsub.s32 32, %v3888
        %v3890 = vshrl.u32 683565275, %v3889
        %v3891 = vshll.u32 683565275, %v3888
        %v3892 = vshrl.u32 2475754826, %v3889
        %v3893 = vor.u32 %v3891, %v3892
        %v3894 = vshll.u32 2475754826, %v3888
        %v3895 = vshrl.u32 2131351028, %v3889
        %v3896 = vor.u32 %v3894, %v3895
        %v3897 = vshll.u32 2131351028, %v3888
        %v3898 = vshrl.u32 2102212464, %v3889
        %v3899 = vor.u32 %v3897, %v3898
        %v3900 = vshll.u32 2102212464, %v3888
        %v3901 = vshrl.u32 920167782, %v3889
        %v3902 = vor.u32 %v3900, %v3901
        %v3903 = vshll.u32 920167782, %v3888
        %v3904 = vshrl.u32 1326507024, %v3889
        %v3905 = vor.u32 %v3903, %v3904
        %vm3906 = vcmp.lt.s32.totalorder %v3887, 1
        %vm3907 = vcmp.lt.s32.totalorder %v3887, 2
        %vm3908 = vcmp.lt.s32.totalorder %v3887, 3
        %vm3909 = vcmp.lt.s32.totalorder %v3887, 4
        %v3910 = vsel %vm3906, %v3890, %v3893
        %v3911 = vsel %vm3909, %v3899, 2102212464
        %v3912 = vsel %vm3908, %v3896, %v3911
        %v3913 = vsel %vm3907, %v3910, %v3912
        %v3914 = vsel %vm3906, %v3893, %v3896
        %v3915 = vsel %vm3909, %v3902, 920167782
        %v3916 = vsel %vm3908, %v3899, %v3915
        %v3917 = vsel %vm3907, %v3914, %v3916
        %v3918 = vsel %vm3906, %v3896, %v3899
        %v3919 = vsel %vm3909, %v3905, 1326507024
        %v3920 = vsel %vm3908, %v3902, %v3919
        %v3921 = vsel %vm3907, %v3918, %v3920
        %v3922 = vshll.u32 %v3882, 8
        %v3923 = vmul.u32.u64.compose %v3922, %v3921
        %v3924 = vextract.low.u32 %v3923
        %v3925 = vextract.high.u32 %v3923
        %v3926 = vmul.u32.u64.compose %v3922, %v3917
        %v3927 = vextract.low.u32 %v3926
        %v3928 = vextract.high.u32 %v3926
        %v3929 = vmul.u32 %v3922, %v3913
        %v3930 = vadd.s32 %v3925, %v3927
        %vm3931 = vc.u32 %v3925, %v3927
        %v3932 = vadd.s32 %v3928, 1
        %v3933 = vsel %vm3931, %v3932, %v3928
        %v3934 = vadd.s32 %v3929, %v3933
        %v3935 = vadd.s32 %v3934, 536870912
        %v3936 = vshrl.u32 %v3935, 30
        %v3937 = vshll.u32 %v3936, 30
        %v3938 = vsub.s32 %v3934, %v3937
        %vm3939 = vcmp.lt.s32.totalorder %v3938, 0
        %v3940 = vsub.s32 0, %v3938
        %v3941 = vsel %vm3939, %v3940, %v3938
        %v3942 = vclz %v3941
        %v3943 = vsub.s32 %v3942, 2
        %vm3944 = vcmp.gt.s32.totalorder 0, %v3943
        %v3945 = vsel %vm3944, 0, %v3943
        %v3946 = vsub.s32 32, %v3945
        %v3947 = vshll.u32 %v3938, %v3945
        %v3948 = vshrl.u32 %v3930, %v3946
        %v3949 = vor.u32 %v3947, %v3948
        %v3950 = vsub.s32 4294967266, %v3945
        %v3951 = vadd.s32 %v3950, 127
        %v3952 = vshll.u32 %v3951, 23
        %v3953 = vor.u32 4788187, %v3952
        %v3954 = vand.u32 2147483647, %v3953
        %v3956 = vcvt.s32.f32 %v3949
        %v3957 = vmul.f32 %v3956, %v3954
        %v3958 = vxor.u32 %v3957, 2147483648
        %v3959 = vsel %vm3876, %v3958, %v3957
        %v3960 = vsub.s32 4, %v3936
        %v3961 = vsel %vm3876, %v3960, %v3936
        %v3962 = vsel %vm3875, %v758, %v3959
        %v3963 = vsel %vm3875, 0, %v3961
        %v3964 = vcosq.f32.pop %v3962
        %v3965 = vsinq.f32.pop %v3962
        %vm3966 = vweird.f32 %v758
        %v3967 = vand.u32 %v3963, 3
        %vm3968 = vcmp.lt.s32.totalorder %v3967, 2
        %vm3969 = vcmp.eq.s32.totalorder %v3967, 0
        %v3970 = vxor.u32 %v3965, 2147483648
        %v3971 = vsel %vm3969, %v3964, %v3970
        %vm3972 = vcmp.eq.s32.totalorder %v3967, 2
        %v3973 = vxor.u32 %v3964, 2147483648
        %v3974 = vsel %vm3972, %v3973, %v3965
        %v3975 = vsel %vm3968, %v3971, %v3974
        %v3976 = vsel %vm3966, nan, %v3975
        %v3977 = vand.u32 2147483647, %v759
        %vm3978 = vcmp.le.f32.partialorder %v3977, 0.7853982
        %vm3979 = vcmp.lt.s32.totalorder %v759, 0
        %v3980 = vand.u32 %v759, 2139095040
        %v3981 = vshrl.u32 %v3980, 23
        %v3982 = vsub.s32 %v3981, 127
        %v3983 = vand.u32 2147483647, %v759
        %v3984 = vand.u32 %v3983, 8388607
        %v3985 = vor.u32 %v3984, 8388608
        %v3986 = vsub.s32 0, %v3985
        %v3987 = vadd.s32 %v3982, 1
        %vm3988 = vcmp.gt.s32.totalorder %v3987, 0
        %v3989 = vsel %vm3988, %v3987, 0
        %v3990 = vshrl.u32 %v3989, 5
        %v3991 = vand.u32 %v3989, 31
        %v3992 = vsub.s32 32, %v3991
        %v3993 = vshrl.u32 683565275, %v3992
        %v3994 = vshll.u32 683565275, %v3991
        %v3995 = vshrl.u32 2475754826, %v3992
        %v3996 = vor.u32 %v3994, %v3995
        %v3997 = vshll.u32 2475754826, %v3991
        %v3998 = vshrl.u32 2131351028, %v3992
        %v3999 = vor.u32 %v3997, %v3998
        %v4000 = vshll.u32 2131351028, %v3991
        %v4001 = vshrl.u32 2102212464, %v3992
        %v4002 = vor.u32 %v4000, %v4001
        %v4003 = vshll.u32 2102212464, %v3991
        %v4004 = vshrl.u32 920167782, %v3992
        %v4005 = vor.u32 %v4003, %v4004
        %v4006 = vshll.u32 920167782, %v3991
        %v4007 = vshrl.u32 1326507024, %v3992
        %v4008 = vor.u32 %v4006, %v4007
        %vm4009 = vcmp.lt.s32.totalorder %v3990, 1
        %vm4010 = vcmp.lt.s32.totalorder %v3990, 2
        %vm4011 = vcmp.lt.s32.totalorder %v3990, 3
        %vm4012 = vcmp.lt.s32.totalorder %v3990, 4
        %v4013 = vsel %vm4009, %v3993, %v3996
        %v4014 = vsel %vm4012, %v4002, 2102212464
        %v4015 = vsel %vm4011, %v3999, %v4014
        %v4016 = vsel %vm4010, %v4013, %v4015
        %v4017 = vsel %vm4009, %v3996, %v3999
        %v4018 = vsel %vm4012, %v4005, 920167782
        %v4019 = vsel %vm4011, %v4002, %v4018
        %v4020 = vsel %vm4010, %v4017, %v4019
        %v4021 = vsel %vm4009, %v3999, %v4002
        %v4022 = vsel %vm4012, %v4008, 1326507024
        %v4023 = vsel %vm4011, %v4005, %v4022
        %v4024 = vsel %vm4010, %v4021, %v4023
        %v4025 = vshll.u32 %v3985, 8
        %v4026 = vmul.u32.u64.compose %v4025, %v4024
        %v4027 = vextract.low.u32 %v4026
        %v4028 = vextract.high.u32 %v4026
        %v4029 = vmul.u32.u64.compose %v4025, %v4020
        %v4030 = vextract.low.u32 %v4029
        %v4031 = vextract.high.u32 %v4029
        %v4032 = vmul.u32 %v4025, %v4016
        %v4033 = vadd.s32 %v4028, %v4030
        %vm4034 = vc.u32 %v4028, %v4030
        %v4035 = vadd.s32 %v4031, 1
        %v4036 = vsel %vm4034, %v4035, %v4031
        %v4037 = vadd.s32 %v4032, %v4036
        %v4038 = vadd.s32 %v4037, 536870912
        %v4039 = vshrl.u32 %v4038, 30
        %v4040 = vshll.u32 %v4039, 30
        %v4041 = vsub.s32 %v4037, %v4040
        %vm4042 = vcmp.lt.s32.totalorder %v4041, 0
        %v4043 = vsub.s32 0, %v4041
        %v4044 = vsel %vm4042, %v4043, %v4041
        %v4045 = vclz %v4044
        %v4046 = vsub.s32 %v4045, 2
        %vm4047 = vcmp.gt.s32.totalorder 0, %v4046
        %v4048 = vsel %vm4047, 0, %v4046
        %v4049 = vsub.s32 32, %v4048
        %v4050 = vshll.u32 %v4041, %v4048
        %v4051 = vshrl.u32 %v4033, %v4049
        %v4052 = vor.u32 %v4050, %v4051
        %v4053 = vsub.s32 4294967266, %v4048
        %v4054 = vadd.s32 %v4053, 127
        %v4055 = vshll.u32 %v4054, 23
        %v4056 = vor.u32 4788187, %v4055
        %v4057 = vand.u32 2147483647, %v4056
        %v4059 = vcvt.s32.f32 %v4052
        %v4060 = vmul.f32 %v4059, %v4057
        %v4061 = vxor.u32 %v4060, 2147483648
        %v4062 = vsel %vm3979, %v4061, %v4060
        %v4063 = vsub.s32 4, %v4039
        %v4064 = vsel %vm3979, %v4063, %v4039
        %v4065 = vsel %vm3978, %v759, %v4062
        %v4066 = vsel %vm3978, 0, %v4064
        %v4067 = vcosq.f32.pop %v4065
        %v4068 = vsinq.f32.pop %v4065
        %vm4069 = vweird.f32 %v759
        %v4070 = vand.u32 %v4066, 3
        %vm4071 = vcmp.lt.s32.totalorder %v4070, 2
        %vm4072 = vcmp.eq.s32.totalorder %v4070, 0
        %v4073 = vxor.u32 %v4068, 2147483648
        %v4074 = vsel %vm4072, %v4067, %v4073
        %vm4075 = vcmp.eq.s32.totalorder %v4070, 2
        %v4076 = vxor.u32 %v4067, 2147483648
        %v4077 = vsel %vm4075, %v4076, %v4068
        %v4078 = vsel %vm4071, %v4074, %v4077
        %v4079 = vsel %vm4069, nan, %v4078
        %v4080 = vpack.c.bf16 %v2637, %v2534
        %v4081 = vpack.c.bf16 %v2843, %v2740
        %v4082 = vpack.c.bf16 %v3049, %v2946
        %v4083 = vpack.c.bf16 %v3255, %v3152
        %v4084 = vpack.c.bf16 %v3461, %v3358
        %v4085 = vpack.c.bf16 %v3667, %v3564
        %v4086 = vpack.c.bf16 %v3873, %v3770
        %v4087 = vpack.c.bf16 %v4079, %v3976
        %v4088 = vld [vmem:[%s12] sm:$0xff]
        %v4089 = vld [vmem:[%s2] sm:$0xf]
        %v4090 = vld [vmem:[%s2 + $0x4] sm:$0xf]
        %v4091 = vld [vmem:[%s3] sm:$0xf]
        %v4092 = vld [vmem:[%s3 + $0x4] sm:$0xf]
        %v4095 = vunpack.c.l.b16 %v4091
        %v4096 = vunpack.c.l.b16 %v4092
        %v4097 = vpack.c.b16 %v4096, %v4095
        %vm4099 = vcmask 130048
        %v4101 = vsel %vm4099, %v4080, 0
        %v4104 = vsel %vm4099, %v4081, 0
        %v4107 = vsel %vm4099, %v4082, 0
        %v4110 = vsel %vm4099, %v4083, 0
        %v4113 = vsel %vm4099, %v4084, 0
        %v4116 = vsel %vm4099, %v4085, 0
        %v4119 = vsel %vm4099, %v4086, 0
        %v4122 = vsel %vm4099, %v4087, 0
        %4124 = vmatprep.subr.bf16.mxu0 0
        %4125 = vmatpush1.bf16.msra.mxu0 0
        %4126 = vmatprep.subr.bf16.mxu0 0
        %4127 = vmatpush1.bf16.msra.mxu0 0
        %4128 = vmatprep.subr.bf16.mxu0 0
        %4129 = vmatpush1.bf16.msra.mxu0 0
        %4130 = vmatprep.subr.bf16.mxu0 0
        %4131 = vmatpush1.bf16.msra.mxu0 0
        %4132 = vmatprep.subr.bf16.mxu0 0
        %4133 = vmatpush1.bf16.msra.mxu0 0
        %4134 = vmatprep.subr.bf16.mxu0 0
        %4135 = vmatpush1.bf16.msra.mxu0 0
        %4136 = vmatprep.subr.bf16.mxu0 0
        %4137 = vmatpush1.bf16.msra.mxu0 0
        %4138 = vmatprep.subr.bf16.mxu0 0
        %4139 = vmatpush1.bf16.msra.mxu0 %v4097
        %4140 = vmatprep.subr.bf16.mxu0 0
        %4141 = vmatpush2.bf16.msra.mxu0 0
        %4142 = vmatprep.subr.bf16.mxu0 0
        %4143 = vmatpush2.bf16.msra.mxu0 0
        %4144 = vmatprep.subr.bf16.mxu0 0
        %4145 = vmatpush2.bf16.msra.mxu0 0
        %4146 = vmatprep.subr.bf16.mxu0 0
        %4147 = vmatpush2.bf16.msra.mxu0 0
        %4148 = vmatprep.subr.bf16.mxu0 0
        %4149 = vmatpush2.bf16.msra.mxu0 0
        %4150 = vmatprep.subr.bf16.mxu0 0
        %4151 = vmatpush2.bf16.msra.mxu0 0
        %4152 = vmatprep.subr.bf16.mxu0 0
        %4153 = vmatpush2.bf16.msra.mxu0 0
        %4154 = vmatprep.subr.bf16.mxu0 0
        %4155 = vmatpush2.bf16.msra.mxu0 0
        %4156 = vmatprep.mubr.bf16.mxu0 0
        %4157 = vmatmul.mubr.bf16.gmra.mxu0 %v4101
        %v4158 = vpop.f32.mrf.mxu0
        %v4159 = vadd.f32 0.0, %v4158
        %v4160 = vpop.f32.mrf.mxu0
        %v4161 = vpop.f32.mrf.mxu0
        %v4162 = vadd.f32 0.0, %v4161
        %v4163 = vpop.f32.mrf.mxu0
        %4164 = vmatprep.mubr.bf16.mxu0 0
        %4165 = vmatmul.mubr.bf16.gmra.mxu0 %v4104
        %v4166 = vpop.f32.mrf.mxu0
        %v4167 = vadd.f32 0.0, %v4166
        %v4168 = vpop.f32.mrf.mxu0
        %v4169 = vpop.f32.mrf.mxu0
        %v4170 = vadd.f32 0.0, %v4169
        %v4171 = vpop.f32.mrf.mxu0
        %4172 = vmatprep.mubr.bf16.mxu0 0
        %4173 = vmatmul.mubr.bf16.gmra.mxu0 %v4107
        %v4174 = vpop.f32.mrf.mxu0
        %v4175 = vadd.f32 0.0, %v4174
        %v4176 = vpop.f32.mrf.mxu0
        %v4177 = vpop.f32.mrf.mxu0
        %v4178 = vadd.f32 0.0, %v4177
        %v4179 = vpop.f32.mrf.mxu0
        %4180 = vmatprep.mubr.bf16.mxu0 0
        %4181 = vmatmul.mubr.bf16.gmra.mxu0 %v4110
        %v4182 = vpop.f32.mrf.mxu0
        %v4183 = vadd.f32 0.0, %v4182
        %v4184 = vpop.f32.mrf.mxu0
        %v4185 = vpop.f32.mrf.mxu0
        %v4186 = vadd.f32 0.0, %v4185
        %v4187 = vpop.f32.mrf.mxu0
        %4188 = vmatprep.mubr.bf16.mxu0 0
        %4189 = vmatmul.mubr.bf16.gmra.mxu0 %v4113
        %v4190 = vpop.f32.mrf.mxu0
        %v4191 = vadd.f32 0.0, %v4190
        %v4192 = vpop.f32.mrf.mxu0
        %v4193 = vpop.f32.mrf.mxu0
        %v4194 = vadd.f32 0.0, %v4193
        %v4195 = vpop.f32.mrf.mxu0
        %4196 = vmatprep.mubr.bf16.mxu0 0
        %4197 = vmatmul.mubr.bf16.gmra.mxu0 %v4116
        %v4198 = vpop.f32.mrf.mxu0
        %v4199 = vadd.f32 0.0, %v4198
        %v4200 = vpop.f32.mrf.mxu0
        %v4201 = vpop.f32.mrf.mxu0
        %v4202 = vadd.f32 0.0, %v4201
        %v4203 = vpop.f32.mrf.mxu0
        %4204 = vmatprep.mubr.bf16.mxu0 0
        %4205 = vmatmul.mubr.bf16.gmra.mxu0 %v4119
        %v4206 = vpop.f32.mrf.mxu0
        %v4207 = vadd.f32 0.0, %v4206
        %v4208 = vpop.f32.mrf.mxu0
        %v4209 = vpop.f32.mrf.mxu0
        %v4210 = vadd.f32 0.0, %v4209
        %v4211 = vpop.f32.mrf.mxu0
        %4212 = vmatprep.mubr.bf16.mxu0 0
        %4213 = vmatmul.mubr.bf16.gmra.mxu0 %v4122
        %v4214 = vpop.f32.mrf.mxu0
        %v4215 = vadd.f32 0.0, %v4214
        %v4216 = vpop.f32.mrf.mxu0
        %v4217 = vpop.f32.mrf.mxu0
        %v4218 = vadd.f32 0.0, %v4217
        %v4219 = vpop.f32.mrf.mxu0
        %4220 = vdwg.mxu0
        %v4223 = vunpack.c.l.b16 %v4089
        %v4224 = vunpack.c.l.b16 %v4090
        %v4225 = vpack.c.b16 %v4224, %v4223
        %v4228 = vsel %vm4099, %v2424, 0
        %v4231 = vsel %vm4099, %v2425, 0
        %v4234 = vsel %vm4099, %v2426, 0
        %v4237 = vsel %vm4099, %v2427, 0
        %v4240 = vsel %vm4099, %v2428, 0
        %v4243 = vsel %vm4099, %v2429, 0
        %v4246 = vsel %vm4099, %v2430, 0
        %v4249 = vsel %vm4099, %v2431, 0
        %4251 = vmatprep.subr.bf16.mxu0 0
        %4252 = vmatpush1.bf16.msra.mxu0 0
        %4253 = vmatprep.subr.bf16.mxu0 0
        %4254 = vmatpush1.bf16.msra.mxu0 0
        %4255 = vmatprep.subr.bf16.mxu0 0
        %4256 = vmatpush1.bf16.msra.mxu0 0
        %4257 = vmatprep.subr.bf16.mxu0 0
        %4258 = vmatpush1.bf16.msra.mxu0 0
        %4259 = vmatprep.subr.bf16.mxu0 0
        %4260 = vmatpush1.bf16.msra.mxu0 0
        %4261 = vmatprep.subr.bf16.mxu0 0
        %4262 = vmatpush1.bf16.msra.mxu0 0
        %4263 = vmatprep.subr.bf16.mxu0 0
        %4264 = vmatpush1.bf16.msra.mxu0 0
        %4265 = vmatprep.subr.bf16.mxu0 0
        %4266 = vmatpush1.bf16.msra.mxu0 %v4225
        %4267 = vmatprep.subr.bf16.mxu0 0
        %4268 = vmatpush2.bf16.msra.mxu0 0
        %4269 = vmatprep.subr.bf16.mxu0 0
        %4270 = vmatpush2.bf16.msra.mxu0 0
        %4271 = vmatprep.subr.bf16.mxu0 0
        %4272 = vmatpush2.bf16.msra.mxu0 0
        %4273 = vmatprep.subr.bf16.mxu0 0
        %4274 = vmatpush2.bf16.msra.mxu0 0
        %4275 = vmatprep.subr.bf16.mxu0 0
        %4276 = vmatpush2.bf16.msra.mxu0 0
        %4277 = vmatprep.subr.bf16.mxu0 0
        %4278 = vmatpush2.bf16.msra.mxu0 0
        %4279 = vmatprep.subr.bf16.mxu0 0
        %4280 = vmatpush2.bf16.msra.mxu0 0
        %4281 = vmatprep.subr.bf16.mxu0 0
        %4282 = vmatpush2.bf16.msra.mxu0 0
        %4283 = vmatprep.mubr.bf16.mxu0 0
        %4284 = vmatmul.mubr.bf16.gmra.mxu0 %v4228
        %v4285 = vpop.f32.mrf.mxu0
        %v4286 = vadd.f32 %v4159, %v4285
        %v4287 = vpop.f32.mrf.mxu0
        %v4288 = vpop.f32.mrf.mxu0
        %v4289 = vadd.f32 %v4162, %v4288
        %v4290 = vpop.f32.mrf.mxu0
        %4291 = vmatprep.mubr.bf16.mxu0 0
        %4292 = vmatmul.mubr.bf16.gmra.mxu0 %v4231
        %v4293 = vpop.f32.mrf.mxu0
        %v4294 = vadd.f32 %v4167, %v4293
        %v4295 = vpop.f32.mrf.mxu0
        %v4296 = vpop.f32.mrf.mxu0
        %v4297 = vadd.f32 %v4170, %v4296
        %v4298 = vpop.f32.mrf.mxu0
        %4299 = vmatprep.mubr.bf16.mxu0 0
        %4300 = vmatmul.mubr.bf16.gmra.mxu0 %v4234
        %v4301 = vpop.f32.mrf.mxu0
        %v4302 = vadd.f32 %v4175, %v4301
        %v4303 = vpop.f32.mrf.mxu0
        %v4304 = vpop.f32.mrf.mxu0
        %v4305 = vadd.f32 %v4178, %v4304
        %v4306 = vpop.f32.mrf.mxu0
        %4307 = vmatprep.mubr.bf16.mxu0 0
        %4308 = vmatmul.mubr.bf16.gmra.mxu0 %v4237
        %v4309 = vpop.f32.mrf.mxu0
        %v4310 = vadd.f32 %v4183, %v4309
        %v4311 = vpop.f32.mrf.mxu0
        %v4312 = vpop.f32.mrf.mxu0
        %v4313 = vadd.f32 %v4186, %v4312
        %v4314 = vpop.f32.mrf.mxu0
        %4315 = vmatprep.mubr.bf16.mxu0 0
        %4316 = vmatmul.mubr.bf16.gmra.mxu0 %v4240
        %v4317 = vpop.f32.mrf.mxu0
        %v4318 = vadd.f32 %v4191, %v4317
        %v4319 = vpop.f32.mrf.mxu0
        %v4320 = vpop.f32.mrf.mxu0
        %v4321 = vadd.f32 %v4194, %v4320
        %v4322 = vpop.f32.mrf.mxu0
        %4323 = vmatprep.mubr.bf16.mxu0 0
        %4324 = vmatmul.mubr.bf16.gmra.mxu0 %v4243
        %v4325 = vpop.f32.mrf.mxu0
        %v4326 = vadd.f32 %v4199, %v4325
        %v4327 = vpop.f32.mrf.mxu0
        %v4328 = vpop.f32.mrf.mxu0
        %v4329 = vadd.f32 %v4202, %v4328
        %v4330 = vpop.f32.mrf.mxu0
        %4331 = vmatprep.mubr.bf16.mxu0 0
        %4332 = vmatmul.mubr.bf16.gmra.mxu0 %v4246
        %v4333 = vpop.f32.mrf.mxu0
        %v4334 = vadd.f32 %v4207, %v4333
        %v4335 = vpop.f32.mrf.mxu0
        %v4336 = vpop.f32.mrf.mxu0
        %v4337 = vadd.f32 %v4210, %v4336
        %v4338 = vpop.f32.mrf.mxu0
        %4339 = vmatprep.mubr.bf16.mxu0 0
        %4340 = vmatmul.mubr.bf16.gmra.mxu0 %v4249
        %v4341 = vpop.f32.mrf.mxu0
        %v4342 = vadd.f32 %v4215, %v4341
        %v4343 = vpop.f32.mrf.mxu0
        %v4344 = vpop.f32.mrf.mxu0
        %v4345 = vadd.f32 %v4218, %v4344
        %v4346 = vpop.f32.mrf.mxu0
        %4347 = vdwg.mxu0
        %v4348 = vlaneseq
        %v4349 = vshrl.u32 %v4348, 7
        %v4350 = vsub.s32 0, %v4349
        %v4351 = vrot.slane %v4088, %v4350
        %v4352 = vadd.f32 %v4286, %v4351
        %v4353 = vadd.f32 %v4289, %v4351
        %v4354 = vadd.f32 %v4294, %v4351
        %v4355 = vadd.f32 %v4297, %v4351
        %v4356 = vadd.f32 %v4302, %v4351
        %v4357 = vadd.f32 %v4305, %v4351
        %v4358 = vadd.f32 %v4310, %v4351
        %v4359 = vadd.f32 %v4313, %v4351
        %v4360 = vadd.f32 %v4318, %v4351
        %v4361 = vadd.f32 %v4321, %v4351
        %v4362 = vadd.f32 %v4326, %v4351
        %v4363 = vadd.f32 %v4329, %v4351
        %v4364 = vadd.f32 %v4334, %v4351
        %v4365 = vadd.f32 %v4337, %v4351
        %v4366 = vadd.f32 %v4342, %v4351
        %v4367 = vadd.f32 %v4345, %v4351
        %v4368 = vmax.f32 %v4352, 0.0
        %v4369 = vmax.f32 %v4353, 0.0
        %v4370 = vmax.f32 %v4354, 0.0
        %v4371 = vmax.f32 %v4355, 0.0
        %v4372 = vmax.f32 %v4356, 0.0
        %v4373 = vmax.f32 %v4357, 0.0
        %v4374 = vmax.f32 %v4358, 0.0
        %v4375 = vmax.f32 %v4359, 0.0
        %v4376 = vmax.f32 %v4360, 0.0
        %v4377 = vmax.f32 %v4361, 0.0
        %v4378 = vmax.f32 %v4362, 0.0
        %v4379 = vmax.f32 %v4363, 0.0
        %v4380 = vmax.f32 %v4364, 0.0
        %v4381 = vmax.f32 %v4365, 0.0
        %v4382 = vmax.f32 %v4366, 0.0
        %v4383 = vmax.f32 %v4367, 0.0
        %v4384 = vpack.c.bf16 %v4369, %v4368
        %v4385 = vpack.c.bf16 %v4371, %v4370
        %v4386 = vpack.c.bf16 %v4373, %v4372
        %v4387 = vpack.c.bf16 %v4375, %v4374
        %v4388 = vpack.c.bf16 %v4377, %v4376
        %v4389 = vpack.c.bf16 %v4379, %v4378
        %v4390 = vpack.c.bf16 %v4381, %v4380
        %v4391 = vpack.c.bf16 %v4383, %v4382
        %v4392 = vld [vmem:[%s4] sm:$0xf]
        %v4393 = vld [vmem:[%s4 + $0x4] sm:$0xf]
        %v4394 = vld [vmem:[%s4 + $0x8] sm:$0xf]
        %v4395 = vld [vmem:[%s4 + $0xc] sm:$0xf]
        %v4396 = vld [vmem:[%s4 + $0x10] sm:$0xf]
        %v4397 = vld [vmem:[%s4 + $0x14] sm:$0xf]
        %v4398 = vld [vmem:[%s4 + $0x18] sm:$0xf]
        %v4399 = vld [vmem:[%s4 + $0x1c] sm:$0xf]
        %v4400 = vlaneseq
        %v4401 = vshrl.u32 %v4400, 7
        %v4402 = vsub.s32 1, %v4401
        %v4403 = vrot.slane %v4088, %v4402
        %v4412 = vunpack.c.l.b16 %v4392
        %v4413 = vunpack.c.l.b16 %v4393
        %v4414 = vunpack.c.l.b16 %v4394
        %v4415 = vunpack.c.l.b16 %v4395
        %v4416 = vunpack.c.l.b16 %v4396
        %v4417 = vunpack.c.l.b16 %v4397
        %v4418 = vunpack.c.l.b16 %v4398
        %v4419 = vunpack.c.l.b16 %v4399
        %v4420 = vpack.c.b16 %v4413, %v4412
        %v4421 = vpack.c.b16 %v4415, %v4414
        %v4422 = vpack.c.b16 %v4417, %v4416
        %v4423 = vpack.c.b16 %v4419, %v4418
        %vm4428 = vcmask 523264
        %v4430 = vsel %vm4428, %v4384, 0
        %v4433 = vsel %vm4428, %v4385, 0
        %v4436 = vsel %vm4428, %v4386, 0
        %v4439 = vsel %vm4428, %v4387, 0
        %v4442 = vsel %vm4428, %v4388, 0
        %v4445 = vsel %vm4428, %v4389, 0
        %v4448 = vsel %vm4428, %v4390, 0
        %v4451 = vsel %vm4428, %v4391, 0
        %4453 = vmatprep.subr.bf16.mxu0 0
        %4454 = vmatpush1.bf16.msra.mxu0 0
        %4455 = vmatprep.subr.bf16.mxu0 0
        %4456 = vmatpush1.bf16.msra.mxu0 0
        %4457 = vmatprep.subr.bf16.mxu0 0
        %4458 = vmatpush1.bf16.msra.mxu0 0
        %4459 = vmatprep.subr.bf16.mxu0 0
        %4460 = vmatpush1.bf16.msra.mxu0 0
        %4461 = vmatprep.subr.bf16.mxu0 0
        %4462 = vmatpush1.bf16.msra.mxu0 %v4423
        %4463 = vmatprep.subr.bf16.mxu0 0
        %4464 = vmatpush1.bf16.msra.mxu0 %v4422
        %4465 = vmatprep.subr.bf16.mxu0 0
        %4466 = vmatpush1.bf16.msra.mxu0 %v4421
        %4467 = vmatprep.subr.bf16.mxu0 0
        %4468 = vmatpush1.bf16.msra.mxu0 %v4420
        %4469 = vmatprep.subr.bf16.mxu0 0
        %4470 = vmatpush2.bf16.msra.mxu0 0
        %4471 = vmatprep.subr.bf16.mxu0 0
        %4472 = vmatpush2.bf16.msra.mxu0 0
        %4473 = vmatprep.subr.bf16.mxu0 0
        %4474 = vmatpush2.bf16.msra.mxu0 0
        %4475 = vmatprep.subr.bf16.mxu0 0
        %4476 = vmatpush2.bf16.msra.mxu0 0
        %4477 = vmatprep.subr.bf16.mxu0 0
        %4478 = vmatpush2.bf16.msra.mxu0 0
        %4479 = vmatprep.subr.bf16.mxu0 0
        %4480 = vmatpush2.bf16.msra.mxu0 0
        %4481 = vmatprep.subr.bf16.mxu0 0
        %4482 = vmatpush2.bf16.msra.mxu0 0
        %4483 = vmatprep.subr.bf16.mxu0 0
        %4484 = vmatpush2.bf16.msra.mxu0 0
        %4485 = vmatprep.mubr.bf16.mxu0 0
        %4486 = vmatmul.mubr.bf16.gmra.mxu0 %v4430
        %v4487 = vpop.f32.mrf.mxu0
        %v4488 = vadd.f32 %v4403, %v4487
        %v4489 = vpop.f32.mrf.mxu0
        %v4490 = vpop.f32.mrf.mxu0
        %v4491 = vadd.f32 %v4403, %v4490
        %v4492 = vpop.f32.mrf.mxu0
        %4493 = vmatprep.mubr.bf16.mxu0 0
        %4494 = vmatmul.mubr.bf16.gmra.mxu0 %v4433
        %v4495 = vpop.f32.mrf.mxu0
        %v4496 = vadd.f32 %v4403, %v4495
        %v4497 = vpop.f32.mrf.mxu0
        %v4498 = vpop.f32.mrf.mxu0
        %v4499 = vadd.f32 %v4403, %v4498
        %v4500 = vpop.f32.mrf.mxu0
        %4501 = vmatprep.mubr.bf16.mxu0 0
        %4502 = vmatmul.mubr.bf16.gmra.mxu0 %v4436
        %v4503 = vpop.f32.mrf.mxu0
        %v4504 = vadd.f32 %v4403, %v4503
        %v4505 = vpop.f32.mrf.mxu0
        %v4506 = vpop.f32.mrf.mxu0
        %v4507 = vadd.f32 %v4403, %v4506
        %v4508 = vpop.f32.mrf.mxu0
        %4509 = vmatprep.mubr.bf16.mxu0 0
        %4510 = vmatmul.mubr.bf16.gmra.mxu0 %v4439
        %v4511 = vpop.f32.mrf.mxu0
        %v4512 = vadd.f32 %v4403, %v4511
        %v4513 = vpop.f32.mrf.mxu0
        %v4514 = vpop.f32.mrf.mxu0
        %v4515 = vadd.f32 %v4403, %v4514
        %v4516 = vpop.f32.mrf.mxu0
        %4517 = vmatprep.mubr.bf16.mxu0 0
        %4518 = vmatmul.mubr.bf16.gmra.mxu0 %v4442
        %v4519 = vpop.f32.mrf.mxu0
        %v4520 = vadd.f32 %v4403, %v4519
        %v4521 = vpop.f32.mrf.mxu0
        %v4522 = vpop.f32.mrf.mxu0
        %v4523 = vadd.f32 %v4403, %v4522
        %v4524 = vpop.f32.mrf.mxu0
        %4525 = vmatprep.mubr.bf16.mxu0 0
        %4526 = vmatmul.mubr.bf16.gmra.mxu0 %v4445
        %v4527 = vpop.f32.mrf.mxu0
        %v4528 = vadd.f32 %v4403, %v4527
        %v4529 = vpop.f32.mrf.mxu0
        %v4530 = vpop.f32.mrf.mxu0
        %v4531 = vadd.f32 %v4403, %v4530
        %v4532 = vpop.f32.mrf.mxu0
        %4533 = vmatprep.mubr.bf16.mxu0 0
        %4534 = vmatmul.mubr.bf16.gmra.mxu0 %v4448
        %v4535 = vpop.f32.mrf.mxu0
        %v4536 = vadd.f32 %v4403, %v4535
        %v4537 = vpop.f32.mrf.mxu0
        %v4538 = vpop.f32.mrf.mxu0
        %v4539 = vadd.f32 %v4403, %v4538
        %v4540 = vpop.f32.mrf.mxu0
        %4541 = vmatprep.mubr.bf16.mxu0 0
        %4542 = vmatmul.mubr.bf16.gmra.mxu0 %v4451
        %v4543 = vpop.f32.mrf.mxu0
        %v4544 = vadd.f32 %v4403, %v4543
        %v4545 = vpop.f32.mrf.mxu0
        %v4546 = vpop.f32.mrf.mxu0
        %v4547 = vadd.f32 %v4403, %v4546
        %v4548 = vpop.f32.mrf.mxu0
        %4549 = vdwg.mxu0
        %v4550 = vmax.f32 %v4488, 0.0
        %v4551 = vmax.f32 %v4491, 0.0
        %v4552 = vmax.f32 %v4496, 0.0
        %v4553 = vmax.f32 %v4499, 0.0
        %v4554 = vmax.f32 %v4504, 0.0
        %v4555 = vmax.f32 %v4507, 0.0
        %v4556 = vmax.f32 %v4512, 0.0
        %v4557 = vmax.f32 %v4515, 0.0
        %v4558 = vmax.f32 %v4520, 0.0
        %v4559 = vmax.f32 %v4523, 0.0
        %v4560 = vmax.f32 %v4528, 0.0
        %v4561 = vmax.f32 %v4531, 0.0
        %v4562 = vmax.f32 %v4536, 0.0
        %v4563 = vmax.f32 %v4539, 0.0
        %v4564 = vmax.f32 %v4544, 0.0
        %v4565 = vmax.f32 %v4547, 0.0
        %v4566 = vpack.c.bf16 %v4551, %v4550
        %v4567 = vpack.c.bf16 %v4553, %v4552
        %v4568 = vpack.c.bf16 %v4555, %v4554
        %v4569 = vpack.c.bf16 %v4557, %v4556
        %v4570 = vpack.c.bf16 %v4559, %v4558
        %v4571 = vpack.c.bf16 %v4561, %v4560
        %v4572 = vpack.c.bf16 %v4563, %v4562
        %v4573 = vpack.c.bf16 %v4565, %v4564
        %v4574 = vld [vmem:[%s5] sm:$0xf]
        %v4575 = vld [vmem:[%s5 + $0x4] sm:$0xf]
        %v4576 = vld [vmem:[%s5 + $0x8] sm:$0xf]
        %v4577 = vld [vmem:[%s5 + $0xc] sm:$0xf]
        %v4578 = vld [vmem:[%s5 + $0x10] sm:$0xf]
        %v4579 = vld [vmem:[%s5 + $0x14] sm:$0xf]
        %v4580 = vld [vmem:[%s5 + $0x18] sm:$0xf]
        %v4581 = vld [vmem:[%s5 + $0x1c] sm:$0xf]
        %v4582 = vlaneseq
        %v4583 = vshrl.u32 %v4582, 7
        %v4584 = vsub.s32 2, %v4583
        %v4585 = vrot.slane %v4088, %v4584
        %v4594 = vunpack.c.l.b16 %v4574
        %v4595 = vunpack.c.l.b16 %v4575
        %v4596 = vunpack.c.l.b16 %v4576
        %v4597 = vunpack.c.l.b16 %v4577
        %v4598 = vunpack.c.l.b16 %v4578
        %v4599 = vunpack.c.l.b16 %v4579
        %v4600 = vunpack.c.l.b16 %v4580
        %v4601 = vunpack.c.l.b16 %v4581
        %v4602 = vpack.c.b16 %v4595, %v4594
        %v4603 = vpack.c.b16 %v4597, %v4596
        %v4604 = vpack.c.b16 %v4599, %v4598
        %v4605 = vpack.c.b16 %v4601, %v4600
        %v4611 = vsel %vm4428, %v4566, 0
        %v4614 = vsel %vm4428, %v4567, 0
        %v4617 = vsel %vm4428, %v4568, 0
        %v4620 = vsel %vm4428, %v4569, 0
        %v4623 = vsel %vm4428, %v4570, 0
        %v4626 = vsel %vm4428, %v4571, 0
        %v4629 = vsel %vm4428, %v4572, 0
        %v4632 = vsel %vm4428, %v4573, 0
        %4634 = vmatprep.subr.bf16.mxu0 0
        %4635 = vmatpush1.bf16.msra.mxu0 0
        %4636 = vmatprep.subr.bf16.mxu0 0
        %4637 = vmatpush1.bf16.msra.mxu0 0
        %4638 = vmatprep.subr.bf16.mxu0 0
        %4639 = vmatpush1.bf16.msra.mxu0 0
        %4640 = vmatprep.subr.bf16.mxu0 0
        %4641 = vmatpush1.bf16.msra.mxu0 0
        %4642 = vmatprep.subr.bf16.mxu0 0
        %4643 = vmatpush1.bf16.msra.mxu0 %v4605
        %4644 = vmatprep.subr.bf16.mxu0 0
        %4645 = vmatpush1.bf16.msra.mxu0 %v4604
        %4646 = vmatprep.subr.bf16.mxu0 0
        %4647 = vmatpush1.bf16.msra.mxu0 %v4603
        %4648 = vmatprep.subr.bf16.mxu0 0
        %4649 = vmatpush1.bf16.msra.mxu0 %v4602
        %4650 = vmatprep.subr.bf16.mxu0 0
        %4651 = vmatpush2.bf16.msra.mxu0 0
        %4652 = vmatprep.subr.bf16.mxu0 0
        %4653 = vmatpush2.bf16.msra.mxu0 0
        %4654 = vmatprep.subr.bf16.mxu0 0
        %4655 = vmatpush2.bf16.msra.mxu0 0
        %4656 = vmatprep.subr.bf16.mxu0 0
        %4657 = vmatpush2.bf16.msra.mxu0 0
        %4658 = vmatprep.subr.bf16.mxu0 0
        %4659 = vmatpush2.bf16.msra.mxu0 0
        %4660 = vmatprep.subr.bf16.mxu0 0
        %4661 = vmatpush2.bf16.msra.mxu0 0
        %4662 = vmatprep.subr.bf16.mxu0 0
        %4663 = vmatpush2.bf16.msra.mxu0 0
        %4664 = vmatprep.subr.bf16.mxu0 0
        %4665 = vmatpush2.bf16.msra.mxu0 0
        %4666 = vmatprep.mubr.bf16.mxu0 0
        %4667 = vmatmul.mubr.bf16.gmra.mxu0 %v4611
        %v4668 = vpop.f32.mrf.mxu0
        %v4669 = vadd.f32 %v4585, %v4668
        %v4670 = vpop.f32.mrf.mxu0
        %v4671 = vpop.f32.mrf.mxu0
        %v4672 = vadd.f32 %v4585, %v4671
        %v4673 = vpop.f32.mrf.mxu0
        %4674 = vmatprep.mubr.bf16.mxu0 0
        %4675 = vmatmul.mubr.bf16.gmra.mxu0 %v4614
        %v4676 = vpop.f32.mrf.mxu0
        %v4677 = vadd.f32 %v4585, %v4676
        %v4678 = vpop.f32.mrf.mxu0
        %v4679 = vpop.f32.mrf.mxu0
        %v4680 = vadd.f32 %v4585, %v4679
        %v4681 = vpop.f32.mrf.mxu0
        %4682 = vmatprep.mubr.bf16.mxu0 0
        %4683 = vmatmul.mubr.bf16.gmra.mxu0 %v4617
        %v4684 = vpop.f32.mrf.mxu0
        %v4685 = vadd.f32 %v4585, %v4684
        %v4686 = vpop.f32.mrf.mxu0
        %v4687 = vpop.f32.mrf.mxu0
        %v4688 = vadd.f32 %v4585, %v4687
        %v4689 = vpop.f32.mrf.mxu0
        %4690 = vmatprep.mubr.bf16.mxu0 0
        %4691 = vmatmul.mubr.bf16.gmra.mxu0 %v4620
        %v4692 = vpop.f32.mrf.mxu0
        %v4693 = vadd.f32 %v4585, %v4692
        %v4694 = vpop.f32.mrf.mxu0
        %v4695 = vpop.f32.mrf.mxu0
        %v4696 = vadd.f32 %v4585, %v4695
        %v4697 = vpop.f32.mrf.mxu0
        %4698 = vmatprep.mubr.bf16.mxu0 0
        %4699 = vmatmul.mubr.bf16.gmra.mxu0 %v4623
        %v4700 = vpop.f32.mrf.mxu0
        %v4701 = vadd.f32 %v4585, %v4700
        %v4702 = vpop.f32.mrf.mxu0
        %v4703 = vpop.f32.mrf.mxu0
        %v4704 = vadd.f32 %v4585, %v4703
        %v4705 = vpop.f32.mrf.mxu0
        %4706 = vmatprep.mubr.bf16.mxu0 0
        %4707 = vmatmul.mubr.bf16.gmra.mxu0 %v4626
        %v4708 = vpop.f32.mrf.mxu0
        %v4709 = vadd.f32 %v4585, %v4708
        %v4710 = vpop.f32.mrf.mxu0
        %v4711 = vpop.f32.mrf.mxu0
        %v4712 = vadd.f32 %v4585, %v4711
        %v4713 = vpop.f32.mrf.mxu0
        %4714 = vmatprep.mubr.bf16.mxu0 0
        %4715 = vmatmul.mubr.bf16.gmra.mxu0 %v4629
        %v4716 = vpop.f32.mrf.mxu0
        %v4717 = vadd.f32 %v4585, %v4716
        %v4718 = vpop.f32.mrf.mxu0
        %v4719 = vpop.f32.mrf.mxu0
        %v4720 = vadd.f32 %v4585, %v4719
        %v4721 = vpop.f32.mrf.mxu0
        %4722 = vmatprep.mubr.bf16.mxu0 0
        %4723 = vmatmul.mubr.bf16.gmra.mxu0 %v4632
        %v4724 = vpop.f32.mrf.mxu0
        %v4725 = vadd.f32 %v4585, %v4724
        %v4726 = vpop.f32.mrf.mxu0
        %v4727 = vpop.f32.mrf.mxu0
        %v4728 = vadd.f32 %v4585, %v4727
        %v4729 = vpop.f32.mrf.mxu0
        %4730 = vdwg.mxu0
        %v4731 = vmax.f32 %v4669, 0.0
        %v4732 = vmax.f32 %v4672, 0.0
        %v4733 = vmax.f32 %v4677, 0.0
        %v4734 = vmax.f32 %v4680, 0.0
        %v4735 = vmax.f32 %v4685, 0.0
        %v4736 = vmax.f32 %v4688, 0.0
        %v4737 = vmax.f32 %v4693, 0.0
        %v4738 = vmax.f32 %v4696, 0.0
        %v4739 = vmax.f32 %v4701, 0.0
        %v4740 = vmax.f32 %v4704, 0.0
        %v4741 = vmax.f32 %v4709, 0.0
        %v4742 = vmax.f32 %v4712, 0.0
        %v4743 = vmax.f32 %v4717, 0.0
        %v4744 = vmax.f32 %v4720, 0.0
        %v4745 = vmax.f32 %v4725, 0.0
        %v4746 = vmax.f32 %v4728, 0.0
        %v4747 = vpack.c.bf16 %v4732, %v4731
        %v4748 = vpack.c.bf16 %v4734, %v4733
        %v4749 = vpack.c.bf16 %v4736, %v4735
        %v4750 = vpack.c.bf16 %v4738, %v4737
        %v4751 = vpack.c.bf16 %v4740, %v4739
        %v4752 = vpack.c.bf16 %v4742, %v4741
        %v4753 = vpack.c.bf16 %v4744, %v4743
        %v4754 = vpack.c.bf16 %v4746, %v4745
        %v4755 = vld [vmem:[%s6] sm:$0xf]
        %v4756 = vld [vmem:[%s6 + $0x4] sm:$0xf]
        %v4757 = vld [vmem:[%s6 + $0x8] sm:$0xf]
        %v4758 = vld [vmem:[%s6 + $0xc] sm:$0xf]
        %v4759 = vld [vmem:[%s6 + $0x10] sm:$0xf]
        %v4760 = vld [vmem:[%s6 + $0x14] sm:$0xf]
        %v4761 = vld [vmem:[%s6 + $0x18] sm:$0xf]
        %v4762 = vld [vmem:[%s6 + $0x1c] sm:$0xf]
        %v4763 = vld [vmem:[%s7] sm:$0xf]
        %v4764 = vld [vmem:[%s7 + $0x4] sm:$0xf]
        %v4767 = vunpack.c.l.b16 %v4763
        %v4768 = vunpack.c.l.b16 %v4764
        %v4769 = vpack.c.b16 %v4768, %v4767
        %4771 = vmatprep.subr.bf16.mxu0 0
        %4772 = vmatpush1.bf16.msra.mxu0 0
        %4773 = vmatprep.subr.bf16.mxu0 0
        %4774 = vmatpush1.bf16.msra.mxu0 0
        %4775 = vmatprep.subr.bf16.mxu0 0
        %4776 = vmatpush1.bf16.msra.mxu0 0
        %4777 = vmatprep.subr.bf16.mxu0 0
        %4778 = vmatpush1.bf16.msra.mxu0 0
        %4779 = vmatprep.subr.bf16.mxu0 0
        %4780 = vmatpush1.bf16.msra.mxu0 0
        %4781 = vmatprep.subr.bf16.mxu0 0
        %4782 = vmatpush1.bf16.msra.mxu0 0
        %4783 = vmatprep.subr.bf16.mxu0 0
        %4784 = vmatpush1.bf16.msra.mxu0 0
        %4785 = vmatprep.subr.bf16.mxu0 0
        %4786 = vmatpush1.bf16.msra.mxu0 %v4769
        %4787 = vmatprep.subr.bf16.mxu0 0
        %4788 = vmatpush2.bf16.msra.mxu0 0
        %4789 = vmatprep.subr.bf16.mxu0 0
        %4790 = vmatpush2.bf16.msra.mxu0 0
        %4791 = vmatprep.subr.bf16.mxu0 0
        %4792 = vmatpush2.bf16.msra.mxu0 0
        %4793 = vmatprep.subr.bf16.mxu0 0
        %4794 = vmatpush2.bf16.msra.mxu0 0
        %4795 = vmatprep.subr.bf16.mxu0 0
        %4796 = vmatpush2.bf16.msra.mxu0 0
        %4797 = vmatprep.subr.bf16.mxu0 0
        %4798 = vmatpush2.bf16.msra.mxu0 0
        %4799 = vmatprep.subr.bf16.mxu0 0
        %4800 = vmatpush2.bf16.msra.mxu0 0
        %4801 = vmatprep.subr.bf16.mxu0 0
        %4802 = vmatpush2.bf16.msra.mxu0 0
        %4803 = vmatprep.mubr.bf16.mxu0 0
        %4804 = vmatmul.mubr.bf16.gmra.mxu0 %v4228
        %v4805 = vpop.f32.mrf.mxu0
        %v4806 = vadd.f32 0.0, %v4805
        %v4807 = vpop.f32.mrf.mxu0
        %v4808 = vpop.f32.mrf.mxu0
        %v4809 = vadd.f32 0.0, %v4808
        %v4810 = vpop.f32.mrf.mxu0
        %4811 = vmatprep.mubr.bf16.mxu0 0
        %4812 = vmatmul.mubr.bf16.gmra.mxu0 %v4231
        %v4813 = vpop.f32.mrf.mxu0
        %v4814 = vadd.f32 0.0, %v4813
        %v4815 = vpop.f32.mrf.mxu0
        %v4816 = vpop.f32.mrf.mxu0
        %v4817 = vadd.f32 0.0, %v4816
        %v4818 = vpop.f32.mrf.mxu0
        %4819 = vmatprep.mubr.bf16.mxu0 0
        %4820 = vmatmul.mubr.bf16.gmra.mxu0 %v4234
        %v4821 = vpop.f32.mrf.mxu0
        %v4822 = vadd.f32 0.0, %v4821
        %v4823 = vpop.f32.mrf.mxu0
        %v4824 = vpop.f32.mrf.mxu0
        %v4825 = vadd.f32 0.0, %v4824
        %v4826 = vpop.f32.mrf.mxu0
        %4827 = vmatprep.mubr.bf16.mxu0 0
        %4828 = vmatmul.mubr.bf16.gmra.mxu0 %v4237
        %v4829 = vpop.f32.mrf.mxu0
        %v4830 = vadd.f32 0.0, %v4829
        %v4831 = vpop.f32.mrf.mxu0
        %v4832 = vpop.f32.mrf.mxu0
        %v4833 = vadd.f32 0.0, %v4832
        %v4834 = vpop.f32.mrf.mxu0
        %4835 = vmatprep.mubr.bf16.mxu0 0
        %4836 = vmatmul.mubr.bf16.gmra.mxu0 %v4240
        %v4837 = vpop.f32.mrf.mxu0
        %v4838 = vadd.f32 0.0, %v4837
        %v4839 = vpop.f32.mrf.mxu0
        %v4840 = vpop.f32.mrf.mxu0
        %v4841 = vadd.f32 0.0, %v4840
        %v4842 = vpop.f32.mrf.mxu0
        %4843 = vmatprep.mubr.bf16.mxu0 0
        %4844 = vmatmul.mubr.bf16.gmra.mxu0 %v4243
        %v4845 = vpop.f32.mrf.mxu0
        %v4846 = vadd.f32 0.0, %v4845
        %v4847 = vpop.f32.mrf.mxu0
        %v4848 = vpop.f32.mrf.mxu0
        %v4849 = vadd.f32 0.0, %v4848
        %v4850 = vpop.f32.mrf.mxu0
        %4851 = vmatprep.mubr.bf16.mxu0 0
        %4852 = vmatmul.mubr.bf16.gmra.mxu0 %v4246
        %v4853 = vpop.f32.mrf.mxu0
        %v4854 = vadd.f32 0.0, %v4853
        %v4855 = vpop.f32.mrf.mxu0
        %v4856 = vpop.f32.mrf.mxu0
        %v4857 = vadd.f32 0.0, %v4856
        %v4858 = vpop.f32.mrf.mxu0
        %4859 = vmatprep.mubr.bf16.mxu0 0
        %4860 = vmatmul.mubr.bf16.gmra.mxu0 %v4249
        %v4861 = vpop.f32.mrf.mxu0
        %v4862 = vadd.f32 0.0, %v4861
        %v4863 = vpop.f32.mrf.mxu0
        %v4864 = vpop.f32.mrf.mxu0
        %v4865 = vadd.f32 0.0, %v4864
        %v4866 = vpop.f32.mrf.mxu0
        %4867 = vdwg.mxu0
        %v4876 = vunpack.c.l.b16 %v4755
        %v4877 = vunpack.c.l.b16 %v4756
        %v4878 = vunpack.c.l.b16 %v4757
        %v4879 = vunpack.c.l.b16 %v4758
        %v4880 = vunpack.c.l.b16 %v4759
        %v4881 = vunpack.c.l.b16 %v4760
        %v4882 = vunpack.c.l.b16 %v4761
        %v4883 = vunpack.c.l.b16 %v4762
        %v4884 = vpack.c.b16 %v4877, %v4876
        %v4885 = vpack.c.b16 %v4879, %v4878
        %v4886 = vpack.c.b16 %v4881, %v4880
        %v4887 = vpack.c.b16 %v4883, %v4882
        %v4893 = vsel %vm4428, %v4747, 0
        %v4896 = vsel %vm4428, %v4748, 0
        %v4899 = vsel %vm4428, %v4749, 0
        %v4902 = vsel %vm4428, %v4750, 0
        %v4905 = vsel %vm4428, %v4751, 0
        %v4908 = vsel %vm4428, %v4752, 0
        %v4911 = vsel %vm4428, %v4753, 0
        %v4914 = vsel %vm4428, %v4754, 0
        %4916 = vmatprep.subr.bf16.mxu0 0
        %4917 = vmatpush1.bf16.msra.mxu0 0
        %4918 = vmatprep.subr.bf16.mxu0 0
        %4919 = vmatpush1.bf16.msra.mxu0 0
        %4920 = vmatprep.subr.bf16.mxu0 0
        %4921 = vmatpush1.bf16.msra.mxu0 0
        %4922 = vmatprep.subr.bf16.mxu0 0
        %4923 = vmatpush1.bf16.msra.mxu0 0
        %4924 = vmatprep.subr.bf16.mxu0 0
        %4925 = vmatpush1.bf16.msra.mxu0 %v4887
        %4926 = vmatprep.subr.bf16.mxu0 0
        %4927 = vmatpush1.bf16.msra.mxu0 %v4886
        %4928 = vmatprep.subr.bf16.mxu0 0
        %4929 = vmatpush1.bf16.msra.mxu0 %v4885
        %4930 = vmatprep.subr.bf16.mxu0 0
        %4931 = vmatpush1.bf16.msra.mxu0 %v4884
        %4932 = vmatprep.subr.bf16.mxu0 0
        %4933 = vmatpush2.bf16.msra.mxu0 0
        %4934 = vmatprep.subr.bf16.mxu0 0
        %4935 = vmatpush2.bf16.msra.mxu0 0
        %4936 = vmatprep.subr.bf16.mxu0 0
        %4937 = vmatpush2.bf16.msra.mxu0 0
        %4938 = vmatprep.subr.bf16.mxu0 0
        %4939 = vmatpush2.bf16.msra.mxu0 0
        %4940 = vmatprep.subr.bf16.mxu0 0
        %4941 = vmatpush2.bf16.msra.mxu0 0
        %4942 = vmatprep.subr.bf16.mxu0 0
        %4943 = vmatpush2.bf16.msra.mxu0 0
        %4944 = vmatprep.subr.bf16.mxu0 0
        %4945 = vmatpush2.bf16.msra.mxu0 0
        %4946 = vmatprep.subr.bf16.mxu0 0
        %4947 = vmatpush2.bf16.msra.mxu0 0
        %4948 = vmatprep.mubr.bf16.mxu0 0
        %4949 = vmatmul.mubr.bf16.gmra.mxu0 %v4893
        %v4950 = vpop.f32.mrf.mxu0
        %v4951 = vadd.f32 %v4806, %v4950
        %v4952 = vpop.f32.mrf.mxu0
        %v4953 = vpop.f32.mrf.mxu0
        %v4954 = vadd.f32 %v4809, %v4953
        %v4955 = vpop.f32.mrf.mxu0
        %4956 = vmatprep.mubr.bf16.mxu0 0
        %4957 = vmatmul.mubr.bf16.gmra.mxu0 %v4896
        %v4958 = vpop.f32.mrf.mxu0
        %v4959 = vadd.f32 %v4814, %v4958
        %v4960 = vpop.f32.mrf.mxu0
        %v4961 = vpop.f32.mrf.mxu0
        %v4962 = vadd.f32 %v4817, %v4961
        %v4963 = vpop.f32.mrf.mxu0
        %4964 = vmatprep.mubr.bf16.mxu0 0
        %4965 = vmatmul.mubr.bf16.gmra.mxu0 %v4899
        %v4966 = vpop.f32.mrf.mxu0
        %v4967 = vadd.f32 %v4822, %v4966
        %v4968 = vpop.f32.mrf.mxu0
        %v4969 = vpop.f32.mrf.mxu0
        %v4970 = vadd.f32 %v4825, %v4969
        %v4971 = vpop.f32.mrf.mxu0
        %4972 = vmatprep.mubr.bf16.mxu0 0
        %4973 = vmatmul.mubr.bf16.gmra.mxu0 %v4902
        %v4974 = vpop.f32.mrf.mxu0
        %v4975 = vadd.f32 %v4830, %v4974
        %v4976 = vpop.f32.mrf.mxu0
        %v4977 = vpop.f32.mrf.mxu0
        %v4978 = vadd.f32 %v4833, %v4977
        %v4979 = vpop.f32.mrf.mxu0
        %4980 = vmatprep.mubr.bf16.mxu0 0
        %4981 = vmatmul.mubr.bf16.gmra.mxu0 %v4905
        %v4982 = vpop.f32.mrf.mxu0
        %v4983 = vadd.f32 %v4838, %v4982
        %v4984 = vpop.f32.mrf.mxu0
        %v4985 = vpop.f32.mrf.mxu0
        %v4986 = vadd.f32 %v4841, %v4985
        %v4987 = vpop.f32.mrf.mxu0
        %4988 = vmatprep.mubr.bf16.mxu0 0
        %4989 = vmatmul.mubr.bf16.gmra.mxu0 %v4908
        %v4990 = vpop.f32.mrf.mxu0
        %v4991 = vadd.f32 %v4846, %v4990
        %v4992 = vpop.f32.mrf.mxu0
        %v4993 = vpop.f32.mrf.mxu0
        %v4994 = vadd.f32 %v4849, %v4993
        %v4995 = vpop.f32.mrf.mxu0
        %4996 = vmatprep.mubr.bf16.mxu0 0
        %4997 = vmatmul.mubr.bf16.gmra.mxu0 %v4911
        %v4998 = vpop.f32.mrf.mxu0
        %v4999 = vadd.f32 %v4854, %v4998
        %v5000 = vpop.f32.mrf.mxu0
        %v5001 = vpop.f32.mrf.mxu0
        %v5002 = vadd.f32 %v4857, %v5001
        %v5003 = vpop.f32.mrf.mxu0
        %5004 = vmatprep.mubr.bf16.mxu0 0
        %5005 = vmatmul.mubr.bf16.gmra.mxu0 %v4914
        %v5006 = vpop.f32.mrf.mxu0
        %v5007 = vadd.f32 %v4862, %v5006
        %v5008 = vpop.f32.mrf.mxu0
        %v5009 = vpop.f32.mrf.mxu0
        %v5010 = vadd.f32 %v4865, %v5009
        %v5011 = vpop.f32.mrf.mxu0
        %5012 = vdwg.mxu0
        %v5013 = vld [vmem:[%s8] sm:$0xf]
        %v5014 = vld [vmem:[%s8 + $0x4] sm:$0xf]
        %v5017 = vunpack.c.l.b16 %v5013
        %v5018 = vunpack.c.l.b16 %v5014
        %v5019 = vpack.c.b16 %v5018, %v5017
        %5021 = vmatprep.subr.bf16.mxu0 0
        %5022 = vmatpush1.bf16.msra.mxu0 0
        %5023 = vmatprep.subr.bf16.mxu0 0
        %5024 = vmatpush1.bf16.msra.mxu0 0
        %5025 = vmatprep.subr.bf16.mxu0 0
        %5026 = vmatpush1.bf16.msra.mxu0 0
        %5027 = vmatprep.subr.bf16.mxu0 0
        %5028 = vmatpush1.bf16.msra.mxu0 0
        %5029 = vmatprep.subr.bf16.mxu0 0
        %5030 = vmatpush1.bf16.msra.mxu0 0
        %5031 = vmatprep.subr.bf16.mxu0 0
        %5032 = vmatpush1.bf16.msra.mxu0 0
        %5033 = vmatprep.subr.bf16.mxu0 0
        %5034 = vmatpush1.bf16.msra.mxu0 0
        %5035 = vmatprep.subr.bf16.mxu0 0
        %5036 = vmatpush1.bf16.msra.mxu0 %v5019
        %5037 = vmatprep.subr.bf16.mxu0 0
        %5038 = vmatpush2.bf16.msra.mxu0 0
        %5039 = vmatprep.subr.bf16.mxu0 0
        %5040 = vmatpush2.bf16.msra.mxu0 0
        %5041 = vmatprep.subr.bf16.mxu0 0
        %5042 = vmatpush2.bf16.msra.mxu0 0
        %5043 = vmatprep.subr.bf16.mxu0 0
        %5044 = vmatpush2.bf16.msra.mxu0 0
        %5045 = vmatprep.subr.bf16.mxu0 0
        %5046 = vmatpush2.bf16.msra.mxu0 0
        %5047 = vmatprep.subr.bf16.mxu0 0
        %5048 = vmatpush2.bf16.msra.mxu0 0
        %5049 = vmatprep.subr.bf16.mxu0 0
        %5050 = vmatpush2.bf16.msra.mxu0 0
        %5051 = vmatprep.subr.bf16.mxu0 0
        %5052 = vmatpush2.bf16.msra.mxu0 0
        %5053 = vmatprep.mubr.bf16.mxu0 0
        %5054 = vmatmul.mubr.bf16.gmra.mxu0 %v4101
        %v5055 = vpop.f32.mrf.mxu0
        %v5056 = vadd.f32 0.0, %v5055
        %v5057 = vpop.f32.mrf.mxu0
        %v5058 = vpop.f32.mrf.mxu0
        %v5059 = vadd.f32 0.0, %v5058
        %v5060 = vpop.f32.mrf.mxu0
        %5061 = vmatprep.mubr.bf16.mxu0 0
        %5062 = vmatmul.mubr.bf16.gmra.mxu0 %v4104
        %v5063 = vpop.f32.mrf.mxu0
        %v5064 = vadd.f32 0.0, %v5063
        %v5065 = vpop.f32.mrf.mxu0
        %v5066 = vpop.f32.mrf.mxu0
        %v5067 = vadd.f32 0.0, %v5066
        %v5068 = vpop.f32.mrf.mxu0
        %5069 = vmatprep.mubr.bf16.mxu0 0
        %5070 = vmatmul.mubr.bf16.gmra.mxu0 %v4107
        %v5071 = vpop.f32.mrf.mxu0
        %v5072 = vadd.f32 0.0, %v5071
        %v5073 = vpop.f32.mrf.mxu0
        %v5074 = vpop.f32.mrf.mxu0
        %v5075 = vadd.f32 0.0, %v5074
        %v5076 = vpop.f32.mrf.mxu0
        %5077 = vmatprep.mubr.bf16.mxu0 0
        %5078 = vmatmul.mubr.bf16.gmra.mxu0 %v4110
        %v5079 = vpop.f32.mrf.mxu0
        %v5080 = vadd.f32 0.0, %v5079
        %v5081 = vpop.f32.mrf.mxu0
        %v5082 = vpop.f32.mrf.mxu0
        %v5083 = vadd.f32 0.0, %v5082
        %v5084 = vpop.f32.mrf.mxu0
        %5085 = vmatprep.mubr.bf16.mxu0 0
        %5086 = vmatmul.mubr.bf16.gmra.mxu0 %v4113
        %v5087 = vpop.f32.mrf.mxu0
        %v5088 = vadd.f32 0.0, %v5087
        %v5089 = vpop.f32.mrf.mxu0
        %v5090 = vpop.f32.mrf.mxu0
        %v5091 = vadd.f32 0.0, %v5090
        %v5092 = vpop.f32.mrf.mxu0
        %5093 = vmatprep.mubr.bf16.mxu0 0
        %5094 = vmatmul.mubr.bf16.gmra.mxu0 %v4116
        %v5095 = vpop.f32.mrf.mxu0
        %v5096 = vadd.f32 0.0, %v5095
        %v5097 = vpop.f32.mrf.mxu0
        %v5098 = vpop.f32.mrf.mxu0
        %v5099 = vadd.f32 0.0, %v5098
        %v5100 = vpop.f32.mrf.mxu0
        %5101 = vmatprep.mubr.bf16.mxu0 0
        %5102 = vmatmul.mubr.bf16.gmra.mxu0 %v4119
        %v5103 = vpop.f32.mrf.mxu0
        %v5104 = vadd.f32 0.0, %v5103
        %v5105 = vpop.f32.mrf.mxu0
        %v5106 = vpop.f32.mrf.mxu0
        %v5107 = vadd.f32 0.0, %v5106
        %v5108 = vpop.f32.mrf.mxu0
        %5109 = vmatprep.mubr.bf16.mxu0 0
        %5110 = vmatmul.mubr.bf16.gmra.mxu0 %v4122
        %v5111 = vpop.f32.mrf.mxu0
        %v5112 = vadd.f32 0.0, %v5111
        %v5113 = vpop.f32.mrf.mxu0
        %v5114 = vpop.f32.mrf.mxu0
        %v5115 = vadd.f32 0.0, %v5114
        %v5116 = vpop.f32.mrf.mxu0
        %5117 = vdwg.mxu0
        %v5118 = vadd.f32 %v4951, %v5056
        %v5119 = vadd.f32 %v4954, %v5059
        %v5120 = vadd.f32 %v4959, %v5064
        %v5121 = vadd.f32 %v4962, %v5067
        %v5122 = vadd.f32 %v4967, %v5072
        %v5123 = vadd.f32 %v4970, %v5075
        %v5124 = vadd.f32 %v4975, %v5080
        %v5125 = vadd.f32 %v4978, %v5083
        %v5126 = vadd.f32 %v4983, %v5088
        %v5127 = vadd.f32 %v4986, %v5091
        %v5128 = vadd.f32 %v4991, %v5096
        %v5129 = vadd.f32 %v4994, %v5099
        %v5130 = vadd.f32 %v4999, %v5104
        %v5131 = vadd.f32 %v5002, %v5107
        %v5132 = vadd.f32 %v5007, %v5112
        %v5133 = vadd.f32 %v5010, %v5115
        %v5134 = vlaneseq
        %v5135 = vshrl.u32 %v5134, 7
        %v5136 = vsub.s32 3, %v5135
        %v5137 = vrot.slane %v4088, %v5136
        %v5138 = vadd.f32 %v5118, %v5137
        %v5139 = vadd.f32 %v5119, %v5137
        %v5140 = vadd.f32 %v5120, %v5137
        %v5141 = vadd.f32 %v5121, %v5137
        %v5142 = vadd.f32 %v5122, %v5137
        %v5143 = vadd.f32 %v5123, %v5137
        %v5144 = vadd.f32 %v5124, %v5137
        %v5145 = vadd.f32 %v5125, %v5137
        %v5146 = vadd.f32 %v5126, %v5137
        %v5147 = vadd.f32 %v5127, %v5137
        %v5148 = vadd.f32 %v5128, %v5137
        %v5149 = vadd.f32 %v5129, %v5137
        %v5150 = vadd.f32 %v5130, %v5137
        %v5151 = vadd.f32 %v5131, %v5137
        %v5152 = vadd.f32 %v5132, %v5137
        %v5153 = vadd.f32 %v5133, %v5137
        %v5154 = vmax.f32 %v5138, 0.0
        %v5155 = vmax.f32 %v5139, 0.0
        %v5156 = vmax.f32 %v5140, 0.0
        %v5157 = vmax.f32 %v5141, 0.0
        %v5158 = vmax.f32 %v5142, 0.0
        %v5159 = vmax.f32 %v5143, 0.0
        %v5160 = vmax.f32 %v5144, 0.0
        %v5161 = vmax.f32 %v5145, 0.0
        %v5162 = vmax.f32 %v5146, 0.0
        %v5163 = vmax.f32 %v5147, 0.0
        %v5164 = vmax.f32 %v5148, 0.0
        %v5165 = vmax.f32 %v5149, 0.0
        %v5166 = vmax.f32 %v5150, 0.0
        %v5167 = vmax.f32 %v5151, 0.0
        %v5168 = vmax.f32 %v5152, 0.0
        %v5169 = vmax.f32 %v5153, 0.0
        %v5170 = vpack.c.bf16 %v5155, %v5154
        %v5171 = vpack.c.bf16 %v5157, %v5156
        %v5172 = vpack.c.bf16 %v5159, %v5158
        %v5173 = vpack.c.bf16 %v5161, %v5160
        %v5174 = vpack.c.bf16 %v5163, %v5162
        %v5175 = vpack.c.bf16 %v5165, %v5164
        %v5176 = vpack.c.bf16 %v5167, %v5166
        %v5177 = vpack.c.bf16 %v5169, %v5168
        %v5178 = vld [vmem:[%s9] sm:$0xf]
        %v5179 = vld [vmem:[%s9 + $0x4] sm:$0xf]
        %v5180 = vld [vmem:[%s9 + $0x8] sm:$0xf]
        %v5181 = vld [vmem:[%s9 + $0xc] sm:$0xf]
        %v5182 = vld [vmem:[%s9 + $0x10] sm:$0xf]
        %v5183 = vld [vmem:[%s9 + $0x14] sm:$0xf]
        %v5184 = vld [vmem:[%s9 + $0x18] sm:$0xf]
        %v5185 = vld [vmem:[%s9 + $0x1c] sm:$0xf]
        %v5186 = vlaneseq
        %v5187 = vshrl.u32 %v5186, 7
        %v5188 = vsub.s32 4, %v5187
        %v5189 = vrot.slane %v4088, %v5188
        %v5198 = vunpack.c.l.b16 %v5178
        %v5199 = vunpack.c.l.b16 %v5179
        %v5200 = vunpack.c.l.b16 %v5180
        %v5201 = vunpack.c.l.b16 %v5181
        %v5202 = vunpack.c.l.b16 %v5182
        %v5203 = vunpack.c.l.b16 %v5183
        %v5204 = vunpack.c.l.b16 %v5184
        %v5205 = vunpack.c.l.b16 %v5185
        %v5206 = vpack.c.b16 %v5199, %v5198
        %v5207 = vpack.c.b16 %v5201, %v5200
        %v5208 = vpack.c.b16 %v5203, %v5202
        %v5209 = vpack.c.b16 %v5205, %v5204
        %v5215 = vsel %vm4428, %v5170, 0
        %v5218 = vsel %vm4428, %v5171, 0
        %v5221 = vsel %vm4428, %v5172, 0
        %v5224 = vsel %vm4428, %v5173, 0
        %v5227 = vsel %vm4428, %v5174, 0
        %v5230 = vsel %vm4428, %v5175, 0
        %v5233 = vsel %vm4428, %v5176, 0
        %v5236 = vsel %vm4428, %v5177, 0
        %5238 = vmatprep.subr.bf16.mxu0 0
        %5239 = vmatpush1.bf16.msra.mxu0 0
        %5240 = vmatprep.subr.bf16.mxu0 0
        %5241 = vmatpush1.bf16.msra.mxu0 0
        %5242 = vmatprep.subr.bf16.mxu0 0
        %5243 = vmatpush1.bf16.msra.mxu0 0
        %5244 = vmatprep.subr.bf16.mxu0 0
        %5245 = vmatpush1.bf16.msra.mxu0 0
        %5246 = vmatprep.subr.bf16.mxu0 0
        %5247 = vmatpush1.bf16.msra.mxu0 %v5209
        %5248 = vmatprep.subr.bf16.mxu0 0
        %5249 = vmatpush1.bf16.msra.mxu0 %v5208
        %5250 = vmatprep.subr.bf16.mxu0 0
        %5251 = vmatpush1.bf16.msra.mxu0 %v5207
        %5252 = vmatprep.subr.bf16.mxu0 0
        %5253 = vmatpush1.bf16.msra.mxu0 %v5206
        %5254 = vmatprep.subr.bf16.mxu0 0
        %5255 = vmatpush2.bf16.msra.mxu0 0
        %5256 = vmatprep.subr.bf16.mxu0 0
        %5257 = vmatpush2.bf16.msra.mxu0 0
        %5258 = vmatprep.subr.bf16.mxu0 0
        %5259 = vmatpush2.bf16.msra.mxu0 0
        %5260 = vmatprep.subr.bf16.mxu0 0
        %5261 = vmatpush2.bf16.msra.mxu0 0
        %5262 = vmatprep.subr.bf16.mxu0 0
        %5263 = vmatpush2.bf16.msra.mxu0 0
        %5264 = vmatprep.subr.bf16.mxu0 0
        %5265 = vmatpush2.bf16.msra.mxu0 0
        %5266 = vmatprep.subr.bf16.mxu0 0
        %5267 = vmatpush2.bf16.msra.mxu0 0
        %5268 = vmatprep.subr.bf16.mxu0 0
        %5269 = vmatpush2.bf16.msra.mxu0 0
        %5270 = vmatprep.mubr.bf16.mxu0 0
        %5271 = vmatmul.mubr.bf16.gmra.mxu0 %v5215
        %v5272 = vpop.f32.mrf.mxu0
        %v5273 = vadd.f32 %v5189, %v5272
        %v5274 = vpop.f32.mrf.mxu0
        %v5275 = vpop.f32.mrf.mxu0
        %v5276 = vadd.f32 %v5189, %v5275
        %v5277 = vpop.f32.mrf.mxu0
        %5278 = vmatprep.mubr.bf16.mxu0 0
        %5279 = vmatmul.mubr.bf16.gmra.mxu0 %v5218
        %v5280 = vpop.f32.mrf.mxu0
        %v5281 = vadd.f32 %v5189, %v5280
        %v5282 = vpop.f32.mrf.mxu0
        %v5283 = vpop.f32.mrf.mxu0
        %v5284 = vadd.f32 %v5189, %v5283
        %v5285 = vpop.f32.mrf.mxu0
        %5286 = vmatprep.mubr.bf16.mxu0 0
        %5287 = vmatmul.mubr.bf16.gmra.mxu0 %v5221
        %v5288 = vpop.f32.mrf.mxu0
        %v5289 = vadd.f32 %v5189, %v5288
        %v5290 = vpop.f32.mrf.mxu0
        %v5291 = vpop.f32.mrf.mxu0
        %v5292 = vadd.f32 %v5189, %v5291
        %v5293 = vpop.f32.mrf.mxu0
        %5294 = vmatprep.mubr.bf16.mxu0 0
        %5295 = vmatmul.mubr.bf16.gmra.mxu0 %v5224
        %v5296 = vpop.f32.mrf.mxu0
        %v5297 = vadd.f32 %v5189, %v5296
        %v5298 = vpop.f32.mrf.mxu0
        %v5299 = vpop.f32.mrf.mxu0
        %v5300 = vadd.f32 %v5189, %v5299
        %v5301 = vpop.f32.mrf.mxu0
        %5302 = vmatprep.mubr.bf16.mxu0 0
        %5303 = vmatmul.mubr.bf16.gmra.mxu0 %v5227
        %v5304 = vpop.f32.mrf.mxu0
        %v5305 = vadd.f32 %v5189, %v5304
        %v5306 = vpop.f32.mrf.mxu0
        %v5307 = vpop.f32.mrf.mxu0
        %v5308 = vadd.f32 %v5189, %v5307
        %v5309 = vpop.f32.mrf.mxu0
        %5310 = vmatprep.mubr.bf16.mxu0 0
        %5311 = vmatmul.mubr.bf16.gmra.mxu0 %v5230
        %v5312 = vpop.f32.mrf.mxu0
        %v5313 = vadd.f32 %v5189, %v5312
        %v5314 = vpop.f32.mrf.mxu0
        %v5315 = vpop.f32.mrf.mxu0
        %v5316 = vadd.f32 %v5189, %v5315
        %v5317 = vpop.f32.mrf.mxu0
        %5318 = vmatprep.mubr.bf16.mxu0 0
        %5319 = vmatmul.mubr.bf16.gmra.mxu0 %v5233
        %v5320 = vpop.f32.mrf.mxu0
        %v5321 = vadd.f32 %v5189, %v5320
        %v5322 = vpop.f32.mrf.mxu0
        %v5323 = vpop.f32.mrf.mxu0
        %v5324 = vadd.f32 %v5189, %v5323
        %v5325 = vpop.f32.mrf.mxu0
        %5326 = vmatprep.mubr.bf16.mxu0 0
        %5327 = vmatmul.mubr.bf16.gmra.mxu0 %v5236
        %v5328 = vpop.f32.mrf.mxu0
        %v5329 = vadd.f32 %v5189, %v5328
        %v5330 = vpop.f32.mrf.mxu0
        %v5331 = vpop.f32.mrf.mxu0
        %v5332 = vadd.f32 %v5189, %v5331
        %v5333 = vpop.f32.mrf.mxu0
        %5334 = vdwg.mxu0
        %v5335 = vmax.f32 %v5273, 0.0
        %v5336 = vmax.f32 %v5276, 0.0
        %v5337 = vmax.f32 %v5281, 0.0
        %v5338 = vmax.f32 %v5284, 0.0
        %v5339 = vmax.f32 %v5289, 0.0
        %v5340 = vmax.f32 %v5292, 0.0
        %v5341 = vmax.f32 %v5297, 0.0
        %v5342 = vmax.f32 %v5300, 0.0
        %v5343 = vmax.f32 %v5305, 0.0
        %v5344 = vmax.f32 %v5308, 0.0
        %v5345 = vmax.f32 %v5313, 0.0
        %v5346 = vmax.f32 %v5316, 0.0
        %v5347 = vmax.f32 %v5321, 0.0
        %v5348 = vmax.f32 %v5324, 0.0
        %v5349 = vmax.f32 %v5329, 0.0
        %v5350 = vmax.f32 %v5332, 0.0
        %v5351 = vpack.c.bf16 %v5336, %v5335
        %v5352 = vpack.c.bf16 %v5338, %v5337
        %v5353 = vpack.c.bf16 %v5340, %v5339
        %v5354 = vpack.c.bf16 %v5342, %v5341
        %v5355 = vpack.c.bf16 %v5344, %v5343
        %v5356 = vpack.c.bf16 %v5346, %v5345
        %v5357 = vpack.c.bf16 %v5348, %v5347
        %v5358 = vpack.c.bf16 %v5350, %v5349
        %v5359 = vld [vmem:[%s10] sm:$0xf]
        %v5360 = vld [vmem:[%s10 + $0x4] sm:$0xf]
        %v5361 = vld [vmem:[%s10 + $0x8] sm:$0xf]
        %v5362 = vld [vmem:[%s10 + $0xc] sm:$0xf]
        %v5363 = vld [vmem:[%s10 + $0x10] sm:$0xf]
        %v5364 = vld [vmem:[%s10 + $0x14] sm:$0xf]
        %v5365 = vld [vmem:[%s10 + $0x18] sm:$0xf]
        %v5366 = vld [vmem:[%s10 + $0x1c] sm:$0xf]
        %v5367 = vlaneseq
        %v5368 = vshrl.u32 %v5367, 7
        %v5369 = vsub.s32 5, %v5368
        %v5370 = vrot.slane %v4088, %v5369
        %v5379 = vunpack.c.l.b16 %v5359
        %v5380 = vunpack.c.l.b16 %v5360
        %v5381 = vunpack.c.l.b16 %v5361
        %v5382 = vunpack.c.l.b16 %v5362
        %v5383 = vunpack.c.l.b16 %v5363
        %v5384 = vunpack.c.l.b16 %v5364
        %v5385 = vunpack.c.l.b16 %v5365
        %v5386 = vunpack.c.l.b16 %v5366
        %v5387 = vpack.c.b16 %v5380, %v5379
        %v5388 = vpack.c.b16 %v5382, %v5381
        %v5389 = vpack.c.b16 %v5384, %v5383
        %v5390 = vpack.c.b16 %v5386, %v5385
        %v5396 = vsel %vm4428, %v5351, 0
        %v5399 = vsel %vm4428, %v5352, 0
        %v5402 = vsel %vm4428, %v5353, 0
        %v5405 = vsel %vm4428, %v5354, 0
        %v5408 = vsel %vm4428, %v5355, 0
        %v5411 = vsel %vm4428, %v5356, 0
        %v5414 = vsel %vm4428, %v5357, 0
        %v5417 = vsel %vm4428, %v5358, 0
        %5419 = vmatprep.subr.bf16.mxu0 0
        %5420 = vmatpush1.bf16.msra.mxu0 0
        %5421 = vmatprep.subr.bf16.mxu0 0
        %5422 = vmatpush1.bf16.msra.mxu0 0
        %5423 = vmatprep.subr.bf16.mxu0 0
        %5424 = vmatpush1.bf16.msra.mxu0 0
        %5425 = vmatprep.subr.bf16.mxu0 0
        %5426 = vmatpush1.bf16.msra.mxu0 0
        %5427 = vmatprep.subr.bf16.mxu0 0
        %5428 = vmatpush1.bf16.msra.mxu0 %v5390
        %5429 = vmatprep.subr.bf16.mxu0 0
        %5430 = vmatpush1.bf16.msra.mxu0 %v5389
        %5431 = vmatprep.subr.bf16.mxu0 0
        %5432 = vmatpush1.bf16.msra.mxu0 %v5388
        %5433 = vmatprep.subr.bf16.mxu0 0
        %5434 = vmatpush1.bf16.msra.mxu0 %v5387
        %5435 = vmatprep.subr.bf16.mxu0 0
        %5436 = vmatpush2.bf16.msra.mxu0 0
        %5437 = vmatprep.subr.bf16.mxu0 0
        %5438 = vmatpush2.bf16.msra.mxu0 0
        %5439 = vmatprep.subr.bf16.mxu0 0
        %5440 = vmatpush2.bf16.msra.mxu0 0
        %5441 = vmatprep.subr.bf16.mxu0 0
        %5442 = vmatpush2.bf16.msra.mxu0 0
        %5443 = vmatprep.subr.bf16.mxu0 0
        %5444 = vmatpush2.bf16.msra.mxu0 0
        %5445 = vmatprep.subr.bf16.mxu0 0
        %5446 = vmatpush2.bf16.msra.mxu0 0
        %5447 = vmatprep.subr.bf16.mxu0 0
        %5448 = vmatpush2.bf16.msra.mxu0 0
        %5449 = vmatprep.subr.bf16.mxu0 0
        %5450 = vmatpush2.bf16.msra.mxu0 0
        %5451 = vmatprep.mubr.bf16.mxu0 0
        %5452 = vmatmul.mubr.bf16.gmra.mxu0 %v5396
        %v5453 = vpop.f32.mrf.mxu0
        %v5454 = vadd.f32 %v5370, %v5453
        %v5455 = vpop.f32.mrf.mxu0
        %v5456 = vpop.f32.mrf.mxu0
        %v5457 = vadd.f32 %v5370, %v5456
        %v5458 = vpop.f32.mrf.mxu0
        %5459 = vmatprep.mubr.bf16.mxu0 0
        %5460 = vmatmul.mubr.bf16.gmra.mxu0 %v5399
        %v5461 = vpop.f32.mrf.mxu0
        %v5462 = vadd.f32 %v5370, %v5461
        %v5463 = vpop.f32.mrf.mxu0
        %v5464 = vpop.f32.mrf.mxu0
        %v5465 = vadd.f32 %v5370, %v5464
        %v5466 = vpop.f32.mrf.mxu0
        %5467 = vmatprep.mubr.bf16.mxu0 0
        %5468 = vmatmul.mubr.bf16.gmra.mxu0 %v5402
        %v5469 = vpop.f32.mrf.mxu0
        %v5470 = vadd.f32 %v5370, %v5469
        %v5471 = vpop.f32.mrf.mxu0
        %v5472 = vpop.f32.mrf.mxu0
        %v5473 = vadd.f32 %v5370, %v5472
        %v5474 = vpop.f32.mrf.mxu0
        %5475 = vmatprep.mubr.bf16.mxu0 0
        %5476 = vmatmul.mubr.bf16.gmra.mxu0 %v5405
        %v5477 = vpop.f32.mrf.mxu0
        %v5478 = vadd.f32 %v5370, %v5477
        %v5479 = vpop.f32.mrf.mxu0
        %v5480 = vpop.f32.mrf.mxu0
        %v5481 = vadd.f32 %v5370, %v5480
        %v5482 = vpop.f32.mrf.mxu0
        %5483 = vmatprep.mubr.bf16.mxu0 0
        %5484 = vmatmul.mubr.bf16.gmra.mxu0 %v5408
        %v5485 = vpop.f32.mrf.mxu0
        %v5486 = vadd.f32 %v5370, %v5485
        %v5487 = vpop.f32.mrf.mxu0
        %v5488 = vpop.f32.mrf.mxu0
        %v5489 = vadd.f32 %v5370, %v5488
        %v5490 = vpop.f32.mrf.mxu0
        %5491 = vmatprep.mubr.bf16.mxu0 0
        %5492 = vmatmul.mubr.bf16.gmra.mxu0 %v5411
        %v5493 = vpop.f32.mrf.mxu0
        %v5494 = vadd.f32 %v5370, %v5493
        %v5495 = vpop.f32.mrf.mxu0
        %v5496 = vpop.f32.mrf.mxu0
        %v5497 = vadd.f32 %v5370, %v5496
        %v5498 = vpop.f32.mrf.mxu0
        %5499 = vmatprep.mubr.bf16.mxu0 0
        %5500 = vmatmul.mubr.bf16.gmra.mxu0 %v5414
        %v5501 = vpop.f32.mrf.mxu0
        %v5502 = vadd.f32 %v5370, %v5501
        %v5503 = vpop.f32.mrf.mxu0
        %v5504 = vpop.f32.mrf.mxu0
        %v5505 = vadd.f32 %v5370, %v5504
        %v5506 = vpop.f32.mrf.mxu0
        %5507 = vmatprep.mubr.bf16.mxu0 0
        %5508 = vmatmul.mubr.bf16.gmra.mxu0 %v5417
        %v5509 = vpop.f32.mrf.mxu0
        %v5510 = vadd.f32 %v5370, %v5509
        %v5511 = vpop.f32.mrf.mxu0
        %v5512 = vpop.f32.mrf.mxu0
        %v5513 = vadd.f32 %v5370, %v5512
        %v5514 = vpop.f32.mrf.mxu0
        %5515 = vdwg.mxu0
        %v5516 = vmax.f32 %v5454, 0.0
        %v5517 = vmax.f32 %v5457, 0.0
        %v5518 = vmax.f32 %v5462, 0.0
        %v5519 = vmax.f32 %v5465, 0.0
        %v5520 = vmax.f32 %v5470, 0.0
        %v5521 = vmax.f32 %v5473, 0.0
        %v5522 = vmax.f32 %v5478, 0.0
        %v5523 = vmax.f32 %v5481, 0.0
        %v5524 = vmax.f32 %v5486, 0.0
        %v5525 = vmax.f32 %v5489, 0.0
        %v5526 = vmax.f32 %v5494, 0.0
        %v5527 = vmax.f32 %v5497, 0.0
        %v5528 = vmax.f32 %v5502, 0.0
        %v5529 = vmax.f32 %v5505, 0.0
        %v5530 = vmax.f32 %v5510, 0.0
        %v5531 = vmax.f32 %v5513, 0.0
        %v5532 = vpack.c.bf16 %v5517, %v5516
        %v5533 = vpack.c.bf16 %v5519, %v5518
        %v5534 = vpack.c.bf16 %v5521, %v5520
        %v5535 = vpack.c.bf16 %v5523, %v5522
        %v5536 = vpack.c.bf16 %v5525, %v5524
        %v5537 = vpack.c.bf16 %v5527, %v5526
        %v5538 = vpack.c.bf16 %v5529, %v5528
        %v5539 = vpack.c.bf16 %v5531, %v5530
        %v5540 = vld [vmem:[%s11] sm:$0xf]
        %v5541 = vld [vmem:[%s11 + $0x4] sm:$0xf]
        %v5542 = vld [vmem:[%s11 + $0x8] sm:$0xf]
        %v5543 = vld [vmem:[%s11 + $0xc] sm:$0xf]
        %v5544 = vld [vmem:[%s11 + $0x10] sm:$0xf]
        %v5545 = vld [vmem:[%s11 + $0x14] sm:$0xf]
        %v5546 = vld [vmem:[%s11 + $0x18] sm:$0xf]
        %v5547 = vld [vmem:[%s11 + $0x1c] sm:$0xf]
        %v5548 = vlaneseq
        %v5549 = vshrl.u32 %v5548, 7
        %v5550 = vsub.s32 6, %v5549
        %v5551 = vrot.slane %v4088, %v5550
        %v5560 = vunpack.c.l.b16 %v5540
        %v5561 = vunpack.c.l.b16 %v5541
        %v5562 = vunpack.c.l.b16 %v5542
        %v5563 = vunpack.c.l.b16 %v5543
        %v5564 = vunpack.c.l.b16 %v5544
        %v5565 = vunpack.c.l.b16 %v5545
        %v5566 = vunpack.c.l.b16 %v5546
        %v5567 = vunpack.c.l.b16 %v5547
        %v5568 = vpack.c.b16 %v5561, %v5560
        %v5569 = vpack.c.b16 %v5563, %v5562
        %v5570 = vpack.c.b16 %v5565, %v5564
        %v5571 = vpack.c.b16 %v5567, %v5566
        %v5577 = vsel %vm4428, %v5532, 0
        %v5580 = vsel %vm4428, %v5533, 0
        %v5583 = vsel %vm4428, %v5534, 0
        %v5586 = vsel %vm4428, %v5535, 0
        %v5589 = vsel %vm4428, %v5536, 0
        %v5592 = vsel %vm4428, %v5537, 0
        %v5595 = vsel %vm4428, %v5538, 0
        %v5598 = vsel %vm4428, %v5539, 0
        %5600 = vmatprep.subr.bf16.mxu0 0
        %5601 = vmatpush1.bf16.msra.mxu0 0
        %5602 = vmatprep.subr.bf16.mxu0 0
        %5603 = vmatpush1.bf16.msra.mxu0 0
        %5604 = vmatprep.subr.bf16.mxu0 0
        %5605 = vmatpush1.bf16.msra.mxu0 0
        %5606 = vmatprep.subr.bf16.mxu0 0
        %5607 = vmatpush1.bf16.msra.mxu0 0
        %5608 = vmatprep.subr.bf16.mxu0 0
        %5609 = vmatpush1.bf16.msra.mxu0 %v5571
        %5610 = vmatprep.subr.bf16.mxu0 0
        %5611 = vmatpush1.bf16.msra.mxu0 %v5570
        %5612 = vmatprep.subr.bf16.mxu0 0
        %5613 = vmatpush1.bf16.msra.mxu0 %v5569
        %5614 = vmatprep.subr.bf16.mxu0 0
        %5615 = vmatpush1.bf16.msra.mxu0 %v5568
        %5616 = vmatprep.subr.bf16.mxu0 0
        %5617 = vmatpush2.bf16.msra.mxu0 0
        %5618 = vmatprep.subr.bf16.mxu0 0
        %5619 = vmatpush2.bf16.msra.mxu0 0
        %5620 = vmatprep.subr.bf16.mxu0 0
        %5621 = vmatpush2.bf16.msra.mxu0 0
        %5622 = vmatprep.subr.bf16.mxu0 0
        %5623 = vmatpush2.bf16.msra.mxu0 0
        %5624 = vmatprep.subr.bf16.mxu0 0
        %5625 = vmatpush2.bf16.msra.mxu0 0
        %5626 = vmatprep.subr.bf16.mxu0 0
        %5627 = vmatpush2.bf16.msra.mxu0 0
        %5628 = vmatprep.subr.bf16.mxu0 0
        %5629 = vmatpush2.bf16.msra.mxu0 0
        %5630 = vmatprep.subr.bf16.mxu0 0
        %5631 = vmatpush2.bf16.msra.mxu0 0
        %5632 = vmatprep.mubr.bf16.mxu0 0
        %5633 = vmatmul.mubr.bf16.gmra.mxu0 %v5577
        %v5634 = vpop.f32.mrf.mxu0
        %v5635 = vadd.f32 %v5551, %v5634
        %v5636 = vpop.f32.mrf.mxu0
        %v5637 = vpop.f32.mrf.mxu0
        %v5638 = vadd.f32 %v5551, %v5637
        %v5639 = vpop.f32.mrf.mxu0
        %5640 = vmatprep.mubr.bf16.mxu0 0
        %5641 = vmatmul.mubr.bf16.gmra.mxu0 %v5580
        %v5642 = vpop.f32.mrf.mxu0
        %v5643 = vadd.f32 %v5551, %v5642
        %v5644 = vpop.f32.mrf.mxu0
        %v5645 = vpop.f32.mrf.mxu0
        %v5646 = vadd.f32 %v5551, %v5645
        %v5647 = vpop.f32.mrf.mxu0
        %5648 = vmatprep.mubr.bf16.mxu0 0
        %5649 = vmatmul.mubr.bf16.gmra.mxu0 %v5583
        %v5650 = vpop.f32.mrf.mxu0
        %v5651 = vadd.f32 %v5551, %v5650
        %v5652 = vpop.f32.mrf.mxu0
        %v5653 = vpop.f32.mrf.mxu0
        %v5654 = vadd.f32 %v5551, %v5653
        %v5655 = vpop.f32.mrf.mxu0
        %5656 = vmatprep.mubr.bf16.mxu0 0
        %5657 = vmatmul.mubr.bf16.gmra.mxu0 %v5586
        %v5658 = vpop.f32.mrf.mxu0
        %v5659 = vadd.f32 %v5551, %v5658
        %v5660 = vpop.f32.mrf.mxu0
        %v5661 = vpop.f32.mrf.mxu0
        %v5662 = vadd.f32 %v5551, %v5661
        %v5663 = vpop.f32.mrf.mxu0
        %5664 = vmatprep.mubr.bf16.mxu0 0
        %5665 = vmatmul.mubr.bf16.gmra.mxu0 %v5589
        %v5666 = vpop.f32.mrf.mxu0
        %v5667 = vadd.f32 %v5551, %v5666
        %v5668 = vpop.f32.mrf.mxu0
        %v5669 = vpop.f32.mrf.mxu0
        %v5670 = vadd.f32 %v5551, %v5669
        %v5671 = vpop.f32.mrf.mxu0
        %5672 = vmatprep.mubr.bf16.mxu0 0
        %5673 = vmatmul.mubr.bf16.gmra.mxu0 %v5592
        %v5674 = vpop.f32.mrf.mxu0
        %v5675 = vadd.f32 %v5551, %v5674
        %v5676 = vpop.f32.mrf.mxu0
        %v5677 = vpop.f32.mrf.mxu0
        %v5678 = vadd.f32 %v5551, %v5677
        %v5679 = vpop.f32.mrf.mxu0
        %5680 = vmatprep.mubr.bf16.mxu0 0
        %5681 = vmatmul.mubr.bf16.gmra.mxu0 %v5595
        %v5682 = vpop.f32.mrf.mxu0
        %v5683 = vadd.f32 %v5551, %v5682
        %v5684 = vpop.f32.mrf.mxu0
        %v5685 = vpop.f32.mrf.mxu0
        %v5686 = vadd.f32 %v5551, %v5685
        %v5687 = vpop.f32.mrf.mxu0
        %5688 = vmatprep.mubr.bf16.mxu0 0
        %5689 = vmatmul.mubr.bf16.gmra.mxu0 %v5598
        %v5690 = vpop.f32.mrf.mxu0
        %v5691 = vadd.f32 %v5551, %v5690
        %v5692 = vpop.f32.mrf.mxu0
        %v5693 = vpop.f32.mrf.mxu0
        %v5694 = vadd.f32 %v5551, %v5693
        %v5695 = vpop.f32.mrf.mxu0
        %5696 = vdwg.mxu0
        %5697 = vst [vmem:[%s434] sm:$0xff] %v5635
        %5698 = vst [vmem:[%s434 + $0x8] sm:$0xff] %v5638
        %5699 = vst [vmem:[%s434 + $0x10] sm:$0xff] %v5643
        %5700 = vst [vmem:[%s434 + $0x18] sm:$0xff] %v5646
        %5701 = vst [vmem:[%s434 + $0x20] sm:$0xff] %v5651
        %5702 = vst [vmem:[%s434 + $0x28] sm:$0xff] %v5654
        %5703 = vst [vmem:[%s434 + $0x30] sm:$0xff] %v5659
        %5704 = vst [vmem:[%s434 + $0x38] sm:$0xff] %v5662
        %5705 = vst [vmem:[%s434 + $0x40] sm:$0xff] %v5667
        %5706 = vst [vmem:[%s434 + $0x48] sm:$0xff] %v5670
        %5707 = vst [vmem:[%s434 + $0x50] sm:$0xff] %v5675
        %5708 = vst [vmem:[%s434 + $0x58] sm:$0xff] %v5678
        %5709 = vst [vmem:[%s434 + $0x60] sm:$0xff] %v5683
        %5710 = vst [vmem:[%s434 + $0x68] sm:$0xff] %v5686
        %5711 = vst [vmem:[%s434 + $0x70] sm:$0xff] %v5691
        %5712 = vst [vmem:[%s434 + $0x78] sm:$0xff] %v5694
        %s5713 = sand.u32 %s313, 1
        %s5714 = scalar_lea.sflag [#allocation3], %s5713
        %s5715 = sand.u32 %s313, 1
        %s5716 = smul.addr %s5715, 128
        %s5717 = scalar_lea.vmem [#allocation2], %s5716
        // Predicated region
        $region73: #{tpu_custom_call.1} parent=71 // pred_check
          %p5718 = pneg %p323
        $region74: #{tpu_custom_call.1} parent=71 // pred_check_branch
          %5720 = sbr.rel (%p5718) target = $region76
        $region75: #{tpu_custom_call.1} parent=71 // pred_region
          %s5721 = smul.u32 16, %s27
          %s5723 = ssub.s32 2048, 2048
          %5724 = vsyncadd %s5714, %s5723
          %s5725 = smul.addr %s5721, 128
          %s5726 = scalar_lea.hbm %s13, %s5725
          %s5727 = sshll.u32 %s5717, 4
          %s5728 = int_to_ptr.vmem [resolvable:$true] %s5727
          %5733 = dma.vmem_to_hbm [thread:$0]  %s5728, 2048, %s5726, %s5714, 128, 128, 8
        $region76: #{tpu_custom_call.1} parent=71 // pred_fallthru
          _
      $region72: #{tpu_custom_call.1} parent=5 // pred_fallthru
        _
      %p5734 = scmp.le.s32.totalorder 2, %s22
      // Predicated region
      $region77: #{tpu_custom_call.1} parent=5 // pred_check
        %p5735 = pneg %p5734
      $region78: #{tpu_custom_call.1} parent=5 // pred_check_branch
        %5737 = sbr.rel (%p5735) target = $region80
      $region79: #{tpu_custom_call.1} parent=5 // pred_region
        %s5738 = ssub.s32 %s22, 2
        // Predicated region
        $region81: #{tpu_custom_call.1} parent=79 // pred_check
          %p5739 = pneg %p329
        $region82: #{tpu_custom_call.1} parent=79 // pred_check_branch
          %5741 = sbr.rel (%p5739) target = $region84
        $region83: #{tpu_custom_call.1} parent=79 // pred_region
          %s5742 = sand.u32 %s314, 1
          %s5743 = scalar_lea.sflag [#allocation3], %s5742
          %s5744 = sand.u32 %s314, 1
          %s5745 = smul.addr %s5744, 128
          %s5746 = scalar_lea.vmem [#allocation2], %s5745
          %5747 = dma.done %s5743, 2048
        $region84: #{tpu_custom_call.1} parent=79 // pred_fallthru
          _
      $region80: #{tpu_custom_call.1} parent=5 // pred_fallthru
        _
    $region6: #{tpu_custom_call.1} parent=1 // loop_footer
      %s26 = sadd.s32 1, %s22
    $region7: #{tpu_custom_call.1} parent=1 // loop_footer_branch
      %21 = sbr.rel target = $region3
    $region8: #{tpu_custom_call.1} parent=1 // loop_exit
      _
    %5748 = vsyncpa [#allocation3], 1
    %s5749 = scalar_lea.sflag [#allocation3], 1
    %5750 = vsyncpa %s5749, 1

</llo_original>
